<compile_context>
chip_gen: v5e
topology: v5e:2x2
jax: 0.10.0
libtpu: 0.0.40
codegen_flags: <defaults>
</compile_context>

<pallas_src>
import math
import functools

import jax
import jax.numpy as jnp
from jax.experimental import pallas as pl
from jax.experimental.pallas import tpu as pltpu


def _fused_kernel(pred_len, nres, Bb, T, Cin3, P,
                  comb_ref,
                  w_in_ref, b_in_ref,
                  w_r1_ref, b_r1_ref, w_r2_ref, b_r2_ref,
                  w_mu_ref, b_mu_ref, w_lv_ref, b_lv_ref,
                  w_ih_ref, b_ih_ref, w_hh_ref, b_hh_ref,
                  w_out_ref, b_out_ref,
                  out_ref):
    """One grid step = one block of Bb examples, time-major flattened to M=T*Bb rows."""
    f32, bf16 = jnp.float32, jnp.bfloat16
    H = w_hh_ref.shape[0]

    comb = comb_ref[0]                                  # [M, 3*Cin + D] (single DMA)
    x = comb[:, :Cin3]                                  # im2col'd conv input
    eps = comb[:, Cin3:]                                # reparameterization noise

    # ---- encoder: conv k=3 (im2col in wrapper) + residual 1x1 stack ----------
    h = jnp.dot(x.astype(bf16), w_in_ref[...], preferred_element_type=f32)
    h = jax.nn.relu(h + b_in_ref[...])
    for i in range(nres):
        r = jax.nn.relu(h).astype(bf16)
        r = jnp.dot(r, w_r1_ref[i], preferred_element_type=f32) + b_r1_ref[i]
        r = jax.nn.relu(r).astype(bf16)
        r = jnp.dot(r, w_r2_ref[i], preferred_element_type=f32) + b_r2_ref[i]
        h = h + r
    h = jax.nn.relu(h)

    # ---- VAE heads (kept f32 for KL/latent accuracy; off the serial path) ----
    mu = jnp.dot(h, w_mu_ref[...], preferred_element_type=f32) + b_mu_ref[...]
    lv = jnp.dot(h, w_lv_ref[...], preferred_element_type=f32) + b_lv_ref[...]
    s = jnp.exp(0.5 * lv)                               # one EUP exp; s*s == exp(lv)
    zs = mu + eps * s                                   # [M, D]
    kl_part = jnp.sum(1.0 + lv - mu * mu - s * s, axis=(0, 1), keepdims=True)  # [1,1]

    # ---- GRU predictor --------------------------------------------------------
    # Hoisted input gates: ONE [M, D] x [D, 3H] dot for all timesteps & all gates.
    gi = (jnp.dot(zs.astype(bf16), w_ih_ref[...], preferred_element_type=f32)
          + b_ih_ref[...])                              # [M, 3H]

    w_hh = w_hh_ref[...]                                # [H, 3H] bf16
    b_hh = b_hh_ref[...]                                # [1, 3H] f32

    def gru_step(gi_r, gi_z, gi_n, hcur):
        # PyTorch GRUCell, gate order (r, z, n); ONE fused bf16 hh matmul per step.
        gh = jnp.dot(hcur.astype(bf16), w_hh, preferred_element_type=f32) + b_hh
        r = jax.nn.sigmoid(gi_r + gh[:, :H])
        z = jax.nn.sigmoid(gi_z + gh[:, H:2 * H])
        n = jnp.tanh(gi_n + r * gh[:, 2 * H:])
        return (1.0 - z) * n + z * hcur

    # encode recurrence (Bb multiple of 8 -> sublane-aligned static row slices)
    h_t = jnp.zeros((Bb, H), f32)
    for t in range(T):
        g = gi[t * Bb:(t + 1) * Bb]
        h_t = gru_step(g[:, :H], g[:, H:2 * H], g[:, 2 * H:], h_t)

    # decode: zero input -> input-gate preactivation is just b_ih (broadcast add)
    bi = b_ih_ref[...]
    gr0, gz0, gn0 = bi[:, :H], bi[:, H:2 * H], bi[:, 2 * H:]
    hs = []
    for _ in range(pred_len):                           # static, small
        h_t = gru_step(gr0, gz0, gn0, h_t)
        hs.append(h_t)
    hs.append(jnp.zeros((P - pred_len * Bb, H), f32))   # pad rows for dense block
    h_stack = jnp.concatenate(hs, axis=0)               # [P, H]

    # Output head off the loop: one lane-dense [P, H] x [H, LP] dot (LP = k*128).
    y = (jnp.dot(h_stack, w_out_ref[...], preferred_element_type=f32)
         + b_out_ref[...])                              # [P, LP]

    # Pack the KL partial into the first padding row (lane 0) so the kernel does a
    # single unmasked dense store and a single output DMA.
    row = jax.lax.broadcasted_iota(jnp.int32, y.shape, 0)
    lane = jax.lax.broadcasted_iota(jnp.int32, y.shape, 1)
    y = jnp.where((row == pred_len * Bb) & (lane == 0), kl_part, y)
    out_ref[0] = y


def unet_encoder_vae_forward(x, params, eps, *, pred_len=1, num_batch_blocks=1):
    """x: [B, C_in, L] (PyTorch NCL), eps: [B, L, D].
    Returns (y_pred [B, O] if pred_len == 1 else [B, pred_len, O], kl scalar)."""
    B, Cin, T = x.shape
    D = params["w_mu"].shape[0]
    H = params["w_hh3"].shape[0]
    O = params["w_out"].shape[1]
    nres = params["w_r1"].shape[0]

    # G=1 by default: wall time is dominated by the latency-bound serial GRU chain,
    # so splitting the batch only pays when a second TensorCore absorbs the extra
    # chain.  Only honor a requested split when the per-block batch stays 8-aligned.
    G = num_batch_blocks
    if G < 1 or B % G != 0 or (B // G) % 8 != 0:
        G = 1
    Bb = B // G
    M = T * Bb                                       # rows per grid step (time-major)

    LP = ((O + 127) // 128) * 128                    # lane-dense output width
    PB = pred_len * Bb
    P = ((PB + 1 + 7) // 8) * 8                      # output rows (+1 spare for KL)

    # im2col for the k=3 / pad=1 conv, concatenated with eps -> one input stream.
    # TODO(synk): at much larger T/Cin, form the taps in-kernel with pltpu.roll
    # instead of a 3x HBM im2col copy.
    x_cl = jnp.transpose(x, (0, 2, 1)).astype(jnp.float32)
    x_pad = jnp.pad(x_cl, ((0, 0), (1, 1), (0, 0)))
    x_col = jnp.concatenate([x_pad[:, k:k + T, :] for k in range(3)], axis=-1)
    comb = jnp.concatenate([x_col, eps.astype(jnp.float32)], axis=-1)   # [B,T,3Cin+D]

    Cc = comb.shape[-1]
    cb = comb.reshape(G, Bb, T, Cc).transpose(0, 2, 1, 3).reshape(G, M, Cc)

    # Lane-padded output head (zero lanes O..LP-1 -> unmasked dense store).
    w_out_pad = jnp.zeros((H, LP), jnp.float32).at[:, :O].set(params["w_out"])
    b_out_pad = jnp.zeros((1, LP), jnp.float32).at[:, :O].set(params["b_out"])

    bf16 = jnp.bfloat16
    weights = [
        params["w_in"].reshape(3 * Cin, D).astype(bf16), params["b_in"],
        params["w_r1"].astype(bf16), params["b_r1"],
        params["w_r2"].astype(bf16), params["b_r2"],
        params["w_mu"], params["b_mu"],              # f32 heads (KL accuracy)
        params["w_lv"], params["b_lv"],
        params["w_ih3"].astype(bf16), params["b_ih3"],
        params["w_hh3"].astype(bf16), params["b_hh3"],
        w_out_pad, b_out_pad,
    ]

    def full_spec(a):
        zeros = (0,) * a.ndim
        return pl.BlockSpec(a.shape, lambda g, zeros=zeros: zeros)

    in_specs = ([pl.BlockSpec((1, M, Cc), lambda g: (g, 0, 0))]
                + [full_spec(w) for w in weights])
    out_specs = pl.BlockSpec((1, P, LP), lambda g: (g, 0, 0))

    kernel = functools.partial(_fused_kernel, pred_len, nres, Bb, T, 3 * Cin, P)
    out = pl.pallas_call(
        kernel,
        out_shape=jax.ShapeDtypeStruct((G, P, LP), jnp.float32),
        grid=(G,),
        in_specs=in_specs,
        out_specs=out_specs,
        compiler_params=pltpu.CompilerParams(
            # TODO(synk): if G>1 is ever enabled for v7x, verify in xprof that the
            # grid actually shards across both TensorCores (else switch to
            # CORE_PARALLEL / pl.core_map over create_tensorcore_mesh).
            dimension_semantics=("arbitrary",) if G == 1 else ("parallel",),
            vmem_limit_bytes=32 * 1024 * 1024),      # working set <1 MiB on all gens
    )(cb, *weights)

    y = out[:, :PB, :O].reshape(G, pred_len, Bb, O)
    y = y.transpose(0, 2, 1, 3).reshape(B, pred_len, O)
    # TODO(synk): KL normalization (mean over B*T*D) is an assumption; the VAE class
    # body was not provided in the reference.
    kl = -0.5 * jnp.sum(out[:, PB, 0]) / (B * T * D)
    y_pred = jnp.squeeze(y, axis=1) if pred_len == 1 else y   # torch .squeeze(1)
    return y_pred, kl


def reference_forward(x, params, eps, *, pred_len=1):
    """Pure-JAX f32 reference with identical math (used for a loose self-check)."""
    B, Cin, T = x.shape
    x_cl = jnp.transpose(x, (0, 2, 1)).astype(jnp.float32)
    x_pad = jnp.pad(x_cl, ((0, 0), (1, 1), (0, 0)))
    x_col = jnp.concatenate([x_pad[:, k:k + T, :] for k in range(3)], axis=-1)

    h = jax.nn.relu(x_col @ params["w_in"].reshape(3 * Cin, -1) + params["b_in"])
    for i in range(params["w_r1"].shape[0]):
        r = jax.nn.relu(h)
        r = r @ params["w_r1"][i] + params["b_r1"][i]
        r = jax.nn.relu(r)
        r = r @ params["w_r2"][i] + params["b_r2"][i]
        h = h + r
    h = jax.nn.relu(h)

    mu = h @ params["w_mu"] + params["b_mu"]
    lv = h @ params["w_lv"] + params["b_lv"]
    zs = mu + eps * jnp.exp(0.5 * lv)
    kl = -0.5 * jnp.mean(1.0 + lv - mu * mu - jnp.exp(lv))

    H = params["w_hh3"].shape[0]

    def cell(x_t, h_t):
        gi = x_t @ params["w_ih3"] + params["b_ih3"]
        gh = h_t @ params["w_hh3"] + params["b_hh3"]
        r = jax.nn.sigmoid(gi[:, :H] + gh[:, :H])
        z = jax.nn.sigmoid(gi[:, H:2 * H] + gh[:, H:2 * H])
        n = jnp.tanh(gi[:, 2 * H:] + r * gh[:, 2 * H:])
        return (1.0 - z) * n + z * h_t

    h_t = jnp.zeros((B, H), jnp.float32)
    for t in range(T):
        h_t = cell(zs[:, t, :], h_t)
    x0 = jnp.zeros((B, params["w_ih3"].shape[0]), jnp.float32)
    ys = []
    for _ in range(pred_len):
        h_t = cell(x0, h_t)
        ys.append(h_t @ params["w_out"] + params["b_out"])
    y = jnp.stack(ys, axis=1)
    return (y[:, 0, :] if pred_len == 1 else y), kl


def init_params(key, *, in_channels, embedding_dim, hidden_dim, output_dim,
                num_residual_layers, num_residual_hiddens):
    Cin, D, H, O = in_channels, embedding_dim, hidden_dim, output_dim
    nres, R = num_residual_layers, num_residual_hiddens
    keys = jax.random.split(key, 16)

    def u(k, shape, fan_in):
        b = 1.0 / math.sqrt(fan_in)
        return jax.random.uniform(k, shape, jnp.float32, -b, b)

    # TODO(synk): when porting trained PyTorch GRUCell weights, transpose the
    # row-major [3H, in] weight_ih / weight_hh to the fused [in, 3H] layout used
    # here (gate order (r, z, n) is preserved).
    return {
        "w_in":  u(keys[0], (3, Cin, D), 3 * Cin),     # Conv1d(Cin->D, k=3) taps
        "b_in":  u(keys[1], (1, D), 3 * Cin),
        "w_r1":  u(keys[2], (nres, D, R), D),          # residual 1x1 convs
        "b_r1":  u(keys[3], (nres, 1, R), D),
        "w_r2":  u(keys[4], (nres, R, D), R),
        "b_r2":  u(keys[5], (nres, 1, D), R),
        "w_mu":  u(keys[6], (D, D), D),                # VAE mu / logvar heads
        "b_mu":  u(keys[7], (1, D), D),
        "w_lv":  u(keys[8], (D, D), D),
        "b_lv":  u(keys[9], (1, D), D),
        # GRUCell params, fused gate layout [in, 3H], gate order (r, z, n)
        "w_ih3": u(keys[10], (D, 3 * H), H),
        "b_ih3": u(keys[11], (1, 3 * H), H),
        "w_hh3": u(keys[12], (H, 3 * H), H),
        "b_hh3": u(keys[13], (1, 3 * H), H),
        "w_out": u(keys[14], (H, O), H),               # out_proj Linear
        "b_out": u(keys[15], (1, O), H),
    }


if __name__ == "__main__":
    # small shapes consistent with the module: in_length=16, in_channels=4,
    # embedding_dim=8, hidden_dim=32, output_dim=1, pred_len=1.
    # batch=8 so the single block (G=1) is an 8-row, sublane-aligned batch.
    B, Cin, T = 8, 4, 16
    D, H, O = 8, 32, 1
    nres, R = 2, 16
    pred_len = 1

    key = jax.random.PRNGKey(0)
    kp, kx, ke = jax.random.split(key, 3)
    params = init_params(kp, in_channels=Cin, embedding_dim=D, hidden_dim=H,
                         output_dim=O, num_residual_layers=nres,
                         num_residual_hiddens=R)
    x = jax.random.normal(kx, (B, Cin, T), jnp.float32)
    eps = jax.random.normal(ke, (B, T, D), jnp.float32)

    y_pred, kl = unet_encoder_vae_forward(x, params, eps, pred_len=pred_len)
    jax.block_until_ready((y_pred, kl))
    assert y_pred.shape == (B, O), y_pred.shape
    assert kl.shape == (), kl.shape

    # loose self-check vs f32 reference (kernel uses bf16 MXU operands, f32 accum)
    y_ref, kl_ref = reference_forward(x, params, eps, pred_len=pred_len)
    assert float(jnp.max(jnp.abs(y_pred - y_ref))) < 5e-2
    assert abs(float(kl) - float(kl_ref)) < 5e-2
    print("KERNEL_OK")
</pallas_src>

<mosaic_0001>
module attributes {stable_mosaic.version = 11 : i64} {
  func.func @_fused_kernel(%arg0: i32, %arg1: memref<1x128x20xf32, #tpu.memory_space<vmem>>, %arg2: memref<12x8xbf16, #tpu.memory_space<vmem>>, %arg3: memref<1x8xf32, #tpu.memory_space<vmem>>, %arg4: memref<2x8x16xbf16, #tpu.memory_space<vmem>>, %arg5: memref<2x1x16xf32, #tpu.memory_space<vmem>>, %arg6: memref<2x16x8xbf16, #tpu.memory_space<vmem>>, %arg7: memref<2x1x8xf32, #tpu.memory_space<vmem>>, %arg8: memref<8x8xf32, #tpu.memory_space<vmem>>, %arg9: memref<1x8xf32, #tpu.memory_space<vmem>>, %arg10: memref<8x8xf32, #tpu.memory_space<vmem>>, %arg11: memref<1x8xf32, #tpu.memory_space<vmem>>, %arg12: memref<8x96xbf16, #tpu.memory_space<vmem>>, %arg13: memref<1x96xf32, #tpu.memory_space<vmem>>, %arg14: memref<32x96xbf16, #tpu.memory_space<vmem>>, %arg15: memref<1x96xf32, #tpu.memory_space<vmem>>, %arg16: memref<32x128xf32, #tpu.memory_space<vmem>>, %arg17: memref<1x128xf32, #tpu.memory_space<vmem>>, %arg18: memref<1x16x128xf32, #tpu.memory_space<vmem>>) attributes {dimension_semantics = [#tpu.dimension_semantics<arbitrary>], iteration_bounds = array<i64: 1>, scalar_prefetch = 0 : i64, scratch_operands = 0 : i64, tpu.core_type = #tpu.core_type<tc>, window_params = [{transform_indices = @transform_0, window_bounds = array<i64: 1, 128, 20>}, {pipeline_mode = #tpu.pipeline_mode<synchronous>, transform_indices = @transform_1, window_bounds = array<i64: 12, 8>}, {pipeline_mode = #tpu.pipeline_mode<synchronous>, transform_indices = @transform_2, window_bounds = array<i64: 1, 8>}, {pipeline_mode = #tpu.pipeline_mode<synchronous>, transform_indices = @transform_3, window_bounds = array<i64: 2, 8, 16>}, {pipeline_mode = #tpu.pipeline_mode<synchronous>, transform_indices = @transform_4, window_bounds = array<i64: 2, 1, 16>}, {pipeline_mode = #tpu.pipeline_mode<synchronous>, transform_indices = @transform_5, window_bounds = array<i64: 2, 16, 8>}, {pipeline_mode = #tpu.pipeline_mode<synchronous>, transform_indices = @transform_6, window_bounds = array<i64: 2, 1, 8>}, {pipeline_mode = #tpu.pipeline_mode<synchronous>, transform_indices = @transform_7, window_bounds = array<i64: 8, 8>}, {pipeline_mode = #tpu.pipeline_mode<synchronous>, transform_indices = @transform_8, window_bounds = array<i64: 1, 8>}, {pipeline_mode = #tpu.pipeline_mode<synchronous>, transform_indices = @transform_9, window_bounds = array<i64: 8, 8>}, {pipeline_mode = #tpu.pipeline_mode<synchronous>, transform_indices = @transform_10, window_bounds = array<i64: 1, 8>}, {pipeline_mode = #tpu.pipeline_mode<synchronous>, transform_indices = @transform_11, window_bounds = array<i64: 8, 96>}, {pipeline_mode = #tpu.pipeline_mode<synchronous>, transform_indices = @transform_12, window_bounds = array<i64: 1, 96>}, {pipeline_mode = #tpu.pipeline_mode<synchronous>, transform_indices = @transform_13, window_bounds = array<i64: 32, 96>}, {pipeline_mode = #tpu.pipeline_mode<synchronous>, transform_indices = @transform_14, window_bounds = array<i64: 1, 96>}, {pipeline_mode = #tpu.pipeline_mode<synchronous>, transform_indices = @transform_15, window_bounds = array<i64: 32, 128>}, {pipeline_mode = #tpu.pipeline_mode<synchronous>, transform_indices = @transform_16, window_bounds = array<i64: 1, 128>}, {transform_indices = @transform_17, window_bounds = array<i64: 1, 16, 128>}]} {
    %c0 = arith.constant 0 : index
    %c0_0 = arith.constant 0 : index
    %c0_1 = arith.constant 0 : index
    %0 = vector.load %arg1[%c0, %c0_0, %c0_1] : memref<1x128x20xf32, #tpu.memory_space<vmem>>, vector<1x128x20xf32>
    %1 = vector.shape_cast %0 : vector<1x128x20xf32> to vector<128x20xf32>
    %2 = vector.extract_strided_slice %1 {offsets = [0, 0], sizes = [128, 12], strides = [1, 1]} : vector<128x20xf32> to vector<128x12xf32>
    %3 = vector.extract_strided_slice %1 {offsets = [0, 12], sizes = [128, 8], strides = [1, 1]} : vector<128x20xf32> to vector<128x8xf32>
    %4 = arith.truncf %2 : vector<128x12xf32> to vector<128x12xbf16>
    %c0_2 = arith.constant 0 : index
    %c0_3 = arith.constant 0 : index
    %5 = vector.load %arg2[%c0_2, %c0_3] : memref<12x8xbf16, #tpu.memory_space<vmem>>, vector<12x8xbf16>
    %cst = arith.constant dense<0.000000e+00> : vector<128x8xf32>
    %6 = tpu.matmul %4, %5, %cst {dimension_numbers = #tpu.dot_dimension_numbers<[1], [0], [0], [1], [0, 0, 1, 1], [], []>} : vector<128x12xbf16>, vector<12x8xbf16>, vector<128x8xf32> -> vector<128x8xf32>
    %c0_4 = arith.constant 0 : index
    %c0_5 = arith.constant 0 : index
    %7 = vector.load %arg3[%c0_4, %c0_5] : memref<1x8xf32, #tpu.memory_space<vmem>>, vector<1x8xf32>
    %8 = vector.broadcast %7 : vector<1x8xf32> to vector<128x8xf32>
    %9 = arith.addf %6, %8 : vector<128x8xf32>
    %cst_6 = arith.constant 0.000000e+00 : f32
    %10 = vector.broadcast %cst_6 : f32 to vector<128x8xf32>
    %11 = arith.maximumf %9, %10 : vector<128x8xf32>
    %cst_7 = arith.constant 0.000000e+00 : f32
    %12 = vector.broadcast %cst_7 : f32 to vector<128x8xf32>
    %13 = arith.maximumf %11, %12 : vector<128x8xf32>
    %14 = arith.truncf %13 : vector<128x8xf32> to vector<128x8xbf16>
    %c0_8 = arith.constant 0 : index
    %c0_9 = arith.constant 0 : index
    %c0_10 = arith.constant 0 : index
    %15 = vector.load %arg4[%c0_8, %c0_9, %c0_10] : memref<2x8x16xbf16, #tpu.memory_space<vmem>>, vector<1x8x16xbf16>
    %16 = vector.shape_cast %15 : vector<1x8x16xbf16> to vector<8x16xbf16>
    %cst_11 = arith.constant dense<0.000000e+00> : vector<128x16xf32>
    %17 = tpu.matmul %14, %16, %cst_11 {dimension_numbers = #tpu.dot_dimension_numbers<[1], [0], [0], [1], [0, 0, 1, 1], [], []>} : vector<128x8xbf16>, vector<8x16xbf16>, vector<128x16xf32> -> vector<128x16xf32>
    %c0_12 = arith.constant 0 : index
    %c0_13 = arith.constant 0 : index
    %c0_14 = arith.constant 0 : index
    %18 = vector.load %arg5[%c0_12, %c0_13, %c0_14] : memref<2x1x16xf32, #tpu.memory_space<vmem>>, vector<1x1x16xf32>
    %19 = vector.shape_cast %18 : vector<1x1x16xf32> to vector<1x16xf32>
    %20 = vector.broadcast %19 : vector<1x16xf32> to vector<128x16xf32>
    %21 = arith.addf %17, %20 : vector<128x16xf32>
    %cst_15 = arith.constant 0.000000e+00 : f32
    %22 = vector.broadcast %cst_15 : f32 to vector<128x16xf32>
    %23 = arith.maximumf %21, %22 : vector<128x16xf32>
    %24 = arith.truncf %23 : vector<128x16xf32> to vector<128x16xbf16>
    %c0_16 = arith.constant 0 : index
    %c0_17 = arith.constant 0 : index
    %c0_18 = arith.constant 0 : index
    %25 = vector.load %arg6[%c0_16, %c0_17, %c0_18] : memref<2x16x8xbf16, #tpu.memory_space<vmem>>, vector<1x16x8xbf16>
    %26 = vector.shape_cast %25 : vector<1x16x8xbf16> to vector<16x8xbf16>
    %cst_19 = arith.constant dense<0.000000e+00> : vector<128x8xf32>
    %27 = tpu.matmul %24, %26, %cst_19 {dimension_numbers = #tpu.dot_dimension_numbers<[1], [0], [0], [1], [0, 0, 1, 1], [], []>} : vector<128x16xbf16>, vector<16x8xbf16>, vector<128x8xf32> -> vector<128x8xf32>
    %c0_20 = arith.constant 0 : index
    %c0_21 = arith.constant 0 : index
    %c0_22 = arith.constant 0 : index
    %28 = vector.load %arg7[%c0_20, %c0_21, %c0_22] : memref<2x1x8xf32, #tpu.memory_space<vmem>>, vector<1x1x8xf32>
    %29 = vector.shape_cast %28 : vector<1x1x8xf32> to vector<1x8xf32>
    %30 = vector.broadcast %29 : vector<1x8xf32> to vector<128x8xf32>
    %31 = arith.addf %27, %30 : vector<128x8xf32>
    %32 = arith.addf %11, %31 : vector<128x8xf32>
    %cst_23 = arith.constant 0.000000e+00 : f32
    %33 = vector.broadcast %cst_23 : f32 to vector<128x8xf32>
    %34 = arith.maximumf %32, %33 : vector<128x8xf32>
    %35 = arith.truncf %34 : vector<128x8xf32> to vector<128x8xbf16>
    %c1 = arith.constant 1 : index
    %c0_24 = arith.constant 0 : index
    %c0_25 = arith.constant 0 : index
    %36 = vector.load %arg4[%c1, %c0_24, %c0_25] : memref<2x8x16xbf16, #tpu.memory_space<vmem>>, vector<1x8x16xbf16>
    %37 = vector.shape_cast %36 : vector<1x8x16xbf16> to vector<8x16xbf16>
    %cst_26 = arith.constant dense<0.000000e+00> : vector<128x16xf32>
    %38 = tpu.matmul %35, %37, %cst_26 {dimension_numbers = #tpu.dot_dimension_numbers<[1], [0], [0], [1], [0, 0, 1, 1], [], []>} : vector<128x8xbf16>, vector<8x16xbf16>, vector<128x16xf32> -> vector<128x16xf32>
    %c1_27 = arith.constant 1 : index
    %c0_28 = arith.constant 0 : index
    %c0_29 = arith.constant 0 : index
    %39 = vector.load %arg5[%c1_27, %c0_28, %c0_29] : memref<2x1x16xf32, #tpu.memory_space<vmem>>, vector<1x1x16xf32>
    %40 = vector.shape_cast %39 : vector<1x1x16xf32> to vector<1x16xf32>
    %41 = vector.broadcast %40 : vector<1x16xf32> to vector<128x16xf32>
    %42 = arith.addf %38, %41 : vector<128x16xf32>
    %cst_30 = arith.constant 0.000000e+00 : f32
    %43 = vector.broadcast %cst_30 : f32 to vector<128x16xf32>
    %44 = arith.maximumf %42, %43 : vector<128x16xf32>
    %45 = arith.truncf %44 : vector<128x16xf32> to vector<128x16xbf16>
    %c1_31 = arith.constant 1 : index
    %c0_32 = arith.constant 0 : index
    %c0_33 = arith.constant 0 : index
    %46 = vector.load %arg6[%c1_31, %c0_32, %c0_33] : memref<2x16x8xbf16, #tpu.memory_space<vmem>>, vector<1x16x8xbf16>
    %47 = vector.shape_cast %46 : vector<1x16x8xbf16> to vector<16x8xbf16>
    %cst_34 = arith.constant dense<0.000000e+00> : vector<128x8xf32>
    %48 = tpu.matmul %45, %47, %cst_34 {dimension_numbers = #tpu.dot_dimension_numbers<[1], [0], [0], [1], [0, 0, 1, 1], [], []>} : vector<128x16xbf16>, vector<16x8xbf16>, vector<128x8xf32> -> vector<128x8xf32>
    %c1_35 = arith.constant 1 : index
    %c0_36 = arith.constant 0 : index
    %c0_37 = arith.constant 0 : index
    %49 = vector.load %arg7[%c1_35, %c0_36, %c0_37] : memref<2x1x8xf32, #tpu.memory_space<vmem>>, vector<1x1x8xf32>
    %50 = vector.shape_cast %49 : vector<1x1x8xf32> to vector<1x8xf32>
    %51 = vector.broadcast %50 : vector<1x8xf32> to vector<128x8xf32>
    %52 = arith.addf %48, %51 : vector<128x8xf32>
    %53 = arith.addf %32, %52 : vector<128x8xf32>
    %cst_38 = arith.constant 0.000000e+00 : f32
    %54 = vector.broadcast %cst_38 : f32 to vector<128x8xf32>
    %55 = arith.maximumf %53, %54 : vector<128x8xf32>
    %c0_39 = arith.constant 0 : index
    %c0_40 = arith.constant 0 : index
    %56 = vector.load %arg8[%c0_39, %c0_40] : memref<8x8xf32, #tpu.memory_space<vmem>>, vector<8x8xf32>
    %cst_41 = arith.constant dense<0.000000e+00> : vector<128x8xf32>
    %57 = tpu.matmul %55, %56, %cst_41 {dimension_numbers = #tpu.dot_dimension_numbers<[1], [0], [0], [1], [0, 0, 1, 1], [], []>} : vector<128x8xf32>, vector<8x8xf32>, vector<128x8xf32> -> vector<128x8xf32>
    %c0_42 = arith.constant 0 : index
    %c0_43 = arith.constant 0 : index
    %58 = vector.load %arg9[%c0_42, %c0_43] : memref<1x8xf32, #tpu.memory_space<vmem>>, vector<1x8xf32>
    %59 = vector.broadcast %58 : vector<1x8xf32> to vector<128x8xf32>
    %60 = arith.addf %57, %59 : vector<128x8xf32>
    %c0_44 = arith.constant 0 : index
    %c0_45 = arith.constant 0 : index
    %61 = vector.load %arg10[%c0_44, %c0_45] : memref<8x8xf32, #tpu.memory_space<vmem>>, vector<8x8xf32>
    %cst_46 = arith.constant dense<0.000000e+00> : vector<128x8xf32>
    %62 = tpu.matmul %55, %61, %cst_46 {dimension_numbers = #tpu.dot_dimension_numbers<[1], [0], [0], [1], [0, 0, 1, 1], [], []>} : vector<128x8xf32>, vector<8x8xf32>, vector<128x8xf32> -> vector<128x8xf32>
    %c0_47 = arith.constant 0 : index
    %c0_48 = arith.constant 0 : index
    %63 = vector.load %arg11[%c0_47, %c0_48] : memref<1x8xf32, #tpu.memory_space<vmem>>, vector<1x8xf32>
    %64 = vector.broadcast %63 : vector<1x8xf32> to vector<128x8xf32>
    %65 = arith.addf %62, %64 : vector<128x8xf32>
    %cst_49 = arith.constant 5.000000e-01 : f32
    %66 = vector.broadcast %cst_49 : f32 to vector<128x8xf32>
    %67 = arith.mulf %66, %65 : vector<128x8xf32>
    %68 = math.exp %67 : vector<128x8xf32>
    %69 = arith.mulf %3, %68 : vector<128x8xf32>
    %70 = arith.addf %60, %69 : vector<128x8xf32>
    %cst_50 = arith.constant 1.000000e+00 : f32
    %71 = vector.broadcast %cst_50 : f32 to vector<128x8xf32>
    %72 = arith.addf %71, %65 : vector<128x8xf32>
    %73 = arith.mulf %60, %60 : vector<128x8xf32>
    %74 = arith.subf %72, %73 : vector<128x8xf32>
    %75 = arith.mulf %68, %68 : vector<128x8xf32>
    %76 = arith.subf %74, %75 : vector<128x8xf32>
    %77 = vector.shape_cast %76 : vector<128x8xf32> to vector<1x128x8xf32>
    %cst_51 = arith.constant dense<0.000000e+00> : vector<1xf32>
    %78 = vector.multi_reduction <add>, %77, %cst_51 [1, 2] : vector<1x128x8xf32> to vector<1xf32>
    %79 = vector.shape_cast %78 : vector<1xf32> to vector<1x1x1xf32>
    %80 = vector.extract %79[0, 0, 0] : f32 from vector<1x1x1xf32>
    %81 = vector.broadcast %80 : f32 to vector<1x1xf32>
    %82 = arith.truncf %70 : vector<128x8xf32> to vector<128x8xbf16>
    %c0_52 = arith.constant 0 : index
    %c0_53 = arith.constant 0 : index
    %83 = vector.load %arg12[%c0_52, %c0_53] : memref<8x96xbf16, #tpu.memory_space<vmem>>, vector<8x96xbf16>
    %cst_54 = arith.constant dense<0.000000e+00> : vector<128x96xf32>
    %84 = tpu.matmul %82, %83, %cst_54 {dimension_numbers = #tpu.dot_dimension_numbers<[1], [0], [0], [1], [0, 0, 1, 1], [], []>} : vector<128x8xbf16>, vector<8x96xbf16>, vector<128x96xf32> -> vector<128x96xf32>
    %c0_55 = arith.constant 0 : index
    %c0_56 = arith.constant 0 : index
    %85 = vector.load %arg13[%c0_55, %c0_56] : memref<1x96xf32, #tpu.memory_space<vmem>>, vector<1x96xf32>
    %86 = vector.broadcast %85 : vector<1x96xf32> to vector<128x96xf32>
    %87 = arith.addf %84, %86 : vector<128x96xf32>
    %c0_57 = arith.constant 0 : index
    %c0_58 = arith.constant 0 : index
    %88 = vector.load %arg14[%c0_57, %c0_58] : memref<32x96xbf16, #tpu.memory_space<vmem>>, vector<32x96xbf16>
    %c0_59 = arith.constant 0 : index
    %c0_60 = arith.constant 0 : index
    %89 = vector.load %arg15[%c0_59, %c0_60] : memref<1x96xf32, #tpu.memory_space<vmem>>, vector<1x96xf32>
    %cst_61 = arith.constant 0.000000e+00 : f32
    %90 = vector.broadcast %cst_61 : f32 to vector<8x32xf32>
    %91 = vector.extract_strided_slice %87 {offsets = [0, 0], sizes = [8, 96], strides = [1, 1]} : vector<128x96xf32> to vector<8x96xf32>
    %92 = vector.extract_strided_slice %91 {offsets = [0, 0], sizes = [8, 32], strides = [1, 1]} : vector<8x96xf32> to vector<8x32xf32>
    %93 = vector.extract_strided_slice %91 {offsets = [0, 32], sizes = [8, 32], strides = [1, 1]} : vector<8x96xf32> to vector<8x32xf32>
    %94 = vector.extract_strided_slice %91 {offsets = [0, 64], sizes = [8, 32], strides = [1, 1]} : vector<8x96xf32> to vector<8x32xf32>
    %95 = arith.truncf %90 : vector<8x32xf32> to vector<8x32xbf16>
    %cst_62 = arith.constant dense<0.000000e+00> : vector<8x96xf32>
    %96 = tpu.matmul %95, %88, %cst_62 {dimension_numbers = #tpu.dot_dimension_numbers<[1], [0], [0], [1], [0, 0, 1, 1], [], []>} : vector<8x32xbf16>, vector<32x96xbf16>, vector<8x96xf32> -> vector<8x96xf32>
    %97 = vector.broadcast %89 : vector<1x96xf32> to vector<8x96xf32>
    %98 = arith.addf %96, %97 : vector<8x96xf32>
    %99 = vector.extract_strided_slice %98 {offsets = [0, 0], sizes = [8, 32], strides = [1, 1]} : vector<8x96xf32> to vector<8x32xf32>
    %100 = arith.addf %92, %99 : vector<8x32xf32>
    %101 = arith.negf %100 : vector<8x32xf32>
    %102 = math.exp %101 : vector<8x32xf32>
    %cst_63 = arith.constant 1.000000e+00 : f32
    %103 = vector.broadcast %cst_63 : f32 to vector<8x32xf32>
    %104 = arith.addf %103, %102 : vector<8x32xf32>
    %105 = arith.divf %103, %104 : vector<8x32xf32>
    %106 = vector.extract_strided_slice %98 {offsets = [0, 32], sizes = [8, 32], strides = [1, 1]} : vector<8x96xf32> to vector<8x32xf32>
    %107 = arith.addf %93, %106 : vector<8x32xf32>
    %108 = arith.negf %107 : vector<8x32xf32>
    %109 = math.exp %108 : vector<8x32xf32>
    %cst_64 = arith.constant 1.000000e+00 : f32
    %110 = vector.broadcast %cst_64 : f32 to vector<8x32xf32>
    %111 = arith.addf %110, %109 : vector<8x32xf32>
    %112 = arith.divf %110, %111 : vector<8x32xf32>
    %113 = vector.extract_strided_slice %98 {offsets = [0, 64], sizes = [8, 32], strides = [1, 1]} : vector<8x96xf32> to vector<8x32xf32>
    %114 = arith.mulf %105, %113 : vector<8x32xf32>
    %115 = arith.addf %94, %114 : vector<8x32xf32>
    %116 = math.tanh %115 : vector<8x32xf32>
    %cst_65 = arith.constant 1.000000e+00 : f32
    %117 = vector.broadcast %cst_65 : f32 to vector<8x32xf32>
    %118 = arith.subf %117, %112 : vector<8x32xf32>
    %119 = arith.mulf %118, %116 : vector<8x32xf32>
    %120 = arith.mulf %112, %90 : vector<8x32xf32>
    %121 = arith.addf %119, %120 : vector<8x32xf32>
    %122 = vector.extract_strided_slice %87 {offsets = [8, 0], sizes = [8, 96], strides = [1, 1]} : vector<128x96xf32> to vector<8x96xf32>
    %123 = vector.extract_strided_slice %122 {offsets = [0, 0], sizes = [8, 32], strides = [1, 1]} : vector<8x96xf32> to vector<8x32xf32>
    %124 = vector.extract_strided_slice %122 {offsets = [0, 32], sizes = [8, 32], strides = [1, 1]} : vector<8x96xf32> to vector<8x32xf32>
    %125 = vector.extract_strided_slice %122 {offsets = [0, 64], sizes = [8, 32], strides = [1, 1]} : vector<8x96xf32> to vector<8x32xf32>
    %126 = arith.truncf %121 : vector<8x32xf32> to vector<8x32xbf16>
    %cst_66 = arith.constant dense<0.000000e+00> : vector<8x96xf32>
    %127 = tpu.matmul %126, %88, %cst_66 {dimension_numbers = #tpu.dot_dimension_numbers<[1], [0], [0], [1], [0, 0, 1, 1], [], []>} : vector<8x32xbf16>, vector<32x96xbf16>, vector<8x96xf32> -> vector<8x96xf32>
    %128 = vector.broadcast %89 : vector<1x96xf32> to vector<8x96xf32>
    %129 = arith.addf %127, %128 : vector<8x96xf32>
    %130 = vector.extract_strided_slice %129 {offsets = [0, 0], sizes = [8, 32], strides = [1, 1]} : vector<8x96xf32> to vector<8x32xf32>
    %131 = arith.addf %123, %130 : vector<8x32xf32>
    %132 = arith.negf %131 : vector<8x32xf32>
    %133 = math.exp %132 : vector<8x32xf32>
    %cst_67 = arith.constant 1.000000e+00 : f32
    %134 = vector.broadcast %cst_67 : f32 to vector<8x32xf32>
    %135 = arith.addf %134, %133 : vector<8x32xf32>
    %136 = arith.divf %134, %135 : vector<8x32xf32>
    %137 = vector.extract_strided_slice %129 {offsets = [0, 32], sizes = [8, 32], strides = [1, 1]} : vector<8x96xf32> to vector<8x32xf32>
    %138 = arith.addf %124, %137 : vector<8x32xf32>
    %139 = arith.negf %138 : vector<8x32xf32>
    %140 = math.exp %139 : vector<8x32xf32>
    %cst_68 = arith.constant 1.000000e+00 : f32
    %141 = vector.broadcast %cst_68 : f32 to vector<8x32xf32>
    %142 = arith.addf %141, %140 : vector<8x32xf32>
    %143 = arith.divf %141, %142 : vector<8x32xf32>
    %144 = vector.extract_strided_slice %129 {offsets = [0, 64], sizes = [8, 32], strides = [1, 1]} : vector<8x96xf32> to vector<8x32xf32>
    %145 = arith.mulf %136, %144 : vector<8x32xf32>
    %146 = arith.addf %125, %145 : vector<8x32xf32>
    %147 = math.tanh %146 : vector<8x32xf32>
    %cst_69 = arith.constant 1.000000e+00 : f32
    %148 = vector.broadcast %cst_69 : f32 to vector<8x32xf32>
    %149 = arith.subf %148, %143 : vector<8x32xf32>
    %150 = arith.mulf %149, %147 : vector<8x32xf32>
    %151 = arith.mulf %143, %121 : vector<8x32xf32>
    %152 = arith.addf %150, %151 : vector<8x32xf32>
    %153 = vector.extract_strided_slice %87 {offsets = [16, 0], sizes = [8, 96], strides = [1, 1]} : vector<128x96xf32> to vector<8x96xf32>
    %154 = vector.extract_strided_slice %153 {offsets = [0, 0], sizes = [8, 32], strides = [1, 1]} : vector<8x96xf32> to vector<8x32xf32>
    %155 = vector.extract_strided_slice %153 {offsets = [0, 32], sizes = [8, 32], strides = [1, 1]} : vector<8x96xf32> to vector<8x32xf32>
    %156 = vector.extract_strided_slice %153 {offsets = [0, 64], sizes = [8, 32], strides = [1, 1]} : vector<8x96xf32> to vector<8x32xf32>
    %157 = arith.truncf %152 : vector<8x32xf32> to vector<8x32xbf16>
    %cst_70 = arith.constant dense<0.000000e+00> : vector<8x96xf32>
    %158 = tpu.matmul %157, %88, %cst_70 {dimension_numbers = #tpu.dot_dimension_numbers<[1], [0], [0], [1], [0, 0, 1, 1], [], []>} : vector<8x32xbf16>, vector<32x96xbf16>, vector<8x96xf32> -> vector<8x96xf32>
    %159 = vector.broadcast %89 : vector<1x96xf32> to vector<8x96xf32>
    %160 = arith.addf %158, %159 : vector<8x96xf32>
    %161 = vector.extract_strided_slice %160 {offsets = [0, 0], sizes = [8, 32], strides = [1, 1]} : vector<8x96xf32> to vector<8x32xf32>
    %162 = arith.addf %154, %161 : vector<8x32xf32>
    %163 = arith.negf %162 : vector<8x32xf32>
    %164 = math.exp %163 : vector<8x32xf32>
    %cst_71 = arith.constant 1.000000e+00 : f32
    %165 = vector.broadcast %cst_71 : f32 to vector<8x32xf32>
    %166 = arith.addf %165, %164 : vector<8x32xf32>
    %167 = arith.divf %165, %166 : vector<8x32xf32>
    %168 = vector.extract_strided_slice %160 {offsets = [0, 32], sizes = [8, 32], strides = [1, 1]} : vector<8x96xf32> to vector<8x32xf32>
    %169 = arith.addf %155, %168 : vector<8x32xf32>
    %170 = arith.negf %169 : vector<8x32xf32>
    %171 = math.exp %170 : vector<8x32xf32>
    %cst_72 = arith.constant 1.000000e+00 : f32
    %172 = vector.broadcast %cst_72 : f32 to vector<8x32xf32>
    %173 = arith.addf %172, %171 : vector<8x32xf32>
    %174 = arith.divf %172, %173 : vector<8x32xf32>
    %175 = vector.extract_strided_slice %160 {offsets = [0, 64], sizes = [8, 32], strides = [1, 1]} : vector<8x96xf32> to vector<8x32xf32>
    %176 = arith.mulf %167, %175 : vector<8x32xf32>
    %177 = arith.addf %156, %176 : vector<8x32xf32>
    %178 = math.tanh %177 : vector<8x32xf32>
    %cst_73 = arith.constant 1.000000e+00 : f32
    %179 = vector.broadcast %cst_73 : f32 to vector<8x32xf32>
    %180 = arith.subf %179, %174 : vector<8x32xf32>
    %181 = arith.mulf %180, %178 : vector<8x32xf32>
    %182 = arith.mulf %174, %152 : vector<8x32xf32>
    %183 = arith.addf %181, %182 : vector<8x32xf32>
    %184 = vector.extract_strided_slice %87 {offsets = [24, 0], sizes = [8, 96], strides = [1, 1]} : vector<128x96xf32> to vector<8x96xf32>
    %185 = vector.extract_strided_slice %184 {offsets = [0, 0], sizes = [8, 32], strides = [1, 1]} : vector<8x96xf32> to vector<8x32xf32>
    %186 = vector.extract_strided_slice %184 {offsets = [0, 32], sizes = [8, 32], strides = [1, 1]} : vector<8x96xf32> to vector<8x32xf32>
    %187 = vector.extract_strided_slice %184 {offsets = [0, 64], sizes = [8, 32], strides = [1, 1]} : vector<8x96xf32> to vector<8x32xf32>
    %188 = arith.truncf %183 : vector<8x32xf32> to vector<8x32xbf16>
    %cst_74 = arith.constant dense<0.000000e+00> : vector<8x96xf32>
    %189 = tpu.matmul %188, %88, %cst_74 {dimension_numbers = #tpu.dot_dimension_numbers<[1], [0], [0], [1], [0, 0, 1, 1], [], []>} : vector<8x32xbf16>, vector<32x96xbf16>, vector<8x96xf32> -> vector<8x96xf32>
    %190 = vector.broadcast %89 : vector<1x96xf32> to vector<8x96xf32>
    %191 = arith.addf %189, %190 : vector<8x96xf32>
    %192 = vector.extract_strided_slice %191 {offsets = [0, 0], sizes = [8, 32], strides = [1, 1]} : vector<8x96xf32> to vector<8x32xf32>
    %193 = arith.addf %185, %192 : vector<8x32xf32>
    %194 = arith.negf %193 : vector<8x32xf32>
    %195 = math.exp %194 : vector<8x32xf32>
    %cst_75 = arith.constant 1.000000e+00 : f32
    %196 = vector.broadcast %cst_75 : f32 to vector<8x32xf32>
    %197 = arith.addf %196, %195 : vector<8x32xf32>
    %198 = arith.divf %196, %197 : vector<8x32xf32>
    %199 = vector.extract_strided_slice %191 {offsets = [0, 32], sizes = [8, 32], strides = [1, 1]} : vector<8x96xf32> to vector<8x32xf32>
    %200 = arith.addf %186, %199 : vector<8x32xf32>
    %201 = arith.negf %200 : vector<8x32xf32>
    %202 = math.exp %201 : vector<8x32xf32>
    %cst_76 = arith.constant 1.000000e+00 : f32
    %203 = vector.broadcast %cst_76 : f32 to vector<8x32xf32>
    %204 = arith.addf %203, %202 : vector<8x32xf32>
    %205 = arith.divf %203, %204 : vector<8x32xf32>
    %206 = vector.extract_strided_slice %191 {offsets = [0, 64], sizes = [8, 32], strides = [1, 1]} : vector<8x96xf32> to vector<8x32xf32>
    %207 = arith.mulf %198, %206 : vector<8x32xf32>
    %208 = arith.addf %187, %207 : vector<8x32xf32>
    %209 = math.tanh %208 : vector<8x32xf32>
    %cst_77 = arith.constant 1.000000e+00 : f32
    %210 = vector.broadcast %cst_77 : f32 to vector<8x32xf32>
    %211 = arith.subf %210, %205 : vector<8x32xf32>
    %212 = arith.mulf %211, %209 : vector<8x32xf32>
    %213 = arith.mulf %205, %183 : vector<8x32xf32>
    %214 = arith.addf %212, %213 : vector<8x32xf32>
    %215 = vector.extract_strided_slice %87 {offsets = [32, 0], sizes = [8, 96], strides = [1, 1]} : vector<128x96xf32> to vector<8x96xf32>
    %216 = vector.extract_strided_slice %215 {offsets = [0, 0], sizes = [8, 32], strides = [1, 1]} : vector<8x96xf32> to vector<8x32xf32>
    %217 = vector.extract_strided_slice %215 {offsets = [0, 32], sizes = [8, 32], strides = [1, 1]} : vector<8x96xf32> to vector<8x32xf32>
    %218 = vector.extract_strided_slice %215 {offsets = [0, 64], sizes = [8, 32], strides = [1, 1]} : vector<8x96xf32> to vector<8x32xf32>
    %219 = arith.truncf %214 : vector<8x32xf32> to vector<8x32xbf16>
    %cst_78 = arith.constant dense<0.000000e+00> : vector<8x96xf32>
    %220 = tpu.matmul %219, %88, %cst_78 {dimension_numbers = #tpu.dot_dimension_numbers<[1], [0], [0], [1], [0, 0, 1, 1], [], []>} : vector<8x32xbf16>, vector<32x96xbf16>, vector<8x96xf32> -> vector<8x96xf32>
    %221 = vector.broadcast %89 : vector<1x96xf32> to vector<8x96xf32>
    %222 = arith.addf %220, %221 : vector<8x96xf32>
    %223 = vector.extract_strided_slice %222 {offsets = [0, 0], sizes = [8, 32], strides = [1, 1]} : vector<8x96xf32> to vector<8x32xf32>
    %224 = arith.addf %216, %223 : vector<8x32xf32>
    %225 = arith.negf %224 : vector<8x32xf32>
    %226 = math.exp %225 : vector<8x32xf32>
    %cst_79 = arith.constant 1.000000e+00 : f32
    %227 = vector.broadcast %cst_79 : f32 to vector<8x32xf32>
    %228 = arith.addf %227, %226 : vector<8x32xf32>
    %229 = arith.divf %227, %228 : vector<8x32xf32>
    %230 = vector.extract_strided_slice %222 {offsets = [0, 32], sizes = [8, 32], strides = [1, 1]} : vector<8x96xf32> to vector<8x32xf32>
    %231 = arith.addf %217, %230 : vector<8x32xf32>
    %232 = arith.negf %231 : vector<8x32xf32>
    %233 = math.exp %232 : vector<8x32xf32>
    %cst_80 = arith.constant 1.000000e+00 : f32
    %234 = vector.broadcast %cst_80 : f32 to vector<8x32xf32>
    %235 = arith.addf %234, %233 : vector<8x32xf32>
    %236 = arith.divf %234, %235 : vector<8x32xf32>
    %237 = vector.extract_strided_slice %222 {offsets = [0, 64], sizes = [8, 32], strides = [1, 1]} : vector<8x96xf32> to vector<8x32xf32>
    %238 = arith.mulf %229, %237 : vector<8x32xf32>
    %239 = arith.addf %218, %238 : vector<8x32xf32>
    %240 = math.tanh %239 : vector<8x32xf32>
    %cst_81 = arith.constant 1.000000e+00 : f32
    %241 = vector.broadcast %cst_81 : f32 to vector<8x32xf32>
    %242 = arith.subf %241, %236 : vector<8x32xf32>
    %243 = arith.mulf %242, %240 : vector<8x32xf32>
    %244 = arith.mulf %236, %214 : vector<8x32xf32>
    %245 = arith.addf %243, %244 : vector<8x32xf32>
    %246 = vector.extract_strided_slice %87 {offsets = [40, 0], sizes = [8, 96], strides = [1, 1]} : vector<128x96xf32> to vector<8x96xf32>
    %247 = vector.extract_strided_slice %246 {offsets = [0, 0], sizes = [8, 32], strides = [1, 1]} : vector<8x96xf32> to vector<8x32xf32>
    %248 = vector.extract_strided_slice %246 {offsets = [0, 32], sizes = [8, 32], strides = [1, 1]} : vector<8x96xf32> to vector<8x32xf32>
    %249 = vector.extract_strided_slice %246 {offsets = [0, 64], sizes = [8, 32], strides = [1, 1]} : vector<8x96xf32> to vector<8x32xf32>
    %250 = arith.truncf %245 : vector<8x32xf32> to vector<8x32xbf16>
    %cst_82 = arith.constant dense<0.000000e+00> : vector<8x96xf32>
    %251 = tpu.matmul %250, %88, %cst_82 {dimension_numbers = #tpu.dot_dimension_numbers<[1], [0], [0], [1], [0, 0, 1, 1], [], []>} : vector<8x32xbf16>, vector<32x96xbf16>, vector<8x96xf32> -> vector<8x96xf32>
    %252 = vector.broadcast %89 : vector<1x96xf32> to vector<8x96xf32>
    %253 = arith.addf %251, %252 : vector<8x96xf32>
    %254 = vector.extract_strided_slice %253 {offsets = [0, 0], sizes = [8, 32], strides = [1, 1]} : vector<8x96xf32> to vector<8x32xf32>
    %255 = arith.addf %247, %254 : vector<8x32xf32>
    %256 = arith.negf %255 : vector<8x32xf32>
    %257 = math.exp %256 : vector<8x32xf32>
    %cst_83 = arith.constant 1.000000e+00 : f32
    %258 = vector.broadcast %cst_83 : f32 to vector<8x32xf32>
    %259 = arith.addf %258, %257 : vector<8x32xf32>
    %260 = arith.divf %258, %259 : vector<8x32xf32>
    %261 = vector.extract_strided_slice %253 {offsets = [0, 32], sizes = [8, 32], strides = [1, 1]} : vector<8x96xf32> to vector<8x32xf32>
    %262 = arith.addf %248, %261 : vector<8x32xf32>
    %263 = arith.negf %262 : vector<8x32xf32>
    %264 = math.exp %263 : vector<8x32xf32>
    %cst_84 = arith.constant 1.000000e+00 : f32
    %265 = vector.broadcast %cst_84 : f32 to vector<8x32xf32>
    %266 = arith.addf %265, %264 : vector<8x32xf32>
    %267 = arith.divf %265, %266 : vector<8x32xf32>
    %268 = vector.extract_strided_slice %253 {offsets = [0, 64], sizes = [8, 32], strides = [1, 1]} : vector<8x96xf32> to vector<8x32xf32>
    %269 = arith.mulf %260, %268 : vector<8x32xf32>
    %270 = arith.addf %249, %269 : vector<8x32xf32>
    %271 = math.tanh %270 : vector<8x32xf32>
    %cst_85 = arith.constant 1.000000e+00 : f32
    %272 = vector.broadcast %cst_85 : f32 to vector<8x32xf32>
    %273 = arith.subf %272, %267 : vector<8x32xf32>
    %274 = arith.mulf %273, %271 : vector<8x32xf32>
    %275 = arith.mulf %267, %245 : vector<8x32xf32>
    %276 = arith.addf %274, %275 : vector<8x32xf32>
    %277 = vector.extract_strided_slice %87 {offsets = [48, 0], sizes = [8, 96], strides = [1, 1]} : vector<128x96xf32> to vector<8x96xf32>
    %278 = vector.extract_strided_slice %277 {offsets = [0, 0], sizes = [8, 32], strides = [1, 1]} : vector<8x96xf32> to vector<8x32xf32>
    %279 = vector.extract_strided_slice %277 {offsets = [0, 32], sizes = [8, 32], strides = [1, 1]} : vector<8x96xf32> to vector<8x32xf32>
    %280 = vector.extract_strided_slice %277 {offsets = [0, 64], sizes = [8, 32], strides = [1, 1]} : vector<8x96xf32> to vector<8x32xf32>
    %281 = arith.truncf %276 : vector<8x32xf32> to vector<8x32xbf16>
    %cst_86 = arith.constant dense<0.000000e+00> : vector<8x96xf32>
    %282 = tpu.matmul %281, %88, %cst_86 {dimension_numbers = #tpu.dot_dimension_numbers<[1], [0], [0], [1], [0, 0, 1, 1], [], []>} : vector<8x32xbf16>, vector<32x96xbf16>, vector<8x96xf32> -> vector<8x96xf32>
    %283 = vector.broadcast %89 : vector<1x96xf32> to vector<8x96xf32>
    %284 = arith.addf %282, %283 : vector<8x96xf32>
    %285 = vector.extract_strided_slice %284 {offsets = [0, 0], sizes = [8, 32], strides = [1, 1]} : vector<8x96xf32> to vector<8x32xf32>
    %286 = arith.addf %278, %285 : vector<8x32xf32>
    %287 = arith.negf %286 : vector<8x32xf32>
    %288 = math.exp %287 : vector<8x32xf32>
    %cst_87 = arith.constant 1.000000e+00 : f32
    %289 = vector.broadcast %cst_87 : f32 to vector<8x32xf32>
    %290 = arith.addf %289, %288 : vector<8x32xf32>
    %291 = arith.divf %289, %290 : vector<8x32xf32>
    %292 = vector.extract_strided_slice %284 {offsets = [0, 32], sizes = [8, 32], strides = [1, 1]} : vector<8x96xf32> to vector<8x32xf32>
    %293 = arith.addf %279, %292 : vector<8x32xf32>
    %294 = arith.negf %293 : vector<8x32xf32>
    %295 = math.exp %294 : vector<8x32xf32>
    %cst_88 = arith.constant 1.000000e+00 : f32
    %296 = vector.broadcast %cst_88 : f32 to vector<8x32xf32>
    %297 = arith.addf %296, %295 : vector<8x32xf32>
    %298 = arith.divf %296, %297 : vector<8x32xf32>
    %299 = vector.extract_strided_slice %284 {offsets = [0, 64], sizes = [8, 32], strides = [1, 1]} : vector<8x96xf32> to vector<8x32xf32>
    %300 = arith.mulf %291, %299 : vector<8x32xf32>
    %301 = arith.addf %280, %300 : vector<8x32xf32>
    %302 = math.tanh %301 : vector<8x32xf32>
    %cst_89 = arith.constant 1.000000e+00 : f32
    %303 = vector.broadcast %cst_89 : f32 to vector<8x32xf32>
    %304 = arith.subf %303, %298 : vector<8x32xf32>
    %305 = arith.mulf %304, %302 : vector<8x32xf32>
    %306 = arith.mulf %298, %276 : vector<8x32xf32>
    %307 = arith.addf %305, %306 : vector<8x32xf32>
    %308 = vector.extract_strided_slice %87 {offsets = [56, 0], sizes = [8, 96], strides = [1, 1]} : vector<128x96xf32> to vector<8x96xf32>
    %309 = vector.extract_strided_slice %308 {offsets = [0, 0], sizes = [8, 32], strides = [1, 1]} : vector<8x96xf32> to vector<8x32xf32>
    %310 = vector.extract_strided_slice %308 {offsets = [0, 32], sizes = [8, 32], strides = [1, 1]} : vector<8x96xf32> to vector<8x32xf32>
    %311 = vector.extract_strided_slice %308 {offsets = [0, 64], sizes = [8, 32], strides = [1, 1]} : vector<8x96xf32> to vector<8x32xf32>
    %312 = arith.truncf %307 : vector<8x32xf32> to vector<8x32xbf16>
    %cst_90 = arith.constant dense<0.000000e+00> : vector<8x96xf32>
    %313 = tpu.matmul %312, %88, %cst_90 {dimension_numbers = #tpu.dot_dimension_numbers<[1], [0], [0], [1], [0, 0, 1, 1], [], []>} : vector<8x32xbf16>, vector<32x96xbf16>, vector<8x96xf32> -> vector<8x96xf32>
    %314 = vector.broadcast %89 : vector<1x96xf32> to vector<8x96xf32>
    %315 = arith.addf %313, %314 : vector<8x96xf32>
    %316 = vector.extract_strided_slice %315 {offsets = [0, 0], sizes = [8, 32], strides = [1, 1]} : vector<8x96xf32> to vector<8x32xf32>
    %317 = arith.addf %309, %316 : vector<8x32xf32>
    %318 = arith.negf %317 : vector<8x32xf32>
    %319 = math.exp %318 : vector<8x32xf32>
    %cst_91 = arith.constant 1.000000e+00 : f32
    %320 = vector.broadcast %cst_91 : f32 to vector<8x32xf32>
    %321 = arith.addf %320, %319 : vector<8x32xf32>
    %322 = arith.divf %320, %321 : vector<8x32xf32>
    %323 = vector.extract_strided_slice %315 {offsets = [0, 32], sizes = [8, 32], strides = [1, 1]} : vector<8x96xf32> to vector<8x32xf32>
    %324 = arith.addf %310, %323 : vector<8x32xf32>
    %325 = arith.negf %324 : vector<8x32xf32>
    %326 = math.exp %325 : vector<8x32xf32>
    %cst_92 = arith.constant 1.000000e+00 : f32
    %327 = vector.broadcast %cst_92 : f32 to vector<8x32xf32>
    %328 = arith.addf %327, %326 : vector<8x32xf32>
    %329 = arith.divf %327, %328 : vector<8x32xf32>
    %330 = vector.extract_strided_slice %315 {offsets = [0, 64], sizes = [8, 32], strides = [1, 1]} : vector<8x96xf32> to vector<8x32xf32>
    %331 = arith.mulf %322, %330 : vector<8x32xf32>
    %332 = arith.addf %311, %331 : vector<8x32xf32>
    %333 = math.tanh %332 : vector<8x32xf32>
    %cst_93 = arith.constant 1.000000e+00 : f32
    %334 = vector.broadcast %cst_93 : f32 to vector<8x32xf32>
    %335 = arith.subf %334, %329 : vector<8x32xf32>
    %336 = arith.mulf %335, %333 : vector<8x32xf32>
    %337 = arith.mulf %329, %307 : vector<8x32xf32>
    %338 = arith.addf %336, %337 : vector<8x32xf32>
    %339 = vector.extract_strided_slice %87 {offsets = [64, 0], sizes = [8, 96], strides = [1, 1]} : vector<128x96xf32> to vector<8x96xf32>
    %340 = vector.extract_strided_slice %339 {offsets = [0, 0], sizes = [8, 32], strides = [1, 1]} : vector<8x96xf32> to vector<8x32xf32>
    %341 = vector.extract_strided_slice %339 {offsets = [0, 32], sizes = [8, 32], strides = [1, 1]} : vector<8x96xf32> to vector<8x32xf32>
    %342 = vector.extract_strided_slice %339 {offsets = [0, 64], sizes = [8, 32], strides = [1, 1]} : vector<8x96xf32> to vector<8x32xf32>
    %343 = arith.truncf %338 : vector<8x32xf32> to vector<8x32xbf16>
    %cst_94 = arith.constant dense<0.000000e+00> : vector<8x96xf32>
    %344 = tpu.matmul %343, %88, %cst_94 {dimension_numbers = #tpu.dot_dimension_numbers<[1], [0], [0], [1], [0, 0, 1, 1], [], []>} : vector<8x32xbf16>, vector<32x96xbf16>, vector<8x96xf32> -> vector<8x96xf32>
    %345 = vector.broadcast %89 : vector<1x96xf32> to vector<8x96xf32>
    %346 = arith.addf %344, %345 : vector<8x96xf32>
    %347 = vector.extract_strided_slice %346 {offsets = [0, 0], sizes = [8, 32], strides = [1, 1]} : vector<8x96xf32> to vector<8x32xf32>
    %348 = arith.addf %340, %347 : vector<8x32xf32>
    %349 = arith.negf %348 : vector<8x32xf32>
    %350 = math.exp %349 : vector<8x32xf32>
    %cst_95 = arith.constant 1.000000e+00 : f32
    %351 = vector.broadcast %cst_95 : f32 to vector<8x32xf32>
    %352 = arith.addf %351, %350 : vector<8x32xf32>
    %353 = arith.divf %351, %352 : vector<8x32xf32>
    %354 = vector.extract_strided_slice %346 {offsets = [0, 32], sizes = [8, 32], strides = [1, 1]} : vector<8x96xf32> to vector<8x32xf32>
    %355 = arith.addf %341, %354 : vector<8x32xf32>
    %356 = arith.negf %355 : vector<8x32xf32>
    %357 = math.exp %356 : vector<8x32xf32>
    %cst_96 = arith.constant 1.000000e+00 : f32
    %358 = vector.broadcast %cst_96 : f32 to vector<8x32xf32>
    %359 = arith.addf %358, %357 : vector<8x32xf32>
    %360 = arith.divf %358, %359 : vector<8x32xf32>
    %361 = vector.extract_strided_slice %346 {offsets = [0, 64], sizes = [8, 32], strides = [1, 1]} : vector<8x96xf32> to vector<8x32xf32>
    %362 = arith.mulf %353, %361 : vector<8x32xf32>
    %363 = arith.addf %342, %362 : vector<8x32xf32>
    %364 = math.tanh %363 : vector<8x32xf32>
    %cst_97 = arith.constant 1.000000e+00 : f32
    %365 = vector.broadcast %cst_97 : f32 to vector<8x32xf32>
    %366 = arith.subf %365, %360 : vector<8x32xf32>
    %367 = arith.mulf %366, %364 : vector<8x32xf32>
    %368 = arith.mulf %360, %338 : vector<8x32xf32>
    %369 = arith.addf %367, %368 : vector<8x32xf32>
    %370 = vector.extract_strided_slice %87 {offsets = [72, 0], sizes = [8, 96], strides = [1, 1]} : vector<128x96xf32> to vector<8x96xf32>
    %371 = vector.extract_strided_slice %370 {offsets = [0, 0], sizes = [8, 32], strides = [1, 1]} : vector<8x96xf32> to vector<8x32xf32>
    %372 = vector.extract_strided_slice %370 {offsets = [0, 32], sizes = [8, 32], strides = [1, 1]} : vector<8x96xf32> to vector<8x32xf32>
    %373 = vector.extract_strided_slice %370 {offsets = [0, 64], sizes = [8, 32], strides = [1, 1]} : vector<8x96xf32> to vector<8x32xf32>
    %374 = arith.truncf %369 : vector<8x32xf32> to vector<8x32xbf16>
    %cst_98 = arith.constant dense<0.000000e+00> : vector<8x96xf32>
    %375 = tpu.matmul %374, %88, %cst_98 {dimension_numbers = #tpu.dot_dimension_numbers<[1], [0], [0], [1], [0, 0, 1, 1], [], []>} : vector<8x32xbf16>, vector<32x96xbf16>, vector<8x96xf32> -> vector<8x96xf32>
    %376 = vector.broadcast %89 : vector<1x96xf32> to vector<8x96xf32>
    %377 = arith.addf %375, %376 : vector<8x96xf32>
    %378 = vector.extract_strided_slice %377 {offsets = [0, 0], sizes = [8, 32], strides = [1, 1]} : vector<8x96xf32> to vector<8x32xf32>
    %379 = arith.addf %371, %378 : vector<8x32xf32>
    %380 = arith.negf %379 : vector<8x32xf32>
    %381 = math.exp %380 : vector<8x32xf32>
    %cst_99 = arith.constant 1.000000e+00 : f32
    %382 = vector.broadcast %cst_99 : f32 to vector<8x32xf32>
    %383 = arith.addf %382, %381 : vector<8x32xf32>
    %384 = arith.divf %382, %383 : vector<8x32xf32>
    %385 = vector.extract_strided_slice %377 {offsets = [0, 32], sizes = [8, 32], strides = [1, 1]} : vector<8x96xf32> to vector<8x32xf32>
    %386 = arith.addf %372, %385 : vector<8x32xf32>
    %387 = arith.negf %386 : vector<8x32xf32>
    %388 = math.exp %387 : vector<8x32xf32>
    %cst_100 = arith.constant 1.000000e+00 : f32
    %389 = vector.broadcast %cst_100 : f32 to vector<8x32xf32>
    %390 = arith.addf %389, %388 : vector<8x32xf32>
    %391 = arith.divf %389, %390 : vector<8x32xf32>
    %392 = vector.extract_strided_slice %377 {offsets = [0, 64], sizes = [8, 32], strides = [1, 1]} : vector<8x96xf32> to vector<8x32xf32>
    %393 = arith.mulf %384, %392 : vector<8x32xf32>
    %394 = arith.addf %373, %393 : vector<8x32xf32>
    %395 = math.tanh %394 : vector<8x32xf32>
    %cst_101 = arith.constant 1.000000e+00 : f32
    %396 = vector.broadcast %cst_101 : f32 to vector<8x32xf32>
    %397 = arith.subf %396, %391 : vector<8x32xf32>
    %398 = arith.mulf %397, %395 : vector<8x32xf32>
    %399 = arith.mulf %391, %369 : vector<8x32xf32>
    %400 = arith.addf %398, %399 : vector<8x32xf32>
    %401 = vector.extract_strided_slice %87 {offsets = [80, 0], sizes = [8, 96], strides = [1, 1]} : vector<128x96xf32> to vector<8x96xf32>
    %402 = vector.extract_strided_slice %401 {offsets = [0, 0], sizes = [8, 32], strides = [1, 1]} : vector<8x96xf32> to vector<8x32xf32>
    %403 = vector.extract_strided_slice %401 {offsets = [0, 32], sizes = [8, 32], strides = [1, 1]} : vector<8x96xf32> to vector<8x32xf32>
    %404 = vector.extract_strided_slice %401 {offsets = [0, 64], sizes = [8, 32], strides = [1, 1]} : vector<8x96xf32> to vector<8x32xf32>
    %405 = arith.truncf %400 : vector<8x32xf32> to vector<8x32xbf16>
    %cst_102 = arith.constant dense<0.000000e+00> : vector<8x96xf32>
    %406 = tpu.matmul %405, %88, %cst_102 {dimension_numbers = #tpu.dot_dimension_numbers<[1], [0], [0], [1], [0, 0, 1, 1], [], []>} : vector<8x32xbf16>, vector<32x96xbf16>, vector<8x96xf32> -> vector<8x96xf32>
    %407 = vector.broadcast %89 : vector<1x96xf32> to vector<8x96xf32>
    %408 = arith.addf %406, %407 : vector<8x96xf32>
    %409 = vector.extract_strided_slice %408 {offsets = [0, 0], sizes = [8, 32], strides = [1, 1]} : vector<8x96xf32> to vector<8x32xf32>
    %410 = arith.addf %402, %409 : vector<8x32xf32>
    %411 = arith.negf %410 : vector<8x32xf32>
    %412 = math.exp %411 : vector<8x32xf32>
    %cst_103 = arith.constant 1.000000e+00 : f32
    %413 = vector.broadcast %cst_103 : f32 to vector<8x32xf32>
    %414 = arith.addf %413, %412 : vector<8x32xf32>
    %415 = arith.divf %413, %414 : vector<8x32xf32>
    %416 = vector.extract_strided_slice %408 {offsets = [0, 32], sizes = [8, 32], strides = [1, 1]} : vector<8x96xf32> to vector<8x32xf32>
    %417 = arith.addf %403, %416 : vector<8x32xf32>
    %418 = arith.negf %417 : vector<8x32xf32>
    %419 = math.exp %418 : vector<8x32xf32>
    %cst_104 = arith.constant 1.000000e+00 : f32
    %420 = vector.broadcast %cst_104 : f32 to vector<8x32xf32>
    %421 = arith.addf %420, %419 : vector<8x32xf32>
    %422 = arith.divf %420, %421 : vector<8x32xf32>
    %423 = vector.extract_strided_slice %408 {offsets = [0, 64], sizes = [8, 32], strides = [1, 1]} : vector<8x96xf32> to vector<8x32xf32>
    %424 = arith.mulf %415, %423 : vector<8x32xf32>
    %425 = arith.addf %404, %424 : vector<8x32xf32>
    %426 = math.tanh %425 : vector<8x32xf32>
    %cst_105 = arith.constant 1.000000e+00 : f32
    %427 = vector.broadcast %cst_105 : f32 to vector<8x32xf32>
    %428 = arith.subf %427, %422 : vector<8x32xf32>
    %429 = arith.mulf %428, %426 : vector<8x32xf32>
    %430 = arith.mulf %422, %400 : vector<8x32xf32>
    %431 = arith.addf %429, %430 : vector<8x32xf32>
    %432 = vector.extract_strided_slice %87 {offsets = [88, 0], sizes = [8, 96], strides = [1, 1]} : vector<128x96xf32> to vector<8x96xf32>
    %433 = vector.extract_strided_slice %432 {offsets = [0, 0], sizes = [8, 32], strides = [1, 1]} : vector<8x96xf32> to vector<8x32xf32>
    %434 = vector.extract_strided_slice %432 {offsets = [0, 32], sizes = [8, 32], strides = [1, 1]} : vector<8x96xf32> to vector<8x32xf32>
    %435 = vector.extract_strided_slice %432 {offsets = [0, 64], sizes = [8, 32], strides = [1, 1]} : vector<8x96xf32> to vector<8x32xf32>
    %436 = arith.truncf %431 : vector<8x32xf32> to vector<8x32xbf16>
    %cst_106 = arith.constant dense<0.000000e+00> : vector<8x96xf32>
    %437 = tpu.matmul %436, %88, %cst_106 {dimension_numbers = #tpu.dot_dimension_numbers<[1], [0], [0], [1], [0, 0, 1, 1], [], []>} : vector<8x32xbf16>, vector<32x96xbf16>, vector<8x96xf32> -> vector<8x96xf32>
    %438 = vector.broadcast %89 : vector<1x96xf32> to vector<8x96xf32>
    %439 = arith.addf %437, %438 : vector<8x96xf32>
    %440 = vector.extract_strided_slice %439 {offsets = [0, 0], sizes = [8, 32], strides = [1, 1]} : vector<8x96xf32> to vector<8x32xf32>
    %441 = arith.addf %433, %440 : vector<8x32xf32>
    %442 = arith.negf %441 : vector<8x32xf32>
    %443 = math.exp %442 : vector<8x32xf32>
    %cst_107 = arith.constant 1.000000e+00 : f32
    %444 = vector.broadcast %cst_107 : f32 to vector<8x32xf32>
    %445 = arith.addf %444, %443 : vector<8x32xf32>
    %446 = arith.divf %444, %445 : vector<8x32xf32>
    %447 = vector.extract_strided_slice %439 {offsets = [0, 32], sizes = [8, 32], strides = [1, 1]} : vector<8x96xf32> to vector<8x32xf32>
    %448 = arith.addf %434, %447 : vector<8x32xf32>
    %449 = arith.negf %448 : vector<8x32xf32>
    %450 = math.exp %449 : vector<8x32xf32>
    %cst_108 = arith.constant 1.000000e+00 : f32
    %451 = vector.broadcast %cst_108 : f32 to vector<8x32xf32>
    %452 = arith.addf %451, %450 : vector<8x32xf32>
    %453 = arith.divf %451, %452 : vector<8x32xf32>
    %454 = vector.extract_strided_slice %439 {offsets = [0, 64], sizes = [8, 32], strides = [1, 1]} : vector<8x96xf32> to vector<8x32xf32>
    %455 = arith.mulf %446, %454 : vector<8x32xf32>
    %456 = arith.addf %435, %455 : vector<8x32xf32>
    %457 = math.tanh %456 : vector<8x32xf32>
    %cst_109 = arith.constant 1.000000e+00 : f32
    %458 = vector.broadcast %cst_109 : f32 to vector<8x32xf32>
    %459 = arith.subf %458, %453 : vector<8x32xf32>
    %460 = arith.mulf %459, %457 : vector<8x32xf32>
    %461 = arith.mulf %453, %431 : vector<8x32xf32>
    %462 = arith.addf %460, %461 : vector<8x32xf32>
    %463 = vector.extract_strided_slice %87 {offsets = [96, 0], sizes = [8, 96], strides = [1, 1]} : vector<128x96xf32> to vector<8x96xf32>
    %464 = vector.extract_strided_slice %463 {offsets = [0, 0], sizes = [8, 32], strides = [1, 1]} : vector<8x96xf32> to vector<8x32xf32>
    %465 = vector.extract_strided_slice %463 {offsets = [0, 32], sizes = [8, 32], strides = [1, 1]} : vector<8x96xf32> to vector<8x32xf32>
    %466 = vector.extract_strided_slice %463 {offsets = [0, 64], sizes = [8, 32], strides = [1, 1]} : vector<8x96xf32> to vector<8x32xf32>
    %467 = arith.truncf %462 : vector<8x32xf32> to vector<8x32xbf16>
    %cst_110 = arith.constant dense<0.000000e+00> : vector<8x96xf32>
    %468 = tpu.matmul %467, %88, %cst_110 {dimension_numbers = #tpu.dot_dimension_numbers<[1], [0], [0], [1], [0, 0, 1, 1], [], []>} : vector<8x32xbf16>, vector<32x96xbf16>, vector<8x96xf32> -> vector<8x96xf32>
    %469 = vector.broadcast %89 : vector<1x96xf32> to vector<8x96xf32>
    %470 = arith.addf %468, %469 : vector<8x96xf32>
    %471 = vector.extract_strided_slice %470 {offsets = [0, 0], sizes = [8, 32], strides = [1, 1]} : vector<8x96xf32> to vector<8x32xf32>
    %472 = arith.addf %464, %471 : vector<8x32xf32>
    %473 = arith.negf %472 : vector<8x32xf32>
    %474 = math.exp %473 : vector<8x32xf32>
    %cst_111 = arith.constant 1.000000e+00 : f32
    %475 = vector.broadcast %cst_111 : f32 to vector<8x32xf32>
    %476 = arith.addf %475, %474 : vector<8x32xf32>
    %477 = arith.divf %475, %476 : vector<8x32xf32>
    %478 = vector.extract_strided_slice %470 {offsets = [0, 32], sizes = [8, 32], strides = [1, 1]} : vector<8x96xf32> to vector<8x32xf32>
    %479 = arith.addf %465, %478 : vector<8x32xf32>
    %480 = arith.negf %479 : vector<8x32xf32>
    %481 = math.exp %480 : vector<8x32xf32>
    %cst_112 = arith.constant 1.000000e+00 : f32
    %482 = vector.broadcast %cst_112 : f32 to vector<8x32xf32>
    %483 = arith.addf %482, %481 : vector<8x32xf32>
    %484 = arith.divf %482, %483 : vector<8x32xf32>
    %485 = vector.extract_strided_slice %470 {offsets = [0, 64], sizes = [8, 32], strides = [1, 1]} : vector<8x96xf32> to vector<8x32xf32>
    %486 = arith.mulf %477, %485 : vector<8x32xf32>
    %487 = arith.addf %466, %486 : vector<8x32xf32>
    %488 = math.tanh %487 : vector<8x32xf32>
    %cst_113 = arith.constant 1.000000e+00 : f32
    %489 = vector.broadcast %cst_113 : f32 to vector<8x32xf32>
    %490 = arith.subf %489, %484 : vector<8x32xf32>
    %491 = arith.mulf %490, %488 : vector<8x32xf32>
    %492 = arith.mulf %484, %462 : vector<8x32xf32>
    %493 = arith.addf %491, %492 : vector<8x32xf32>
    %494 = vector.extract_strided_slice %87 {offsets = [104, 0], sizes = [8, 96], strides = [1, 1]} : vector<128x96xf32> to vector<8x96xf32>
    %495 = vector.extract_strided_slice %494 {offsets = [0, 0], sizes = [8, 32], strides = [1, 1]} : vector<8x96xf32> to vector<8x32xf32>
    %496 = vector.extract_strided_slice %494 {offsets = [0, 32], sizes = [8, 32], strides = [1, 1]} : vector<8x96xf32> to vector<8x32xf32>
    %497 = vector.extract_strided_slice %494 {offsets = [0, 64], sizes = [8, 32], strides = [1, 1]} : vector<8x96xf32> to vector<8x32xf32>
    %498 = arith.truncf %493 : vector<8x32xf32> to vector<8x32xbf16>
    %cst_114 = arith.constant dense<0.000000e+00> : vector<8x96xf32>
    %499 = tpu.matmul %498, %88, %cst_114 {dimension_numbers = #tpu.dot_dimension_numbers<[1], [0], [0], [1], [0, 0, 1, 1], [], []>} : vector<8x32xbf16>, vector<32x96xbf16>, vector<8x96xf32> -> vector<8x96xf32>
    %500 = vector.broadcast %89 : vector<1x96xf32> to vector<8x96xf32>
    %501 = arith.addf %499, %500 : vector<8x96xf32>
    %502 = vector.extract_strided_slice %501 {offsets = [0, 0], sizes = [8, 32], strides = [1, 1]} : vector<8x96xf32> to vector<8x32xf32>
    %503 = arith.addf %495, %502 : vector<8x32xf32>
    %504 = arith.negf %503 : vector<8x32xf32>
    %505 = math.exp %504 : vector<8x32xf32>
    %cst_115 = arith.constant 1.000000e+00 : f32
    %506 = vector.broadcast %cst_115 : f32 to vector<8x32xf32>
    %507 = arith.addf %506, %505 : vector<8x32xf32>
    %508 = arith.divf %506, %507 : vector<8x32xf32>
    %509 = vector.extract_strided_slice %501 {offsets = [0, 32], sizes = [8, 32], strides = [1, 1]} : vector<8x96xf32> to vector<8x32xf32>
    %510 = arith.addf %496, %509 : vector<8x32xf32>
    %511 = arith.negf %510 : vector<8x32xf32>
    %512 = math.exp %511 : vector<8x32xf32>
    %cst_116 = arith.constant 1.000000e+00 : f32
    %513 = vector.broadcast %cst_116 : f32 to vector<8x32xf32>
    %514 = arith.addf %513, %512 : vector<8x32xf32>
    %515 = arith.divf %513, %514 : vector<8x32xf32>
    %516 = vector.extract_strided_slice %501 {offsets = [0, 64], sizes = [8, 32], strides = [1, 1]} : vector<8x96xf32> to vector<8x32xf32>
    %517 = arith.mulf %508, %516 : vector<8x32xf32>
    %518 = arith.addf %497, %517 : vector<8x32xf32>
    %519 = math.tanh %518 : vector<8x32xf32>
    %cst_117 = arith.constant 1.000000e+00 : f32
    %520 = vector.broadcast %cst_117 : f32 to vector<8x32xf32>
    %521 = arith.subf %520, %515 : vector<8x32xf32>
    %522 = arith.mulf %521, %519 : vector<8x32xf32>
    %523 = arith.mulf %515, %493 : vector<8x32xf32>
    %524 = arith.addf %522, %523 : vector<8x32xf32>
    %525 = vector.extract_strided_slice %87 {offsets = [112, 0], sizes = [8, 96], strides = [1, 1]} : vector<128x96xf32> to vector<8x96xf32>
    %526 = vector.extract_strided_slice %525 {offsets = [0, 0], sizes = [8, 32], strides = [1, 1]} : vector<8x96xf32> to vector<8x32xf32>
    %527 = vector.extract_strided_slice %525 {offsets = [0, 32], sizes = [8, 32], strides = [1, 1]} : vector<8x96xf32> to vector<8x32xf32>
    %528 = vector.extract_strided_slice %525 {offsets = [0, 64], sizes = [8, 32], strides = [1, 1]} : vector<8x96xf32> to vector<8x32xf32>
    %529 = arith.truncf %524 : vector<8x32xf32> to vector<8x32xbf16>
    %cst_118 = arith.constant dense<0.000000e+00> : vector<8x96xf32>
    %530 = tpu.matmul %529, %88, %cst_118 {dimension_numbers = #tpu.dot_dimension_numbers<[1], [0], [0], [1], [0, 0, 1, 1], [], []>} : vector<8x32xbf16>, vector<32x96xbf16>, vector<8x96xf32> -> vector<8x96xf32>
    %531 = vector.broadcast %89 : vector<1x96xf32> to vector<8x96xf32>
    %532 = arith.addf %530, %531 : vector<8x96xf32>
    %533 = vector.extract_strided_slice %532 {offsets = [0, 0], sizes = [8, 32], strides = [1, 1]} : vector<8x96xf32> to vector<8x32xf32>
    %534 = arith.addf %526, %533 : vector<8x32xf32>
    %535 = arith.negf %534 : vector<8x32xf32>
    %536 = math.exp %535 : vector<8x32xf32>
    %cst_119 = arith.constant 1.000000e+00 : f32
    %537 = vector.broadcast %cst_119 : f32 to vector<8x32xf32>
    %538 = arith.addf %537, %536 : vector<8x32xf32>
    %539 = arith.divf %537, %538 : vector<8x32xf32>
    %540 = vector.extract_strided_slice %532 {offsets = [0, 32], sizes = [8, 32], strides = [1, 1]} : vector<8x96xf32> to vector<8x32xf32>
    %541 = arith.addf %527, %540 : vector<8x32xf32>
    %542 = arith.negf %541 : vector<8x32xf32>
    %543 = math.exp %542 : vector<8x32xf32>
    %cst_120 = arith.constant 1.000000e+00 : f32
    %544 = vector.broadcast %cst_120 : f32 to vector<8x32xf32>
    %545 = arith.addf %544, %543 : vector<8x32xf32>
    %546 = arith.divf %544, %545 : vector<8x32xf32>
    %547 = vector.extract_strided_slice %532 {offsets = [0, 64], sizes = [8, 32], strides = [1, 1]} : vector<8x96xf32> to vector<8x32xf32>
    %548 = arith.mulf %539, %547 : vector<8x32xf32>
    %549 = arith.addf %528, %548 : vector<8x32xf32>
    %550 = math.tanh %549 : vector<8x32xf32>
    %cst_121 = arith.constant 1.000000e+00 : f32
    %551 = vector.broadcast %cst_121 : f32 to vector<8x32xf32>
    %552 = arith.subf %551, %546 : vector<8x32xf32>
    %553 = arith.mulf %552, %550 : vector<8x32xf32>
    %554 = arith.mulf %546, %524 : vector<8x32xf32>
    %555 = arith.addf %553, %554 : vector<8x32xf32>
    %556 = vector.extract_strided_slice %87 {offsets = [120, 0], sizes = [8, 96], strides = [1, 1]} : vector<128x96xf32> to vector<8x96xf32>
    %557 = vector.extract_strided_slice %556 {offsets = [0, 0], sizes = [8, 32], strides = [1, 1]} : vector<8x96xf32> to vector<8x32xf32>
    %558 = vector.extract_strided_slice %556 {offsets = [0, 32], sizes = [8, 32], strides = [1, 1]} : vector<8x96xf32> to vector<8x32xf32>
    %559 = vector.extract_strided_slice %556 {offsets = [0, 64], sizes = [8, 32], strides = [1, 1]} : vector<8x96xf32> to vector<8x32xf32>
    %560 = arith.truncf %555 : vector<8x32xf32> to vector<8x32xbf16>
    %cst_122 = arith.constant dense<0.000000e+00> : vector<8x96xf32>
    %561 = tpu.matmul %560, %88, %cst_122 {dimension_numbers = #tpu.dot_dimension_numbers<[1], [0], [0], [1], [0, 0, 1, 1], [], []>} : vector<8x32xbf16>, vector<32x96xbf16>, vector<8x96xf32> -> vector<8x96xf32>
    %562 = vector.broadcast %89 : vector<1x96xf32> to vector<8x96xf32>
    %563 = arith.addf %561, %562 : vector<8x96xf32>
    %564 = vector.extract_strided_slice %563 {offsets = [0, 0], sizes = [8, 32], strides = [1, 1]} : vector<8x96xf32> to vector<8x32xf32>
    %565 = arith.addf %557, %564 : vector<8x32xf32>
    %566 = arith.negf %565 : vector<8x32xf32>
    %567 = math.exp %566 : vector<8x32xf32>
    %cst_123 = arith.constant 1.000000e+00 : f32
    %568 = vector.broadcast %cst_123 : f32 to vector<8x32xf32>
    %569 = arith.addf %568, %567 : vector<8x32xf32>
    %570 = arith.divf %568, %569 : vector<8x32xf32>
    %571 = vector.extract_strided_slice %563 {offsets = [0, 32], sizes = [8, 32], strides = [1, 1]} : vector<8x96xf32> to vector<8x32xf32>
    %572 = arith.addf %558, %571 : vector<8x32xf32>
    %573 = arith.negf %572 : vector<8x32xf32>
    %574 = math.exp %573 : vector<8x32xf32>
    %cst_124 = arith.constant 1.000000e+00 : f32
    %575 = vector.broadcast %cst_124 : f32 to vector<8x32xf32>
    %576 = arith.addf %575, %574 : vector<8x32xf32>
    %577 = arith.divf %575, %576 : vector<8x32xf32>
    %578 = vector.extract_strided_slice %563 {offsets = [0, 64], sizes = [8, 32], strides = [1, 1]} : vector<8x96xf32> to vector<8x32xf32>
    %579 = arith.mulf %570, %578 : vector<8x32xf32>
    %580 = arith.addf %559, %579 : vector<8x32xf32>
    %581 = math.tanh %580 : vector<8x32xf32>
    %cst_125 = arith.constant 1.000000e+00 : f32
    %582 = vector.broadcast %cst_125 : f32 to vector<8x32xf32>
    %583 = arith.subf %582, %577 : vector<8x32xf32>
    %584 = arith.mulf %583, %581 : vector<8x32xf32>
    %585 = arith.mulf %577, %555 : vector<8x32xf32>
    %586 = arith.addf %584, %585 : vector<8x32xf32>
    %c0_126 = arith.constant 0 : index
    %c0_127 = arith.constant 0 : index
    %587 = vector.load %arg13[%c0_126, %c0_127] : memref<1x96xf32, #tpu.memory_space<vmem>>, vector<1x96xf32>
    %588 = vector.extract_strided_slice %587 {offsets = [0, 0], sizes = [1, 32], strides = [1, 1]} : vector<1x96xf32> to vector<1x32xf32>
    %589 = vector.extract_strided_slice %587 {offsets = [0, 32], sizes = [1, 32], strides = [1, 1]} : vector<1x96xf32> to vector<1x32xf32>
    %590 = vector.extract_strided_slice %587 {offsets = [0, 64], sizes = [1, 32], strides = [1, 1]} : vector<1x96xf32> to vector<1x32xf32>
    %591 = arith.truncf %586 : vector<8x32xf32> to vector<8x32xbf16>
    %cst_128 = arith.constant dense<0.000000e+00> : vector<8x96xf32>
    %592 = tpu.matmul %591, %88, %cst_128 {dimension_numbers = #tpu.dot_dimension_numbers<[1], [0], [0], [1], [0, 0, 1, 1], [], []>} : vector<8x32xbf16>, vector<32x96xbf16>, vector<8x96xf32> -> vector<8x96xf32>
    %593 = vector.broadcast %89 : vector<1x96xf32> to vector<8x96xf32>
    %594 = arith.addf %592, %593 : vector<8x96xf32>
    %595 = vector.extract_strided_slice %594 {offsets = [0, 0], sizes = [8, 32], strides = [1, 1]} : vector<8x96xf32> to vector<8x32xf32>
    %596 = vector.broadcast %588 : vector<1x32xf32> to vector<8x32xf32>
    %597 = arith.addf %596, %595 : vector<8x32xf32>
    %598 = arith.negf %597 : vector<8x32xf32>
    %599 = math.exp %598 : vector<8x32xf32>
    %cst_129 = arith.constant 1.000000e+00 : f32
    %600 = vector.broadcast %cst_129 : f32 to vector<8x32xf32>
    %601 = arith.addf %600, %599 : vector<8x32xf32>
    %602 = arith.divf %600, %601 : vector<8x32xf32>
    %603 = vector.extract_strided_slice %594 {offsets = [0, 32], sizes = [8, 32], strides = [1, 1]} : vector<8x96xf32> to vector<8x32xf32>
    %604 = vector.broadcast %589 : vector<1x32xf32> to vector<8x32xf32>
    %605 = arith.addf %604, %603 : vector<8x32xf32>
    %606 = arith.negf %605 : vector<8x32xf32>
    %607 = math.exp %606 : vector<8x32xf32>
    %cst_130 = arith.constant 1.000000e+00 : f32
    %608 = vector.broadcast %cst_130 : f32 to vector<8x32xf32>
    %609 = arith.addf %608, %607 : vector<8x32xf32>
    %610 = arith.divf %608, %609 : vector<8x32xf32>
    %611 = vector.extract_strided_slice %594 {offsets = [0, 64], sizes = [8, 32], strides = [1, 1]} : vector<8x96xf32> to vector<8x32xf32>
    %612 = arith.mulf %602, %611 : vector<8x32xf32>
    %613 = vector.broadcast %590 : vector<1x32xf32> to vector<8x32xf32>
    %614 = arith.addf %613, %612 : vector<8x32xf32>
    %615 = math.tanh %614 : vector<8x32xf32>
    %cst_131 = arith.constant 1.000000e+00 : f32
    %616 = vector.broadcast %cst_131 : f32 to vector<8x32xf32>
    %617 = arith.subf %616, %610 : vector<8x32xf32>
    %618 = arith.mulf %617, %615 : vector<8x32xf32>
    %619 = arith.mulf %610, %586 : vector<8x32xf32>
    %620 = arith.addf %618, %619 : vector<8x32xf32>
    %cst_132 = arith.constant 0.000000e+00 : f32
    %621 = vector.broadcast %cst_132 : f32 to vector<8x32xf32>
    %622 = tpu.concatenate %620, %621 in 0 : vector<8x32xf32>, vector<8x32xf32> -> vector<16x32xf32>
    %c0_133 = arith.constant 0 : index
    %c0_134 = arith.constant 0 : index
    %623 = vector.load %arg16[%c0_133, %c0_134] : memref<32x128xf32, #tpu.memory_space<vmem>>, vector<32x128xf32>
    %cst_135 = arith.constant dense<0.000000e+00> : vector<16x128xf32>
    %624 = tpu.matmul %622, %623, %cst_135 {dimension_numbers = #tpu.dot_dimension_numbers<[1], [0], [0], [1], [0, 0, 1, 1], [], []>} : vector<16x32xf32>, vector<32x128xf32>, vector<16x128xf32> -> vector<16x128xf32>
    %c0_136 = arith.constant 0 : index
    %c0_137 = arith.constant 0 : index
    %625 = vector.load %arg17[%c0_136, %c0_137] : memref<1x128xf32, #tpu.memory_space<vmem>>, vector<1x128xf32>
    %626 = vector.broadcast %625 : vector<1x128xf32> to vector<16x128xf32>
    %627 = arith.addf %624, %626 : vector<16x128xf32>
    %628 = tpu.iota {dimensions = array<i32: 0>} : vector<16x128xi32>
    %629 = tpu.iota {dimensions = array<i32: 1>} : vector<16x128xi32>
    %c8_i32 = arith.constant 8 : i32
    %630 = vector.broadcast %c8_i32 : i32 to vector<16x128xi32>
    %631 = arith.cmpi eq, %628, %630 : vector<16x128xi32>
    %c0_i32 = arith.constant 0 : i32
    %632 = vector.broadcast %c0_i32 : i32 to vector<16x128xi32>
    %633 = arith.cmpi eq, %629, %632 : vector<16x128xi32>
    %634 = arith.andi %631, %633 : vector<16x128xi1>
    %635 = vector.shape_cast %81 : vector<1x1xf32> to vector<1x1xf32>
    %636 = vector.broadcast %635 : vector<1x1xf32> to vector<16x128xf32>
    %637 = arith.select %634, %636, %627 : vector<16x128xi1>, vector<16x128xf32>
    %c0_138 = arith.constant 0 : index
    %c0_139 = arith.constant 0 : index
    %c0_140 = arith.constant 0 : index
    %638 = vector.load %arg18[%c0_138, %c0_139, %c0_140] : memref<1x16x128xf32, #tpu.memory_space<vmem>>, vector<1x16x128xf32>
    %639 = vector.shape_cast %638 : vector<1x16x128xf32> to vector<16x128xf32>
    %640 = vector.shape_cast %637 : vector<16x128xf32> to vector<1x16x128xf32>
    tpu.vector_store %arg18[%c0_138, %c0_139, %c0_140], %640 {strides = array<i32>} : memref<1x16x128xf32, #tpu.memory_space<vmem>>, vector<1x16x128xf32>,
    return
  }
  func.func @transform_0(%arg0: i32) -> (i32, i32, i32) {
    %c0_i32 = arith.constant 0 : i32
    %c0_i32_0 = arith.constant 0 : i32
    %c0_i32_1 = arith.constant 0 : i32
    return %arg0, %c0_i32, %c0_i32_0 : i32, i32, i32
  }
  func.func @transform_1(%arg0: i32) -> (i32, i32) {
    %c0_i32 = arith.constant 0 : i32
    %c0_i32_0 = arith.constant 0 : i32
    %c0_i32_1 = arith.constant 0 : i32
    return %c0_i32, %c0_i32_0 : i32, i32
  }
  func.func @transform_2(%arg0: i32) -> (i32, i32) {
    %c0_i32 = arith.constant 0 : i32
    %c0_i32_0 = arith.constant 0 : i32
    %c0_i32_1 = arith.constant 0 : i32
    return %c0_i32, %c0_i32_0 : i32, i32
  }
  func.func @transform_3(%arg0: i32) -> (i32, i32, i32) {
    %c0_i32 = arith.constant 0 : i32
    %c0_i32_0 = arith.constant 0 : i32
    %c0_i32_1 = arith.constant 0 : i32
    %c0_i32_2 = arith.constant 0 : i32
    return %c0_i32, %c0_i32_0, %c0_i32_1 : i32, i32, i32
  }
  func.func @transform_4(%arg0: i32) -> (i32, i32, i32) {
    %c0_i32 = arith.constant 0 : i32
    %c0_i32_0 = arith.constant 0 : i32
    %c0_i32_1 = arith.constant 0 : i32
    %c0_i32_2 = arith.constant 0 : i32
    return %c0_i32, %c0_i32_0, %c0_i32_1 : i32, i32, i32
  }
  func.func @transform_5(%arg0: i32) -> (i32, i32, i32) {
    %c0_i32 = arith.constant 0 : i32
    %c0_i32_0 = arith.constant 0 : i32
    %c0_i32_1 = arith.constant 0 : i32
    %c0_i32_2 = arith.constant 0 : i32
    return %c0_i32, %c0_i32_0, %c0_i32_1 : i32, i32, i32
  }
  func.func @transform_6(%arg0: i32) -> (i32, i32, i32) {
    %c0_i32 = arith.constant 0 : i32
    %c0_i32_0 = arith.constant 0 : i32
    %c0_i32_1 = arith.constant 0 : i32
    %c0_i32_2 = arith.constant 0 : i32
    return %c0_i32, %c0_i32_0, %c0_i32_1 : i32, i32, i32
  }
  func.func @transform_7(%arg0: i32) -> (i32, i32) {
    %c0_i32 = arith.constant 0 : i32
    %c0_i32_0 = arith.constant 0 : i32
    %c0_i32_1 = arith.constant 0 : i32
    return %c0_i32, %c0_i32_0 : i32, i32
  }
  func.func @transform_8(%arg0: i32) -> (i32, i32) {
    %c0_i32 = arith.constant 0 : i32
    %c0_i32_0 = arith.constant 0 : i32
    %c0_i32_1 = arith.constant 0 : i32
    return %c0_i32, %c0_i32_0 : i32, i32
  }
  func.func @transform_9(%arg0: i32) -> (i32, i32) {
    %c0_i32 = arith.constant 0 : i32
    %c0_i32_0 = arith.constant 0 : i32
    %c0_i32_1 = arith.constant 0 : i32
    return %c0_i32, %c0_i32_0 : i32, i32
  }
  func.func @transform_10(%arg0: i32) -> (i32, i32) {
    %c0_i32 = arith.constant 0 : i32
    %c0_i32_0 = arith.constant 0 : i32
    %c0_i32_1 = arith.constant 0 : i32
    return %c0_i32, %c0_i32_0 : i32, i32
  }
  func.func @transform_11(%arg0: i32) -> (i32, i32) {
    %c0_i32 = arith.constant 0 : i32
    %c0_i32_0 = arith.constant 0 : i32
    %c0_i32_1 = arith.constant 0 : i32
    return %c0_i32, %c0_i32_0 : i32, i32
  }
  func.func @transform_12(%arg0: i32) -> (i32, i32) {
    %c0_i32 = arith.constant 0 : i32
    %c0_i32_0 = arith.constant 0 : i32
    %c0_i32_1 = arith.constant 0 : i32
    return %c0_i32, %c0_i32_0 : i32, i32
  }
  func.func @transform_13(%arg0: i32) -> (i32, i32) {
    %c0_i32 = arith.constant 0 : i32
    %c0_i32_0 = arith.constant 0 : i32
    %c0_i32_1 = arith.constant 0 : i32
    return %c0_i32, %c0_i32_0 : i32, i32
  }
  func.func @transform_14(%arg0: i32) -> (i32, i32) {
    %c0_i32 = arith.constant 0 : i32
    %c0_i32_0 = arith.constant 0 : i32
    %c0_i32_1 = arith.constant 0 : i32
    return %c0_i32, %c0_i32_0 : i32, i32
  }
  func.func @transform_15(%arg0: i32) -> (i32, i32) {
    %c0_i32 = arith.constant 0 : i32
    %c0_i32_0 = arith.constant 0 : i32
    %c0_i32_1 = arith.constant 0 : i32
    return %c0_i32, %c0_i32_0 : i32, i32
  }
  func.func @transform_16(%arg0: i32) -> (i32, i32) {
    %c0_i32 = arith.constant 0 : i32
    %c0_i32_0 = arith.constant 0 : i32
    %c0_i32_1 = arith.constant 0 : i32
    return %c0_i32, %c0_i32_0 : i32, i32
  }
  func.func @transform_17(%arg0: i32) -> (i32, i32, i32) {
    %c0_i32 = arith.constant 0 : i32
    %c0_i32_0 = arith.constant 0 : i32
    %c0_i32_1 = arith.constant 0 : i32
    return %arg0, %c0_i32, %c0_i32_0 : i32, i32, i32
  }
}

</mosaic_0001>

<llo_original>
// kernel: tpu_custom_call.1
$region0: #{tpu_custom_call.1}
  #allocation0 [shape = 'u32[]', space=smem, size = 0x4, offset = 0x4, fixed_abs, tag = 'smem constant byte address 0x4 - core index']
  #allocation1 [shape = 'u32[72,128]{1,0:T(1,128)}', space=vmem, size = 0x9000, scoped, tag = 'internal scratch']
  %s0 = inlined_call_operand.vmem [shape: f32[1,128,20], index: 0, kind: input, shape index: {}]
  %s1 = inlined_call_operand.vmem [shape: bf16[12,8], index: 1, kind: input, shape index: {}]
  %s2 = inlined_call_operand.vmem [shape: f32[1,8], index: 2, kind: input, shape index: {}]
  %s3 = inlined_call_operand.vmem [shape: bf16[2,8,16], index: 3, kind: input, shape index: {}]
  %s4 = inlined_call_operand.vmem [shape: f32[2,1,16], index: 4, kind: input, shape index: {}]
  %s5 = inlined_call_operand.vmem [shape: bf16[2,16,8], index: 5, kind: input, shape index: {}]
  %s6 = inlined_call_operand.vmem [shape: f32[2,1,8], index: 6, kind: input, shape index: {}]
  %s7 = inlined_call_operand.vmem [shape: f32[8,8], index: 7, kind: input, shape index: {}]
  %s8 = inlined_call_operand.vmem [shape: f32[1,8], index: 8, kind: input, shape index: {}]
  %s9 = inlined_call_operand.vmem [shape: f32[8,8], index: 9, kind: input, shape index: {}]
  %s10 = inlined_call_operand.vmem [shape: f32[1,8], index: 10, kind: input, shape index: {}]
  %s11 = inlined_call_operand.vmem [shape: bf16[8,96], index: 11, kind: input, shape index: {}]
  %s12 = inlined_call_operand.vmem [shape: f32[1,96], index: 12, kind: input, shape index: {}]
  %s13 = inlined_call_operand.vmem [shape: bf16[32,96], index: 13, kind: input, shape index: {}]
  %s14 = inlined_call_operand.vmem [shape: f32[1,96], index: 14, kind: input, shape index: {}]
  %s15 = inlined_call_operand.vmem [shape: f32[32,128], index: 15, kind: input, shape index: {}]
  %s16 = inlined_call_operand.vmem [shape: f32[1,128], index: 16, kind: input, shape index: {}]
  %s17 = inlined_call_operand.hbm [shape: f32[1,16,128], index: 17, kind: output, shape index: {}]
  %s18 = sld [smem:[#allocation0]]
  $region78: #{tpu_custom_call.1} parent=0
    _
  %s20 = ssub.s32 1, %s18
  %s21 = scalar_select 0, %s20, %s18
  $region1: #{tpu_custom_call.1} parent=0
    #allocation2 [shape = 'u8[8192]{0}', space=vmem, size = 0x2000, scoped, tag = 'output window, operand 0, single buffered']
    #allocation3 [shape = 's32[1]{0}', space=sflag, size = 0x4, scoped, tag = 'scoped memory for tpu_custom_call.1']
    %22 = vsyncpa [#allocation3], 0
    // Predicated region
    $region2: #{tpu_custom_call.1} parent=1 // pred_check
      _
    $region3: #{tpu_custom_call.1} parent=1 // pred_check_branch
      %24 = sbr.rel (0) target = $region5
    $region4: #{tpu_custom_call.1} parent=1 // pred_region
      _
    $region5: #{tpu_custom_call.1} parent=1 // pred_fallthru
      _
    // Predicated region
    $region6: #{tpu_custom_call.1} parent=1 // pred_check
      _
    $region7: #{tpu_custom_call.1} parent=1 // pred_check_branch
      %26 = sbr.rel (0) target = $region9
    $region8: #{tpu_custom_call.1} parent=1 // pred_region
      _
    $region9: #{tpu_custom_call.1} parent=1 // pred_fallthru
      _
    // Predicated region
    $region10: #{tpu_custom_call.1} parent=1 // pred_check
      _
    $region11: #{tpu_custom_call.1} parent=1 // pred_check_branch
      %28 = sbr.rel (0) target = $region13
    $region12: #{tpu_custom_call.1} parent=1 // pred_region
      _
    $region13: #{tpu_custom_call.1} parent=1 // pred_fallthru
      _
    // Predicated region
    $region14: #{tpu_custom_call.1} parent=1 // pred_check
      _
    $region15: #{tpu_custom_call.1} parent=1 // pred_check_branch
      %30 = sbr.rel (0) target = $region17
    $region16: #{tpu_custom_call.1} parent=1 // pred_region
      _
    $region17: #{tpu_custom_call.1} parent=1 // pred_fallthru
      _
    // Predicated region
    $region18: #{tpu_custom_call.1} parent=1 // pred_check
      _
    $region19: #{tpu_custom_call.1} parent=1 // pred_check_branch
      %32 = sbr.rel (0) target = $region21
    $region20: #{tpu_custom_call.1} parent=1 // pred_region
      _
    $region21: #{tpu_custom_call.1} parent=1 // pred_fallthru
      _
    // Predicated region
    $region22: #{tpu_custom_call.1} parent=1 // pred_check
      _
    $region23: #{tpu_custom_call.1} parent=1 // pred_check_branch
      %34 = sbr.rel (0) target = $region25
    $region24: #{tpu_custom_call.1} parent=1 // pred_region
      _
    $region25: #{tpu_custom_call.1} parent=1 // pred_fallthru
      _
    // Predicated region
    $region26: #{tpu_custom_call.1} parent=1 // pred_check
      _
    $region27: #{tpu_custom_call.1} parent=1 // pred_check_branch
      %36 = sbr.rel (0) target = $region29
    $region28: #{tpu_custom_call.1} parent=1 // pred_region
      _
    $region29: #{tpu_custom_call.1} parent=1 // pred_fallthru
      _
    // Predicated region
    $region30: #{tpu_custom_call.1} parent=1 // pred_check
      _
    $region31: #{tpu_custom_call.1} parent=1 // pred_check_branch
      %38 = sbr.rel (0) target = $region33
    $region32: #{tpu_custom_call.1} parent=1 // pred_region
      _
    $region33: #{tpu_custom_call.1} parent=1 // pred_fallthru
      _
    // Predicated region
    $region34: #{tpu_custom_call.1} parent=1 // pred_check
      _
    $region35: #{tpu_custom_call.1} parent=1 // pred_check_branch
      %40 = sbr.rel (0) target = $region37
    $region36: #{tpu_custom_call.1} parent=1 // pred_region
      _
    $region37: #{tpu_custom_call.1} parent=1 // pred_fallthru
      _
    // Predicated region
    $region38: #{tpu_custom_call.1} parent=1 // pred_check
      _
    $region39: #{tpu_custom_call.1} parent=1 // pred_check_branch
      %42 = sbr.rel (0) target = $region41
    $region40: #{tpu_custom_call.1} parent=1 // pred_region
      _
    $region41: #{tpu_custom_call.1} parent=1 // pred_fallthru
      _
    // Predicated region
    $region42: #{tpu_custom_call.1} parent=1 // pred_check
      _
    $region43: #{tpu_custom_call.1} parent=1 // pred_check_branch
      %44 = sbr.rel (0) target = $region45
    $region44: #{tpu_custom_call.1} parent=1 // pred_region
      _
    $region45: #{tpu_custom_call.1} parent=1 // pred_fallthru
      _
    // Predicated region
    $region46: #{tpu_custom_call.1} parent=1 // pred_check
      _
    $region47: #{tpu_custom_call.1} parent=1 // pred_check_branch
      %46 = sbr.rel (0) target = $region49
    $region48: #{tpu_custom_call.1} parent=1 // pred_region
      _
    $region49: #{tpu_custom_call.1} parent=1 // pred_fallthru
      _
    // Predicated region
    $region50: #{tpu_custom_call.1} parent=1 // pred_check
      _
    $region51: #{tpu_custom_call.1} parent=1 // pred_check_branch
      %48 = sbr.rel (0) target = $region53
    $region52: #{tpu_custom_call.1} parent=1 // pred_region
      _
    $region53: #{tpu_custom_call.1} parent=1 // pred_fallthru
      _
    // Predicated region
    $region54: #{tpu_custom_call.1} parent=1 // pred_check
      _
    $region55: #{tpu_custom_call.1} parent=1 // pred_check_branch
      %50 = sbr.rel (0) target = $region57
    $region56: #{tpu_custom_call.1} parent=1 // pred_region
      _
    $region57: #{tpu_custom_call.1} parent=1 // pred_fallthru
      _
    // Predicated region
    $region58: #{tpu_custom_call.1} parent=1 // pred_check
      _
    $region59: #{tpu_custom_call.1} parent=1 // pred_check_branch
      %52 = sbr.rel (0) target = $region61
    $region60: #{tpu_custom_call.1} parent=1 // pred_region
      _
    $region61: #{tpu_custom_call.1} parent=1 // pred_fallthru
      _
    // Predicated region
    $region62: #{tpu_custom_call.1} parent=1 // pred_check
      _
    $region63: #{tpu_custom_call.1} parent=1 // pred_check_branch
      %54 = sbr.rel (0) target = $region65
    $region64: #{tpu_custom_call.1} parent=1 // pred_region
      _
    $region65: #{tpu_custom_call.1} parent=1 // pred_fallthru
      _
    // Predicated region
    $region66: #{tpu_custom_call.1} parent=1 // pred_check
      _
    $region67: #{tpu_custom_call.1} parent=1 // pred_check_branch
      %56 = sbr.rel (0) target = $region69
    $region68: #{tpu_custom_call.1} parent=1 // pred_region
      _
    $region69: #{tpu_custom_call.1} parent=1 // pred_fallthru
      _
    %v58 = vld [vmem:[%s0] sm:$0xff]
    %v59 = vld [vmem:[%s0 + $0x8] sm:$0xff]
    %v60 = vld [vmem:[%s0 + $0x10] sm:$0xff]
    %v61 = vld [vmem:[%s0 + $0x18] sm:$0xff]
    %v62 = vld [vmem:[%s0 + $0x20] sm:$0xff]
    %v63 = vld [vmem:[%s0 + $0x28] sm:$0xff]
    %v64 = vld [vmem:[%s0 + $0x30] sm:$0xff]
    %v65 = vld [vmem:[%s0 + $0x38] sm:$0xff]
    %v66 = vld [vmem:[%s0 + $0x40] sm:$0xff]
    %v67 = vld [vmem:[%s0 + $0x48] sm:$0xff]
    %v68 = vld [vmem:[%s0 + $0x50] sm:$0xff]
    %v69 = vld [vmem:[%s0 + $0x58] sm:$0xff]
    %v70 = vld [vmem:[%s0 + $0x60] sm:$0xff]
    %v71 = vld [vmem:[%s0 + $0x68] sm:$0xff]
    %v72 = vld [vmem:[%s0 + $0x70] sm:$0xff]
    %v73 = vld [vmem:[%s0 + $0x78] sm:$0xff]
    %v74 = vpack.c.bf16 %v59, %v58
    %v75 = vpack.c.bf16 %v61, %v60
    %v76 = vpack.c.bf16 %v63, %v62
    %v77 = vpack.c.bf16 %v65, %v64
    %v78 = vpack.c.bf16 %v67, %v66
    %v79 = vpack.c.bf16 %v69, %v68
    %v80 = vpack.c.bf16 %v71, %v70
    %v81 = vpack.c.bf16 %v73, %v72
    %v82 = vld [vmem:[%s1] sm:$0xf]
    %v83 = vld [vmem:[%s1 + $0x4] sm:$0x3]
    %v84 = vld [vmem:[%s2] sm:$0x1]
    %v86 = vperm.slane %v84, 0
    %v90 = vunpack.c.l.b16 %v82
    %v91 = vunpack.c.l.b16 %v83
    %v92 = vpack.c.b16 %v91, %v90
    %vm93 = vcmask 97280
    %v95 = vsel %vm93, %v74, 0
    %v98 = vsel %vm93, %v75, 0
    %v101 = vsel %vm93, %v76, 0
    %v104 = vsel %vm93, %v77, 0
    %v107 = vsel %vm93, %v78, 0
    %v110 = vsel %vm93, %v79, 0
    %v113 = vsel %vm93, %v80, 0
    %v116 = vsel %vm93, %v81, 0
    %vm118 = vcmask 1045504
    %v120 = vsel %vm118, %v92, 0
    %122 = vmatpush.bf16.msra.mxu0 0
    %123 = vmatpush.bf16.msra.mxu0 0
    %124 = vmatpush.bf16.msra.mxu0 0
    %125 = vmatpush.bf16.msra.mxu0 0
    %126 = vmatpush.bf16.msra.mxu0 0
    %127 = vmatpush.bf16.msra.mxu0 0
    %128 = vmatpush.bf16.msra.mxu0 0
    %129 = vmatpush.bf16.msra.mxu0 %v120
    %130 = vmatmul.bf16.gmra.mxu0 %v95
    %v131 = vpop.f32.mrf.mxu0
    %v132 = vadd.f32 %v86, %v131
    %v133 = vpop.f32.mrf.mxu0
    %v134 = vadd.f32 %v86, %v133
    %135 = vmatmul.bf16.gmra.mxu0 %v98
    %v136 = vpop.f32.mrf.mxu0
    %v137 = vadd.f32 %v86, %v136
    %v138 = vpop.f32.mrf.mxu0
    %v139 = vadd.f32 %v86, %v138
    %140 = vmatmul.bf16.gmra.mxu0 %v101
    %v141 = vpop.f32.mrf.mxu0
    %v142 = vadd.f32 %v86, %v141
    %v143 = vpop.f32.mrf.mxu0
    %v144 = vadd.f32 %v86, %v143
    %145 = vmatmul.bf16.gmra.mxu0 %v104
    %v146 = vpop.f32.mrf.mxu0
    %v147 = vadd.f32 %v86, %v146
    %v148 = vpop.f32.mrf.mxu0
    %v149 = vadd.f32 %v86, %v148
    %150 = vmatmul.bf16.gmra.mxu0 %v107
    %v151 = vpop.f32.mrf.mxu0
    %v152 = vadd.f32 %v86, %v151
    %v153 = vpop.f32.mrf.mxu0
    %v154 = vadd.f32 %v86, %v153
    %155 = vmatmul.bf16.gmra.mxu0 %v110
    %v156 = vpop.f32.mrf.mxu0
    %v157 = vadd.f32 %v86, %v156
    %v158 = vpop.f32.mrf.mxu0
    %v159 = vadd.f32 %v86, %v158
    %160 = vmatmul.bf16.gmra.mxu0 %v113
    %v161 = vpop.f32.mrf.mxu0
    %v162 = vadd.f32 %v86, %v161
    %v163 = vpop.f32.mrf.mxu0
    %v164 = vadd.f32 %v86, %v163
    %165 = vmatmul.bf16.gmra.mxu0 %v116
    %v166 = vpop.f32.mrf.mxu0
    %v167 = vadd.f32 %v86, %v166
    %v168 = vpop.f32.mrf.mxu0
    %v169 = vadd.f32 %v86, %v168
    %170 = vdwg.mxu0
    %v171 = vmax.f32 %v132, 0.0
    %v172 = vmax.f32 %v134, 0.0
    %v173 = vmax.f32 %v137, 0.0
    %v174 = vmax.f32 %v139, 0.0
    %v175 = vmax.f32 %v142, 0.0
    %v176 = vmax.f32 %v144, 0.0
    %v177 = vmax.f32 %v147, 0.0
    %v178 = vmax.f32 %v149, 0.0
    %v179 = vmax.f32 %v152, 0.0
    %v180 = vmax.f32 %v154, 0.0
    %v181 = vmax.f32 %v157, 0.0
    %v182 = vmax.f32 %v159, 0.0
    %v183 = vmax.f32 %v162, 0.0
    %v184 = vmax.f32 %v164, 0.0
    %v185 = vmax.f32 %v167, 0.0
    %v186 = vmax.f32 %v169, 0.0
    %v187 = vmax.f32 %v171, 0.0
    %v188 = vmax.f32 %v172, 0.0
    %v189 = vmax.f32 %v173, 0.0
    %v190 = vmax.f32 %v174, 0.0
    %v191 = vmax.f32 %v175, 0.0
    %v192 = vmax.f32 %v176, 0.0
    %v193 = vmax.f32 %v177, 0.0
    %v194 = vmax.f32 %v178, 0.0
    %v195 = vmax.f32 %v179, 0.0
    %v196 = vmax.f32 %v180, 0.0
    %v197 = vmax.f32 %v181, 0.0
    %v198 = vmax.f32 %v182, 0.0
    %v199 = vmax.f32 %v183, 0.0
    %v200 = vmax.f32 %v184, 0.0
    %v201 = vmax.f32 %v185, 0.0
    %v202 = vmax.f32 %v186, 0.0
    %v203 = vpack.c.bf16 %v188, %v187
    %v204 = vpack.c.bf16 %v190, %v189
    %v205 = vpack.c.bf16 %v192, %v191
    %v206 = vpack.c.bf16 %v194, %v193
    %v207 = vpack.c.bf16 %v196, %v195
    %v208 = vpack.c.bf16 %v198, %v197
    %v209 = vpack.c.bf16 %v200, %v199
    %v210 = vpack.c.bf16 %v202, %v201
    %v211 = vld [vmem:[%s3] sm:$0xf]
    %v212 = vld [vmem:[%s4] sm:$0x1]
    %v214 = vperm.slane %v212, 0
    %vm216 = vcmask 64512
    %v218 = vsel %vm216, %v203, 0
    %v221 = vsel %vm216, %v204, 0
    %v224 = vsel %vm216, %v205, 0
    %v227 = vsel %vm216, %v206, 0
    %v230 = vsel %vm216, %v207, 0
    %v233 = vsel %vm216, %v208, 0
    %v236 = vsel %vm216, %v209, 0
    %v239 = vsel %vm216, %v210, 0
    %vm241 = vcmask 1043456
    %v243 = vsel %vm241, %v211, 0
    %245 = vmatpush.bf16.msra.mxu0 0
    %246 = vmatpush.bf16.msra.mxu0 0
    %247 = vmatpush.bf16.msra.mxu0 0
    %248 = vmatpush.bf16.msra.mxu0 0
    %249 = vmatpush.bf16.msra.mxu0 0
    %250 = vmatpush.bf16.msra.mxu0 0
    %251 = vmatpush.bf16.msra.mxu0 0
    %252 = vmatpush.bf16.msra.mxu0 %v243
    %253 = vmatmul.bf16.gmra.mxu0 %v218
    %v254 = vpop.f32.mrf.mxu0
    %v255 = vadd.f32 %v214, %v254
    %v256 = vpop.f32.mrf.mxu0
    %v257 = vadd.f32 %v214, %v256
    %258 = vmatmul.bf16.gmra.mxu0 %v221
    %v259 = vpop.f32.mrf.mxu0
    %v260 = vadd.f32 %v214, %v259
    %v261 = vpop.f32.mrf.mxu0
    %v262 = vadd.f32 %v214, %v261
    %263 = vmatmul.bf16.gmra.mxu0 %v224
    %v264 = vpop.f32.mrf.mxu0
    %v265 = vadd.f32 %v214, %v264
    %v266 = vpop.f32.mrf.mxu0
    %v267 = vadd.f32 %v214, %v266
    %268 = vmatmul.bf16.gmra.mxu0 %v227
    %v269 = vpop.f32.mrf.mxu0
    %v270 = vadd.f32 %v214, %v269
    %v271 = vpop.f32.mrf.mxu0
    %v272 = vadd.f32 %v214, %v271
    %273 = vmatmul.bf16.gmra.mxu0 %v230
    %v274 = vpop.f32.mrf.mxu0
    %v275 = vadd.f32 %v214, %v274
    %v276 = vpop.f32.mrf.mxu0
    %v277 = vadd.f32 %v214, %v276
    %278 = vmatmul.bf16.gmra.mxu0 %v233
    %v279 = vpop.f32.mrf.mxu0
    %v280 = vadd.f32 %v214, %v279
    %v281 = vpop.f32.mrf.mxu0
    %v282 = vadd.f32 %v214, %v281
    %283 = vmatmul.bf16.gmra.mxu0 %v236
    %v284 = vpop.f32.mrf.mxu0
    %v285 = vadd.f32 %v214, %v284
    %v286 = vpop.f32.mrf.mxu0
    %v287 = vadd.f32 %v214, %v286
    %288 = vmatmul.bf16.gmra.mxu0 %v239
    %v289 = vpop.f32.mrf.mxu0
    %v290 = vadd.f32 %v214, %v289
    %v291 = vpop.f32.mrf.mxu0
    %v292 = vadd.f32 %v214, %v291
    %293 = vdwg.mxu0
    %v294 = vmax.f32 %v255, 0.0
    %v295 = vmax.f32 %v257, 0.0
    %v296 = vmax.f32 %v260, 0.0
    %v297 = vmax.f32 %v262, 0.0
    %v298 = vmax.f32 %v265, 0.0
    %v299 = vmax.f32 %v267, 0.0
    %v300 = vmax.f32 %v270, 0.0
    %v301 = vmax.f32 %v272, 0.0
    %v302 = vmax.f32 %v275, 0.0
    %v303 = vmax.f32 %v277, 0.0
    %v304 = vmax.f32 %v280, 0.0
    %v305 = vmax.f32 %v282, 0.0
    %v306 = vmax.f32 %v285, 0.0
    %v307 = vmax.f32 %v287, 0.0
    %v308 = vmax.f32 %v290, 0.0
    %v309 = vmax.f32 %v292, 0.0
    %v310 = vpack.c.bf16 %v295, %v294
    %v311 = vpack.c.bf16 %v297, %v296
    %v312 = vpack.c.bf16 %v299, %v298
    %v313 = vpack.c.bf16 %v301, %v300
    %v314 = vpack.c.bf16 %v303, %v302
    %v315 = vpack.c.bf16 %v305, %v304
    %v316 = vpack.c.bf16 %v307, %v306
    %v317 = vpack.c.bf16 %v309, %v308
    %v318 = vld [vmem:[%s5] sm:$0xf]
    %v319 = vld [vmem:[%s5 + $0x4] sm:$0xf]
    %v320 = vld [vmem:[%s6] sm:$0x1]
    %v322 = vperm.slane %v320, 0
    %v326 = vunpack.c.l.b16 %v318
    %v327 = vunpack.c.l.b16 %v319
    %v328 = vpack.c.b16 %v327, %v326
    %vm330 = vcmask 130048
    %v332 = vsel %vm330, %v310, 0
    %v335 = vsel %vm330, %v311, 0
    %v338 = vsel %vm330, %v312, 0
    %v341 = vsel %vm330, %v313, 0
    %v344 = vsel %vm330, %v314, 0
    %v347 = vsel %vm330, %v315, 0
    %v350 = vsel %vm330, %v316, 0
    %v353 = vsel %vm330, %v317, 0
    %355 = vmatpush.bf16.msra.mxu0 0
    %356 = vmatpush.bf16.msra.mxu0 0
    %357 = vmatpush.bf16.msra.mxu0 0
    %358 = vmatpush.bf16.msra.mxu0 0
    %359 = vmatpush.bf16.msra.mxu0 0
    %360 = vmatpush.bf16.msra.mxu0 0
    %361 = vmatpush.bf16.msra.mxu0 0
    %362 = vmatpush.bf16.msra.mxu0 %v328
    %363 = vmatmul.bf16.gmra.mxu0 %v332
    %v364 = vpop.f32.mrf.mxu0
    %v365 = vadd.f32 %v322, %v364
    %v366 = vpop.f32.mrf.mxu0
    %v367 = vadd.f32 %v322, %v366
    %368 = vmatmul.bf16.gmra.mxu0 %v335
    %v369 = vpop.f32.mrf.mxu0
    %v370 = vadd.f32 %v322, %v369
    %v371 = vpop.f32.mrf.mxu0
    %v372 = vadd.f32 %v322, %v371
    %373 = vmatmul.bf16.gmra.mxu0 %v338
    %v374 = vpop.f32.mrf.mxu0
    %v375 = vadd.f32 %v322, %v374
    %v376 = vpop.f32.mrf.mxu0
    %v377 = vadd.f32 %v322, %v376
    %378 = vmatmul.bf16.gmra.mxu0 %v341
    %v379 = vpop.f32.mrf.mxu0
    %v380 = vadd.f32 %v322, %v379
    %v381 = vpop.f32.mrf.mxu0
    %v382 = vadd.f32 %v322, %v381
    %383 = vmatmul.bf16.gmra.mxu0 %v344
    %v384 = vpop.f32.mrf.mxu0
    %v385 = vadd.f32 %v322, %v384
    %v386 = vpop.f32.mrf.mxu0
    %v387 = vadd.f32 %v322, %v386
    %388 = vmatmul.bf16.gmra.mxu0 %v347
    %v389 = vpop.f32.mrf.mxu0
    %v390 = vadd.f32 %v322, %v389
    %v391 = vpop.f32.mrf.mxu0
    %v392 = vadd.f32 %v322, %v391
    %393 = vmatmul.bf16.gmra.mxu0 %v350
    %v394 = vpop.f32.mrf.mxu0
    %v395 = vadd.f32 %v322, %v394
    %v396 = vpop.f32.mrf.mxu0
    %v397 = vadd.f32 %v322, %v396
    %398 = vmatmul.bf16.gmra.mxu0 %v353
    %v399 = vpop.f32.mrf.mxu0
    %v400 = vadd.f32 %v322, %v399
    %v401 = vpop.f32.mrf.mxu0
    %v402 = vadd.f32 %v322, %v401
    %403 = vdwg.mxu0
    %v404 = vadd.f32 %v171, %v365
    %v405 = vadd.f32 %v172, %v367
    %v406 = vadd.f32 %v173, %v370
    %v407 = vadd.f32 %v174, %v372
    %v408 = vadd.f32 %v175, %v375
    %v409 = vadd.f32 %v176, %v377
    %v410 = vadd.f32 %v177, %v380
    %v411 = vadd.f32 %v178, %v382
    %v412 = vadd.f32 %v179, %v385
    %v413 = vadd.f32 %v180, %v387
    %v414 = vadd.f32 %v181, %v390
    %v415 = vadd.f32 %v182, %v392
    %v416 = vadd.f32 %v183, %v395
    %v417 = vadd.f32 %v184, %v397
    %v418 = vadd.f32 %v185, %v400
    %v419 = vadd.f32 %v186, %v402
    %v420 = vmax.f32 %v404, 0.0
    %v421 = vmax.f32 %v405, 0.0
    %v422 = vmax.f32 %v406, 0.0
    %v423 = vmax.f32 %v407, 0.0
    %v424 = vmax.f32 %v408, 0.0
    %v425 = vmax.f32 %v409, 0.0
    %v426 = vmax.f32 %v410, 0.0
    %v427 = vmax.f32 %v411, 0.0
    %v428 = vmax.f32 %v412, 0.0
    %v429 = vmax.f32 %v413, 0.0
    %v430 = vmax.f32 %v414, 0.0
    %v431 = vmax.f32 %v415, 0.0
    %v432 = vmax.f32 %v416, 0.0
    %v433 = vmax.f32 %v417, 0.0
    %v434 = vmax.f32 %v418, 0.0
    %v435 = vmax.f32 %v419, 0.0
    %v436 = vpack.c.bf16 %v421, %v420
    %v437 = vpack.c.bf16 %v423, %v422
    %v438 = vpack.c.bf16 %v425, %v424
    %v439 = vpack.c.bf16 %v427, %v426
    %v440 = vpack.c.bf16 %v429, %v428
    %v441 = vpack.c.bf16 %v431, %v430
    %v442 = vpack.c.bf16 %v433, %v432
    %v443 = vpack.c.bf16 %v435, %v434
    %s444 = scalar_lea.vmem %s3, 4
    %v445 = vld [vmem:[%s444] sm:$0xf]
    %s446 = scalar_lea.vmem %s4, 1
    %v447 = vld [vmem:[%s446] sm:$0x1]
    %v449 = vperm.slane %v447, 0
    %v452 = vsel %vm216, %v436, 0
    %v455 = vsel %vm216, %v437, 0
    %v458 = vsel %vm216, %v438, 0
    %v461 = vsel %vm216, %v439, 0
    %v464 = vsel %vm216, %v440, 0
    %v467 = vsel %vm216, %v441, 0
    %v470 = vsel %vm216, %v442, 0
    %v473 = vsel %vm216, %v443, 0
    %v476 = vsel %vm241, %v445, 0
    %478 = vmatpush.bf16.msra.mxu0 0
    %479 = vmatpush.bf16.msra.mxu0 0
    %480 = vmatpush.bf16.msra.mxu0 0
    %481 = vmatpush.bf16.msra.mxu0 0
    %482 = vmatpush.bf16.msra.mxu0 0
    %483 = vmatpush.bf16.msra.mxu0 0
    %484 = vmatpush.bf16.msra.mxu0 0
    %485 = vmatpush.bf16.msra.mxu0 %v476
    %486 = vmatmul.bf16.gmra.mxu0 %v452
    %v487 = vpop.f32.mrf.mxu0
    %v488 = vadd.f32 %v449, %v487
    %v489 = vpop.f32.mrf.mxu0
    %v490 = vadd.f32 %v449, %v489
    %491 = vmatmul.bf16.gmra.mxu0 %v455
    %v492 = vpop.f32.mrf.mxu0
    %v493 = vadd.f32 %v449, %v492
    %v494 = vpop.f32.mrf.mxu0
    %v495 = vadd.f32 %v449, %v494
    %496 = vmatmul.bf16.gmra.mxu0 %v458
    %v497 = vpop.f32.mrf.mxu0
    %v498 = vadd.f32 %v449, %v497
    %v499 = vpop.f32.mrf.mxu0
    %v500 = vadd.f32 %v449, %v499
    %501 = vmatmul.bf16.gmra.mxu0 %v461
    %v502 = vpop.f32.mrf.mxu0
    %v503 = vadd.f32 %v449, %v502
    %v504 = vpop.f32.mrf.mxu0
    %v505 = vadd.f32 %v449, %v504
    %506 = vmatmul.bf16.gmra.mxu0 %v464
    %v507 = vpop.f32.mrf.mxu0
    %v508 = vadd.f32 %v449, %v507
    %v509 = vpop.f32.mrf.mxu0
    %v510 = vadd.f32 %v449, %v509
    %511 = vmatmul.bf16.gmra.mxu0 %v467
    %v512 = vpop.f32.mrf.mxu0
    %v513 = vadd.f32 %v449, %v512
    %v514 = vpop.f32.mrf.mxu0
    %v515 = vadd.f32 %v449, %v514
    %516 = vmatmul.bf16.gmra.mxu0 %v470
    %v517 = vpop.f32.mrf.mxu0
    %v518 = vadd.f32 %v449, %v517
    %v519 = vpop.f32.mrf.mxu0
    %v520 = vadd.f32 %v449, %v519
    %521 = vmatmul.bf16.gmra.mxu0 %v473
    %v522 = vpop.f32.mrf.mxu0
    %v523 = vadd.f32 %v449, %v522
    %v524 = vpop.f32.mrf.mxu0
    %v525 = vadd.f32 %v449, %v524
    %526 = vdwg.mxu0
    %v527 = vmax.f32 %v488, 0.0
    %v528 = vmax.f32 %v490, 0.0
    %v529 = vmax.f32 %v493, 0.0
    %v530 = vmax.f32 %v495, 0.0
    %v531 = vmax.f32 %v498, 0.0
    %v532 = vmax.f32 %v500, 0.0
    %v533 = vmax.f32 %v503, 0.0
    %v534 = vmax.f32 %v505, 0.0
    %v535 = vmax.f32 %v508, 0.0
    %v536 = vmax.f32 %v510, 0.0
    %v537 = vmax.f32 %v513, 0.0
    %v538 = vmax.f32 %v515, 0.0
    %v539 = vmax.f32 %v518, 0.0
    %v540 = vmax.f32 %v520, 0.0
    %v541 = vmax.f32 %v523, 0.0
    %v542 = vmax.f32 %v525, 0.0
    %v543 = vpack.c.bf16 %v528, %v527
    %v544 = vpack.c.bf16 %v530, %v529
    %v545 = vpack.c.bf16 %v532, %v531
    %v546 = vpack.c.bf16 %v534, %v533
    %v547 = vpack.c.bf16 %v536, %v535
    %v548 = vpack.c.bf16 %v538, %v537
    %v549 = vpack.c.bf16 %v540, %v539
    %v550 = vpack.c.bf16 %v542, %v541
    %s551 = scalar_lea.vmem %s5, 8
    %v552 = vld [vmem:[%s551] sm:$0xf]
    %v553 = vld [vmem:[%s551 + $0x4] sm:$0xf]
    %s554 = scalar_lea.vmem %s6, 1
    %v555 = vld [vmem:[%s554] sm:$0x1]
    %v557 = vperm.slane %v555, 0
    %v561 = vunpack.c.l.b16 %v552
    %v562 = vunpack.c.l.b16 %v553
    %v563 = vpack.c.b16 %v562, %v561
    %v566 = vsel %vm330, %v543, 0
    %v569 = vsel %vm330, %v544, 0
    %v572 = vsel %vm330, %v545, 0
    %v575 = vsel %vm330, %v546, 0
    %v578 = vsel %vm330, %v547, 0
    %v581 = vsel %vm330, %v548, 0
    %v584 = vsel %vm330, %v549, 0
    %v587 = vsel %vm330, %v550, 0
    %589 = vmatpush.bf16.msra.mxu0 0
    %590 = vmatpush.bf16.msra.mxu0 0
    %591 = vmatpush.bf16.msra.mxu0 0
    %592 = vmatpush.bf16.msra.mxu0 0
    %593 = vmatpush.bf16.msra.mxu0 0
    %594 = vmatpush.bf16.msra.mxu0 0
    %595 = vmatpush.bf16.msra.mxu0 0
    %596 = vmatpush.bf16.msra.mxu0 %v563
    %597 = vmatmul.bf16.gmra.mxu0 %v566
    %v598 = vpop.f32.mrf.mxu0
    %v599 = vadd.f32 %v557, %v598
    %v600 = vpop.f32.mrf.mxu0
    %v601 = vadd.f32 %v557, %v600
    %602 = vmatmul.bf16.gmra.mxu0 %v569
    %v603 = vpop.f32.mrf.mxu0
    %v604 = vadd.f32 %v557, %v603
    %v605 = vpop.f32.mrf.mxu0
    %v606 = vadd.f32 %v557, %v605
    %607 = vmatmul.bf16.gmra.mxu0 %v572
    %v608 = vpop.f32.mrf.mxu0
    %v609 = vadd.f32 %v557, %v608
    %v610 = vpop.f32.mrf.mxu0
    %v611 = vadd.f32 %v557, %v610
    %612 = vmatmul.bf16.gmra.mxu0 %v575
    %v613 = vpop.f32.mrf.mxu0
    %v614 = vadd.f32 %v557, %v613
    %v615 = vpop.f32.mrf.mxu0
    %v616 = vadd.f32 %v557, %v615
    %617 = vmatmul.bf16.gmra.mxu0 %v578
    %v618 = vpop.f32.mrf.mxu0
    %v619 = vadd.f32 %v557, %v618
    %v620 = vpop.f32.mrf.mxu0
    %v621 = vadd.f32 %v557, %v620
    %622 = vmatmul.bf16.gmra.mxu0 %v581
    %v623 = vpop.f32.mrf.mxu0
    %v624 = vadd.f32 %v557, %v623
    %v625 = vpop.f32.mrf.mxu0
    %v626 = vadd.f32 %v557, %v625
    %627 = vmatmul.bf16.gmra.mxu0 %v584
    %v628 = vpop.f32.mrf.mxu0
    %v629 = vadd.f32 %v557, %v628
    %v630 = vpop.f32.mrf.mxu0
    %v631 = vadd.f32 %v557, %v630
    %632 = vmatmul.bf16.gmra.mxu0 %v587
    %v633 = vpop.f32.mrf.mxu0
    %v634 = vadd.f32 %v557, %v633
    %v635 = vpop.f32.mrf.mxu0
    %v636 = vadd.f32 %v557, %v635
    %637 = vdwg.mxu0
    %v638 = vadd.f32 %v404, %v599
    %v639 = vadd.f32 %v405, %v601
    %v640 = vadd.f32 %v406, %v604
    %v641 = vadd.f32 %v407, %v606
    %v642 = vadd.f32 %v408, %v609
    %v643 = vadd.f32 %v409, %v611
    %v644 = vadd.f32 %v410, %v614
    %v645 = vadd.f32 %v411, %v616
    %v646 = vadd.f32 %v412, %v619
    %v647 = vadd.f32 %v413, %v621
    %v648 = vadd.f32 %v414, %v624
    %v649 = vadd.f32 %v415, %v626
    %v650 = vadd.f32 %v416, %v629
    %v651 = vadd.f32 %v417, %v631
    %v652 = vadd.f32 %v418, %v634
    %v653 = vadd.f32 %v419, %v636
    %v654 = vmax.f32 %v638, 0.0
    %v655 = vmax.f32 %v639, 0.0
    %v656 = vmax.f32 %v640, 0.0
    %v657 = vmax.f32 %v641, 0.0
    %v658 = vmax.f32 %v642, 0.0
    %v659 = vmax.f32 %v643, 0.0
    %v660 = vmax.f32 %v644, 0.0
    %v661 = vmax.f32 %v645, 0.0
    %v662 = vmax.f32 %v646, 0.0
    %v663 = vmax.f32 %v647, 0.0
    %v664 = vmax.f32 %v648, 0.0
    %v665 = vmax.f32 %v649, 0.0
    %v666 = vmax.f32 %v650, 0.0
    %v667 = vmax.f32 %v651, 0.0
    %v668 = vmax.f32 %v652, 0.0
    %v669 = vmax.f32 %v653, 0.0
    %v670 = vld [vmem:[%s7] sm:$0xff]
    %v671 = vld [vmem:[%s8] sm:$0x1]
    %v673 = vperm.slane %v671, 0
    %v676 = vsel %vm216, %v654, 0
    %v679 = vsel %vm216, %v655, 0
    %v682 = vsel %vm216, %v656, 0
    %v685 = vsel %vm216, %v657, 0
    %v688 = vsel %vm216, %v658, 0
    %v691 = vsel %vm216, %v659, 0
    %v694 = vsel %vm216, %v660, 0
    %v697 = vsel %vm216, %v661, 0
    %v700 = vsel %vm216, %v662, 0
    %v703 = vsel %vm216, %v663, 0
    %v706 = vsel %vm216, %v664, 0
    %v709 = vsel %vm216, %v665, 0
    %v712 = vsel %vm216, %v666, 0
    %v715 = vsel %vm216, %v667, 0
    %v718 = vsel %vm216, %v668, 0
    %v721 = vsel %vm216, %v669, 0
    %723 = vmatpush.msra.mxu0 0.0
    %724 = vmatpush.msra.mxu0 0.0
    %725 = vmatpush.msra.mxu0 0.0
    %726 = vmatpush.msra.mxu0 0.0
    %727 = vmatpush.msra.mxu0 0.0
    %728 = vmatpush.msra.mxu0 0.0
    %729 = vmatpush.msra.mxu0 0.0
    %730 = vmatpush.msra.mxu0 0.0
    %731 = vmatpush.msra.mxu0 0.0
    %732 = vmatpush.msra.mxu0 0.0
    %733 = vmatpush.msra.mxu0 0.0
    %734 = vmatpush.msra.mxu0 0.0
    %735 = vmatpush.msra.mxu0 0.0
    %736 = vmatpush.msra.mxu0 0.0
    %737 = vmatpush.msra.mxu0 0.0
    %738 = vmatpush.msra.mxu0 %v670
    %739 = vmatmul.f32.gmra.mxu0 %v676
    %v740 = vpop.f32.mrf.mxu0
    %v741 = vadd.f32 %v673, %v740
    %742 = vmatmul.f32.gmra.mxu0 %v679
    %v743 = vpop.f32.mrf.mxu0
    %v744 = vadd.f32 %v673, %v743
    %745 = vmatmul.f32.gmra.mxu0 %v682
    %v746 = vpop.f32.mrf.mxu0
    %v747 = vadd.f32 %v673, %v746
    %748 = vmatmul.f32.gmra.mxu0 %v685
    %v749 = vpop.f32.mrf.mxu0
    %v750 = vadd.f32 %v673, %v749
    %751 = vmatmul.f32.gmra.mxu0 %v688
    %v752 = vpop.f32.mrf.mxu0
    %v753 = vadd.f32 %v673, %v752
    %754 = vmatmul.f32.gmra.mxu0 %v691
    %v755 = vpop.f32.mrf.mxu0
    %v756 = vadd.f32 %v673, %v755
    %757 = vmatmul.f32.gmra.mxu0 %v694
    %v758 = vpop.f32.mrf.mxu0
    %v759 = vadd.f32 %v673, %v758
    %760 = vmatmul.f32.gmra.mxu0 %v697
    %v761 = vpop.f32.mrf.mxu0
    %v762 = vadd.f32 %v673, %v761
    %763 = vmatmul.f32.gmra.mxu0 %v700
    %v764 = vpop.f32.mrf.mxu0
    %v765 = vadd.f32 %v673, %v764
    %766 = vmatmul.f32.gmra.mxu0 %v703
    %v767 = vpop.f32.mrf.mxu0
    %v768 = vadd.f32 %v673, %v767
    %769 = vmatmul.f32.gmra.mxu0 %v706
    %v770 = vpop.f32.mrf.mxu0
    %v771 = vadd.f32 %v673, %v770
    %772 = vmatmul.f32.gmra.mxu0 %v709
    %v773 = vpop.f32.mrf.mxu0
    %v774 = vadd.f32 %v673, %v773
    %775 = vmatmul.f32.gmra.mxu0 %v712
    %v776 = vpop.f32.mrf.mxu0
    %v777 = vadd.f32 %v673, %v776
    %778 = vmatmul.f32.gmra.mxu0 %v715
    %v779 = vpop.f32.mrf.mxu0
    %v780 = vadd.f32 %v673, %v779
    %781 = vmatmul.f32.gmra.mxu0 %v718
    %v782 = vpop.f32.mrf.mxu0
    %v783 = vadd.f32 %v673, %v782
    %784 = vmatmul.f32.gmra.mxu0 %v721
    %v785 = vpop.f32.mrf.mxu0
    %v786 = vadd.f32 %v673, %v785
    %787 = vdwg.mxu0
    %v788 = vld [vmem:[%s9] sm:$0xff]
    %v789 = vld [vmem:[%s10] sm:$0x1]
    %v791 = vperm.slane %v789, 0
    %793 = vmatpush.msra.mxu0 0.0
    %794 = vmatpush.msra.mxu0 0.0
    %795 = vmatpush.msra.mxu0 0.0
    %796 = vmatpush.msra.mxu0 0.0
    %797 = vmatpush.msra.mxu0 0.0
    %798 = vmatpush.msra.mxu0 0.0
    %799 = vmatpush.msra.mxu0 0.0
    %800 = vmatpush.msra.mxu0 0.0
    %801 = vmatpush.msra.mxu0 0.0
    %802 = vmatpush.msra.mxu0 0.0
    %803 = vmatpush.msra.mxu0 0.0
    %804 = vmatpush.msra.mxu0 0.0
    %805 = vmatpush.msra.mxu0 0.0
    %806 = vmatpush.msra.mxu0 0.0
    %807 = vmatpush.msra.mxu0 0.0
    %808 = vmatpush.msra.mxu0 %v788
    %809 = vmatmul.f32.gmra.mxu0 %v676
    %v810 = vpop.f32.mrf.mxu0
    %v811 = vadd.f32 %v791, %v810
    %812 = vmatmul.f32.gmra.mxu0 %v679
    %v813 = vpop.f32.mrf.mxu0
    %v814 = vadd.f32 %v791, %v813
    %815 = vmatmul.f32.gmra.mxu0 %v682
    %v816 = vpop.f32.mrf.mxu0
    %v817 = vadd.f32 %v791, %v816
    %818 = vmatmul.f32.gmra.mxu0 %v685
    %v819 = vpop.f32.mrf.mxu0
    %v820 = vadd.f32 %v791, %v819
    %821 = vmatmul.f32.gmra.mxu0 %v688
    %v822 = vpop.f32.mrf.mxu0
    %v823 = vadd.f32 %v791, %v822
    %824 = vmatmul.f32.gmra.mxu0 %v691
    %v825 = vpop.f32.mrf.mxu0
    %v826 = vadd.f32 %v791, %v825
    %827 = vmatmul.f32.gmra.mxu0 %v694
    %v828 = vpop.f32.mrf.mxu0
    %v829 = vadd.f32 %v791, %v828
    %830 = vmatmul.f32.gmra.mxu0 %v697
    %v831 = vpop.f32.mrf.mxu0
    %v832 = vadd.f32 %v791, %v831
    %833 = vmatmul.f32.gmra.mxu0 %v700
    %v834 = vpop.f32.mrf.mxu0
    %v835 = vadd.f32 %v791, %v834
    %836 = vmatmul.f32.gmra.mxu0 %v703
    %v837 = vpop.f32.mrf.mxu0
    %v838 = vadd.f32 %v791, %v837
    %839 = vmatmul.f32.gmra.mxu0 %v706
    %v840 = vpop.f32.mrf.mxu0
    %v841 = vadd.f32 %v791, %v840
    %842 = vmatmul.f32.gmra.mxu0 %v709
    %v843 = vpop.f32.mrf.mxu0
    %v844 = vadd.f32 %v791, %v843
    %845 = vmatmul.f32.gmra.mxu0 %v712
    %v846 = vpop.f32.mrf.mxu0
    %v847 = vadd.f32 %v791, %v846
    %848 = vmatmul.f32.gmra.mxu0 %v715
    %v849 = vpop.f32.mrf.mxu0
    %v850 = vadd.f32 %v791, %v849
    %851 = vmatmul.f32.gmra.mxu0 %v718
    %v852 = vpop.f32.mrf.mxu0
    %v853 = vadd.f32 %v791, %v852
    %854 = vmatmul.f32.gmra.mxu0 %v721
    %v855 = vpop.f32.mrf.mxu0
    %v856 = vadd.f32 %v791, %v855
    %857 = vdwg.mxu0
    %v858 = vmul.f32 %v811, 0.5
    %v859 = vmul.f32 %v814, 0.5
    %v860 = vmul.f32 %v817, 0.5
    %v861 = vmul.f32 %v820, 0.5
    %v862 = vmul.f32 %v823, 0.5
    %v863 = vmul.f32 %v826, 0.5
    %v864 = vmul.f32 %v829, 0.5
    %v865 = vmul.f32 %v832, 0.5
    %v866 = vmul.f32 %v835, 0.5
    %v867 = vmul.f32 %v838, 0.5
    %v868 = vmul.f32 %v841, 0.5
    %v869 = vmul.f32 %v844, 0.5
    %v870 = vmul.f32 %v847, 0.5
    %v871 = vmul.f32 %v850, 0.5
    %v872 = vmul.f32 %v853, 0.5
    %v873 = vmul.f32 %v856, 0.5
    %v874 = vmul.f32 %v858, 1.442695
    %v875 = vpow.pop %v874
    %v876 = vmul.f32 %v859, 1.442695
    %v877 = vpow.pop %v876
    %v878 = vmul.f32 %v860, 1.442695
    %v879 = vpow.pop %v878
    %v880 = vmul.f32 %v861, 1.442695
    %v881 = vpow.pop %v880
    %v882 = vmul.f32 %v862, 1.442695
    %v883 = vpow.pop %v882
    %v884 = vmul.f32 %v863, 1.442695
    %v885 = vpow.pop %v884
    %v886 = vmul.f32 %v864, 1.442695
    %v887 = vpow.pop %v886
    %v888 = vmul.f32 %v865, 1.442695
    %v889 = vpow.pop %v888
    %v890 = vmul.f32 %v866, 1.442695
    %v891 = vpow.pop %v890
    %v892 = vmul.f32 %v867, 1.442695
    %v893 = vpow.pop %v892
    %v894 = vmul.f32 %v868, 1.442695
    %v895 = vpow.pop %v894
    %v896 = vmul.f32 %v869, 1.442695
    %v897 = vpow.pop %v896
    %v898 = vmul.f32 %v870, 1.442695
    %v899 = vpow.pop %v898
    %v900 = vmul.f32 %v871, 1.442695
    %v901 = vpow.pop %v900
    %v902 = vmul.f32 %v872, 1.442695
    %v903 = vpow.pop %v902
    %v904 = vmul.f32 %v873, 1.442695
    %v905 = vpow.pop %v904
    %922 = vrot.lane.b32.xlu0 %v875, 12
    %v923 = vpop.permute.xlu0 %922
    %924 = vrot.lane.b32.xlu0 %v877, 12
    %v925 = vpop.permute.xlu0 %924
    %926 = vrot.lane.b32.xlu0 %v879, 12
    %v927 = vpop.permute.xlu0 %926
    %928 = vrot.lane.b32.xlu0 %v881, 12
    %v929 = vpop.permute.xlu0 %928
    %930 = vrot.lane.b32.xlu0 %v883, 12
    %v931 = vpop.permute.xlu0 %930
    %932 = vrot.lane.b32.xlu0 %v885, 12
    %v933 = vpop.permute.xlu0 %932
    %934 = vrot.lane.b32.xlu0 %v887, 12
    %v935 = vpop.permute.xlu0 %934
    %936 = vrot.lane.b32.xlu0 %v889, 12
    %v937 = vpop.permute.xlu0 %936
    %938 = vrot.lane.b32.xlu0 %v891, 12
    %v939 = vpop.permute.xlu0 %938
    %940 = vrot.lane.b32.xlu0 %v893, 12
    %v941 = vpop.permute.xlu0 %940
    %942 = vrot.lane.b32.xlu0 %v895, 12
    %v943 = vpop.permute.xlu0 %942
    %944 = vrot.lane.b32.xlu0 %v897, 12
    %v945 = vpop.permute.xlu0 %944
    %946 = vrot.lane.b32.xlu0 %v899, 12
    %v947 = vpop.permute.xlu0 %946
    %948 = vrot.lane.b32.xlu0 %v901, 12
    %v949 = vpop.permute.xlu0 %948
    %950 = vrot.lane.b32.xlu0 %v903, 12
    %v951 = vpop.permute.xlu0 %950
    %952 = vrot.lane.b32.xlu0 %v905, 12
    %v953 = vpop.permute.xlu0 %952
    %v970 = vmul.f32 %v58, %v923
    %v971 = vmul.f32 %v59, %v925
    %v972 = vmul.f32 %v60, %v927
    %v973 = vmul.f32 %v61, %v929
    %v974 = vmul.f32 %v62, %v931
    %v975 = vmul.f32 %v63, %v933
    %v976 = vmul.f32 %v64, %v935
    %v977 = vmul.f32 %v65, %v937
    %v978 = vmul.f32 %v66, %v939
    %v979 = vmul.f32 %v67, %v941
    %v980 = vmul.f32 %v68, %v943
    %v981 = vmul.f32 %v69, %v945
    %v982 = vmul.f32 %v70, %v947
    %v983 = vmul.f32 %v71, %v949
    %v984 = vmul.f32 %v72, %v951
    %v985 = vmul.f32 %v73, %v953
    %1002 = vrot.lane.b32.xlu0 %v970, 116
    %v1003 = vpop.permute.xlu0 %1002
    %1004 = vrot.lane.b32.xlu0 %v971, 116
    %v1005 = vpop.permute.xlu0 %1004
    %1006 = vrot.lane.b32.xlu0 %v972, 116
    %v1007 = vpop.permute.xlu0 %1006
    %1008 = vrot.lane.b32.xlu0 %v973, 116
    %v1009 = vpop.permute.xlu0 %1008
    %1010 = vrot.lane.b32.xlu0 %v974, 116
    %v1011 = vpop.permute.xlu0 %1010
    %1012 = vrot.lane.b32.xlu0 %v975, 116
    %v1013 = vpop.permute.xlu0 %1012
    %1014 = vrot.lane.b32.xlu0 %v976, 116
    %v1015 = vpop.permute.xlu0 %1014
    %1016 = vrot.lane.b32.xlu0 %v977, 116
    %v1017 = vpop.permute.xlu0 %1016
    %1018 = vrot.lane.b32.xlu0 %v978, 116
    %v1019 = vpop.permute.xlu0 %1018
    %1020 = vrot.lane.b32.xlu0 %v979, 116
    %v1021 = vpop.permute.xlu0 %1020
    %1022 = vrot.lane.b32.xlu0 %v980, 116
    %v1023 = vpop.permute.xlu0 %1022
    %1024 = vrot.lane.b32.xlu0 %v981, 116
    %v1025 = vpop.permute.xlu0 %1024
    %1026 = vrot.lane.b32.xlu0 %v982, 116
    %v1027 = vpop.permute.xlu0 %1026
    %1028 = vrot.lane.b32.xlu0 %v983, 116
    %v1029 = vpop.permute.xlu0 %1028
    %1030 = vrot.lane.b32.xlu0 %v984, 116
    %v1031 = vpop.permute.xlu0 %1030
    %1032 = vrot.lane.b32.xlu0 %v985, 116
    %v1033 = vpop.permute.xlu0 %1032
    %v1050 = vadd.f32 %v741, %v1003
    %v1051 = vadd.f32 %v744, %v1005
    %v1052 = vadd.f32 %v747, %v1007
    %v1053 = vadd.f32 %v750, %v1009
    %v1054 = vadd.f32 %v753, %v1011
    %v1055 = vadd.f32 %v756, %v1013
    %v1056 = vadd.f32 %v759, %v1015
    %v1057 = vadd.f32 %v762, %v1017
    %v1058 = vadd.f32 %v765, %v1019
    %v1059 = vadd.f32 %v768, %v1021
    %v1060 = vadd.f32 %v771, %v1023
    %v1061 = vadd.f32 %v774, %v1025
    %v1062 = vadd.f32 %v777, %v1027
    %v1063 = vadd.f32 %v780, %v1029
    %v1064 = vadd.f32 %v783, %v1031
    %v1065 = vadd.f32 %v786, %v1033
    %v1066 = vadd.f32 %v811, 1.0
    %v1067 = vadd.f32 %v814, 1.0
    %v1068 = vadd.f32 %v817, 1.0
    %v1069 = vadd.f32 %v820, 1.0
    %v1070 = vadd.f32 %v823, 1.0
    %v1071 = vadd.f32 %v826, 1.0
    %v1072 = vadd.f32 %v829, 1.0
    %v1073 = vadd.f32 %v832, 1.0
    %v1074 = vadd.f32 %v835, 1.0
    %v1075 = vadd.f32 %v838, 1.0
    %v1076 = vadd.f32 %v841, 1.0
    %v1077 = vadd.f32 %v844, 1.0
    %v1078 = vadd.f32 %v847, 1.0
    %v1079 = vadd.f32 %v850, 1.0
    %v1080 = vadd.f32 %v853, 1.0
    %v1081 = vadd.f32 %v856, 1.0
    %v1082 = vmul.f32 %v741, %v741
    %v1083 = vmul.f32 %v744, %v744
    %v1084 = vmul.f32 %v747, %v747
    %v1085 = vmul.f32 %v750, %v750
    %v1086 = vmul.f32 %v753, %v753
    %v1087 = vmul.f32 %v756, %v756
    %v1088 = vmul.f32 %v759, %v759
    %v1089 = vmul.f32 %v762, %v762
    %v1090 = vmul.f32 %v765, %v765
    %v1091 = vmul.f32 %v768, %v768
    %v1092 = vmul.f32 %v771, %v771
    %v1093 = vmul.f32 %v774, %v774
    %v1094 = vmul.f32 %v777, %v777
    %v1095 = vmul.f32 %v780, %v780
    %v1096 = vmul.f32 %v783, %v783
    %v1097 = vmul.f32 %v786, %v786
    %v1098 = vsub.f32 %v1066, %v1082
    %v1099 = vsub.f32 %v1067, %v1083
    %v1100 = vsub.f32 %v1068, %v1084
    %v1101 = vsub.f32 %v1069, %v1085
    %v1102 = vsub.f32 %v1070, %v1086
    %v1103 = vsub.f32 %v1071, %v1087
    %v1104 = vsub.f32 %v1072, %v1088
    %v1105 = vsub.f32 %v1073, %v1089
    %v1106 = vsub.f32 %v1074, %v1090
    %v1107 = vsub.f32 %v1075, %v1091
    %v1108 = vsub.f32 %v1076, %v1092
    %v1109 = vsub.f32 %v1077, %v1093
    %v1110 = vsub.f32 %v1078, %v1094
    %v1111 = vsub.f32 %v1079, %v1095
    %v1112 = vsub.f32 %v1080, %v1096
    %v1113 = vsub.f32 %v1081, %v1097
    %v1114 = vmul.f32 %v875, %v875
    %v1115 = vmul.f32 %v877, %v877
    %v1116 = vmul.f32 %v879, %v879
    %v1117 = vmul.f32 %v881, %v881
    %v1118 = vmul.f32 %v883, %v883
    %v1119 = vmul.f32 %v885, %v885
    %v1120 = vmul.f32 %v887, %v887
    %v1121 = vmul.f32 %v889, %v889
    %v1122 = vmul.f32 %v891, %v891
    %v1123 = vmul.f32 %v893, %v893
    %v1124 = vmul.f32 %v895, %v895
    %v1125 = vmul.f32 %v897, %v897
    %v1126 = vmul.f32 %v899, %v899
    %v1127 = vmul.f32 %v901, %v901
    %v1128 = vmul.f32 %v903, %v903
    %v1129 = vmul.f32 %v905, %v905
    %v1130 = vsub.f32 %v1098, %v1114
    %v1131 = vsub.f32 %v1099, %v1115
    %v1132 = vsub.f32 %v1100, %v1116
    %v1133 = vsub.f32 %v1101, %v1117
    %v1134 = vsub.f32 %v1102, %v1118
    %v1135 = vsub.f32 %v1103, %v1119
    %v1136 = vsub.f32 %v1104, %v1120
    %v1137 = vsub.f32 %v1105, %v1121
    %v1138 = vsub.f32 %v1106, %v1122
    %v1139 = vsub.f32 %v1107, %v1123
    %v1140 = vsub.f32 %v1108, %v1124
    %v1141 = vsub.f32 %v1109, %v1125
    %v1142 = vsub.f32 %v1110, %v1126
    %v1143 = vsub.f32 %v1111, %v1127
    %v1144 = vsub.f32 %v1112, %v1128
    %v1145 = vsub.f32 %v1113, %v1129
    %v1146 = vsel %vm216, %v1130, 0.0
    %v1147 = vsel %vm216, %v1131, 0.0
    %v1148 = vadd.f32 %v1146, %v1147
    %v1149 = vsel %vm216, %v1132, 0.0
    %v1150 = vadd.f32 %v1148, %v1149
    %v1151 = vsel %vm216, %v1133, 0.0
    %v1152 = vadd.f32 %v1150, %v1151
    %v1153 = vsel %vm216, %v1134, 0.0
    %v1154 = vadd.f32 %v1152, %v1153
    %v1155 = vsel %vm216, %v1135, 0.0
    %v1156 = vadd.f32 %v1154, %v1155
    %v1157 = vsel %vm216, %v1136, 0.0
    %v1158 = vadd.f32 %v1156, %v1157
    %v1159 = vsel %vm216, %v1137, 0.0
    %v1160 = vadd.f32 %v1158, %v1159
    %v1161 = vsel %vm216, %v1138, 0.0
    %v1162 = vadd.f32 %v1160, %v1161
    %v1163 = vsel %vm216, %v1139, 0.0
    %v1164 = vadd.f32 %v1162, %v1163
    %v1165 = vsel %vm216, %v1140, 0.0
    %v1166 = vadd.f32 %v1164, %v1165
    %v1167 = vsel %vm216, %v1141, 0.0
    %v1168 = vadd.f32 %v1166, %v1167
    %v1169 = vsel %vm216, %v1142, 0.0
    %v1170 = vadd.f32 %v1168, %v1169
    %v1171 = vsel %vm216, %v1143, 0.0
    %v1172 = vadd.f32 %v1170, %v1171
    %v1173 = vsel %vm216, %v1144, 0.0
    %v1174 = vadd.f32 %v1172, %v1173
    %v1175 = vsel %vm216, %v1145, 0.0
    %v1176 = vadd.f32 %v1174, %v1175
    %1177 = vadd.xlane.f32.xlu0 %v1176
    %v1178 = vpop.xlane.xlu0 %1177
    %v1179 = vrot.slane %v1178, 4
    %v1180 = vadd.f32 %v1178, %v1179
    %v1181 = vrot.slane %v1180, 2
    %v1182 = vadd.f32 %v1180, %v1181
    %v1183 = vrot.slane %v1182, 1
    %v1184 = vadd.f32 %v1182, %v1183
    %s1185 = vtos %v1184
    %v1186 = vpack.c.bf16 %v1051, %v1050
    %v1187 = vpack.c.bf16 %v1053, %v1052
    %v1188 = vpack.c.bf16 %v1055, %v1054
    %v1189 = vpack.c.bf16 %v1057, %v1056
    %v1190 = vpack.c.bf16 %v1059, %v1058
    %v1191 = vpack.c.bf16 %v1061, %v1060
    %v1192 = vpack.c.bf16 %v1063, %v1062
    %v1193 = vpack.c.bf16 %v1065, %v1064
    %v1194 = vld [vmem:[%s11] sm:$0xf]
    %v1195 = vld [vmem:[%s12] sm:$0x1]
    %v1197 = vperm.slane %v1195, 0
    %v1200 = vsel %vm216, %v1186, 0
    %v1203 = vsel %vm216, %v1187, 0
    %v1206 = vsel %vm216, %v1188, 0
    %v1209 = vsel %vm216, %v1189, 0
    %v1212 = vsel %vm216, %v1190, 0
    %v1215 = vsel %vm216, %v1191, 0
    %v1218 = vsel %vm216, %v1192, 0
    %v1221 = vsel %vm216, %v1193, 0
    %v1224 = vsel %vm241, %v1194, 0
    %1226 = vmatpush.bf16.msra.mxu0 0
    %1227 = vmatpush.bf16.msra.mxu0 0
    %1228 = vmatpush.bf16.msra.mxu0 0
    %1229 = vmatpush.bf16.msra.mxu0 0
    %1230 = vmatpush.bf16.msra.mxu0 0
    %1231 = vmatpush.bf16.msra.mxu0 0
    %1232 = vmatpush.bf16.msra.mxu0 0
    %1233 = vmatpush.bf16.msra.mxu0 %v1224
    %1234 = vmatmul.bf16.gmra.mxu0 %v1200
    %v1235 = vpop.f32.mrf.mxu0
    %v1236 = vadd.f32 %v1197, %v1235
    %v1237 = vpop.f32.mrf.mxu0
    %v1238 = vadd.f32 %v1197, %v1237
    %1239 = vmatmul.bf16.gmra.mxu0 %v1203
    %v1240 = vpop.f32.mrf.mxu0
    %v1241 = vadd.f32 %v1197, %v1240
    %v1242 = vpop.f32.mrf.mxu0
    %v1243 = vadd.f32 %v1197, %v1242
    %1244 = vmatmul.bf16.gmra.mxu0 %v1206
    %v1245 = vpop.f32.mrf.mxu0
    %v1246 = vadd.f32 %v1197, %v1245
    %v1247 = vpop.f32.mrf.mxu0
    %v1248 = vadd.f32 %v1197, %v1247
    %1249 = vmatmul.bf16.gmra.mxu0 %v1209
    %v1250 = vpop.f32.mrf.mxu0
    %v1251 = vadd.f32 %v1197, %v1250
    %v1252 = vpop.f32.mrf.mxu0
    %v1253 = vadd.f32 %v1197, %v1252
    %1254 = vmatmul.bf16.gmra.mxu0 %v1212
    %v1255 = vpop.f32.mrf.mxu0
    %v1256 = vadd.f32 %v1197, %v1255
    %v1257 = vpop.f32.mrf.mxu0
    %v1258 = vadd.f32 %v1197, %v1257
    %1259 = vmatmul.bf16.gmra.mxu0 %v1215
    %v1260 = vpop.f32.mrf.mxu0
    %v1261 = vadd.f32 %v1197, %v1260
    %v1262 = vpop.f32.mrf.mxu0
    %v1263 = vadd.f32 %v1197, %v1262
    %1264 = vmatmul.bf16.gmra.mxu0 %v1218
    %v1265 = vpop.f32.mrf.mxu0
    %v1266 = vadd.f32 %v1197, %v1265
    %v1267 = vpop.f32.mrf.mxu0
    %v1268 = vadd.f32 %v1197, %v1267
    %1269 = vmatmul.bf16.gmra.mxu0 %v1221
    %v1270 = vpop.f32.mrf.mxu0
    %v1271 = vadd.f32 %v1197, %v1270
    %v1272 = vpop.f32.mrf.mxu0
    %v1273 = vadd.f32 %v1197, %v1272
    %1274 = vdwg.mxu0
    %v1275 = vld [vmem:[%s13] sm:$0xf]
    %v1276 = vld [vmem:[%s13 + $0x4] sm:$0xf]
    %v1277 = vld [vmem:[%s13 + $0x8] sm:$0xf]
    %v1278 = vld [vmem:[%s13 + $0xc] sm:$0xf]
    %v1279 = vld [vmem:[%s14] sm:$0x1]
    %v1281 = vperm.slane %v1279, 0
    %v1287 = vunpack.c.l.b16 %v1275
    %v1288 = vunpack.c.l.b16 %v1276
    %v1289 = vunpack.c.l.b16 %v1277
    %v1290 = vunpack.c.l.b16 %v1278
    %v1291 = vpack.c.b16 %v1288, %v1287
    %v1292 = vpack.c.b16 %v1290, %v1289
    %vm1295 = vcmask 261120
    %v1297 = vsel %vm1295, 0, 0
    %1299 = vmatpush.bf16.msra.mxu0 0
    %1300 = vmatpush.bf16.msra.mxu0 0
    %1301 = vmatpush.bf16.msra.mxu0 0
    %1302 = vmatpush.bf16.msra.mxu0 0
    %1303 = vmatpush.bf16.msra.mxu0 0
    %1304 = vmatpush.bf16.msra.mxu0 0
    %1305 = vmatpush.bf16.msra.mxu0 %v1292
    %1306 = vmatpush.bf16.msra.mxu0 %v1291
    %1307 = vmatmul.bf16.gmra.mxu0 %v1297
    %v1308 = vpop.f32.mrf.mxu0
    %v1309 = vadd.f32 %v1281, %v1308
    %v1310 = vpop.f32.mrf.mxu0
    %1311 = vdwg.mxu0
    %v1312 = vadd.f32 %v1236, %v1309
    %v1313 = vxor.u32 %v1312, 2147483648
    %v1314 = vmul.f32 %v1313, 1.442695
    %v1315 = vpow.pop %v1314
    %v1316 = vadd.f32 %v1315, 1.0
    %v1317 = vrcp.pop %v1316
    %v1318 = vmul.f32 %v1316, %v1317
    %v1319 = vsub.f32 1.0, %v1318
    %v1320 = vmul.f32 %v1317, %v1319
    %v1321 = vadd.f32 %v1317, %v1320
    %vm1322 = vweird.f32 %v1316
    %vm1323 = vweird.f32 %v1317
    %vm1324 = vmor %vm1322, %vm1323
    %v1325 = vsel %vm1324, %v1317, %v1321
    %v1326 = vand.u32 2147483647, %v1316
    %vm1327 = vcmp.eq.f32.partialorder %v1326, 8.507059e+37
    %v1328 = vand.u32 %v1316, 2147483648
    %v1329 = vor.u32 1.1754944e-38, %v1328
    %v1330 = vsel %vm1327, %v1329, %v1325
    %v1331 = vmul.f32 1.0, %v1330
    %1333 = vrot.lane.b32.xlu0 %v1309, 64
    %v1334 = vpop.permute.xlu0 %1333
    %v1336 = vmul.f32 %v1331, %v1334
    %1338 = vrot.lane.b32.xlu0 %v1336, 64
    %v1339 = vpop.permute.xlu0 %1338
    %v1341 = vadd.f32 %v1236, %v1339
    %v1342 = vtanh.pop %v1341
    %v1343 = vsub.f32 1.0, %v1331
    %1345 = vrot.lane.b32.xlu0 %v1342, 96
    %v1346 = vpop.permute.xlu0 %1345
    %v1348 = vmul.f32 %v1343, %v1346
    %v1349 = vmul.f32 %v1331, 0.0
    %v1350 = vadd.f32 %v1348, %v1349
    %v1351 = vpack.c.bf16 %v1350, %v1350
    %1353 = vrot.lane.b32.xlu0 %v1351, 96
    %v1354 = vpop.permute.xlu0 %1353
    %v1356 = vsel %vm1295, %v1354, 0
    %1358 = vmatpush.bf16.msra.mxu0 0
    %1359 = vmatpush.bf16.msra.mxu0 0
    %1360 = vmatpush.bf16.msra.mxu0 0
    %1361 = vmatpush.bf16.msra.mxu0 0
    %1362 = vmatpush.bf16.msra.mxu0 0
    %1363 = vmatpush.bf16.msra.mxu0 0
    %1364 = vmatpush.bf16.msra.mxu0 %v1292
    %1365 = vmatpush.bf16.msra.mxu0 %v1291
    %1366 = vmatmul.bf16.gmra.mxu0 %v1356
    %v1367 = vpop.f32.mrf.mxu0
    %v1368 = vadd.f32 %v1281, %v1367
    %v1369 = vpop.f32.mrf.mxu0
    %1370 = vdwg.mxu0
    %v1371 = vadd.f32 %v1238, %v1368
    %v1372 = vxor.u32 %v1371, 2147483648
    %v1373 = vmul.f32 %v1372, 1.442695
    %v1374 = vpow.pop %v1373
    %v1375 = vadd.f32 %v1374, 1.0
    %v1376 = vrcp.pop %v1375
    %v1377 = vmul.f32 %v1375, %v1376
    %v1378 = vsub.f32 1.0, %v1377
    %v1379 = vmul.f32 %v1376, %v1378
    %v1380 = vadd.f32 %v1376, %v1379
    %vm1381 = vweird.f32 %v1375
    %vm1382 = vweird.f32 %v1376
    %vm1383 = vmor %vm1381, %vm1382
    %v1384 = vsel %vm1383, %v1376, %v1380
    %v1385 = vand.u32 2147483647, %v1375
    %vm1386 = vcmp.eq.f32.partialorder %v1385, 8.507059e+37
    %v1387 = vand.u32 %v1375, 2147483648
    %v1388 = vor.u32 1.1754944e-38, %v1387
    %v1389 = vsel %vm1386, %v1388, %v1384
    %v1390 = vmul.f32 1.0, %v1389
    %1392 = vrot.lane.b32.xlu0 %v1368, 64
    %v1393 = vpop.permute.xlu0 %1392
    %v1395 = vmul.f32 %v1390, %v1393
    %1397 = vrot.lane.b32.xlu0 %v1395, 64
    %v1398 = vpop.permute.xlu0 %1397
    %v1400 = vadd.f32 %v1238, %v1398
    %v1401 = vtanh.pop %v1400
    %v1402 = vsub.f32 1.0, %v1390
    %1404 = vrot.lane.b32.xlu0 %v1401, 96
    %v1405 = vpop.permute.xlu0 %1404
    %v1407 = vmul.f32 %v1402, %v1405
    %v1408 = vmul.f32 %v1390, %v1350
    %v1409 = vadd.f32 %v1407, %v1408
    %v1410 = vpack.c.bf16 %v1409, %v1409
    %1412 = vrot.lane.b32.xlu0 %v1410, 96
    %v1413 = vpop.permute.xlu0 %1412
    %v1415 = vsel %vm1295, %v1413, 0
    %1417 = vmatpush.bf16.msra.mxu0 0
    %1418 = vmatpush.bf16.msra.mxu0 0
    %1419 = vmatpush.bf16.msra.mxu0 0
    %1420 = vmatpush.bf16.msra.mxu0 0
    %1421 = vmatpush.bf16.msra.mxu0 0
    %1422 = vmatpush.bf16.msra.mxu0 0
    %1423 = vmatpush.bf16.msra.mxu0 %v1292
    %1424 = vmatpush.bf16.msra.mxu0 %v1291
    %1425 = vmatmul.bf16.gmra.mxu0 %v1415
    %v1426 = vpop.f32.mrf.mxu0
    %v1427 = vadd.f32 %v1281, %v1426
    %v1428 = vpop.f32.mrf.mxu0
    %1429 = vdwg.mxu0
    %v1430 = vadd.f32 %v1241, %v1427
    %v1431 = vxor.u32 %v1430, 2147483648
    %v1432 = vmul.f32 %v1431, 1.442695
    %v1433 = vpow.pop %v1432
    %v1434 = vadd.f32 %v1433, 1.0
    %v1435 = vrcp.pop %v1434
    %v1436 = vmul.f32 %v1434, %v1435
    %v1437 = vsub.f32 1.0, %v1436
    %v1438 = vmul.f32 %v1435, %v1437
    %v1439 = vadd.f32 %v1435, %v1438
    %vm1440 = vweird.f32 %v1434
    %vm1441 = vweird.f32 %v1435
    %vm1442 = vmor %vm1440, %vm1441
    %v1443 = vsel %vm1442, %v1435, %v1439
    %v1444 = vand.u32 2147483647, %v1434
    %vm1445 = vcmp.eq.f32.partialorder %v1444, 8.507059e+37
    %v1446 = vand.u32 %v1434, 2147483648
    %v1447 = vor.u32 1.1754944e-38, %v1446
    %v1448 = vsel %vm1445, %v1447, %v1443
    %v1449 = vmul.f32 1.0, %v1448
    %1451 = vrot.lane.b32.xlu0 %v1427, 64
    %v1452 = vpop.permute.xlu0 %1451
    %v1454 = vmul.f32 %v1449, %v1452
    %1456 = vrot.lane.b32.xlu0 %v1454, 64
    %v1457 = vpop.permute.xlu0 %1456
    %v1459 = vadd.f32 %v1241, %v1457
    %v1460 = vtanh.pop %v1459
    %v1461 = vsub.f32 1.0, %v1449
    %1463 = vrot.lane.b32.xlu0 %v1460, 96
    %v1464 = vpop.permute.xlu0 %1463
    %v1466 = vmul.f32 %v1461, %v1464
    %v1467 = vmul.f32 %v1449, %v1409
    %v1468 = vadd.f32 %v1466, %v1467
    %v1469 = vpack.c.bf16 %v1468, %v1468
    %1471 = vrot.lane.b32.xlu0 %v1469, 96
    %v1472 = vpop.permute.xlu0 %1471
    %v1474 = vsel %vm1295, %v1472, 0
    %1476 = vmatpush.bf16.msra.mxu0 0
    %1477 = vmatpush.bf16.msra.mxu0 0
    %1478 = vmatpush.bf16.msra.mxu0 0
    %1479 = vmatpush.bf16.msra.mxu0 0
    %1480 = vmatpush.bf16.msra.mxu0 0
    %1481 = vmatpush.bf16.msra.mxu0 0
    %1482 = vmatpush.bf16.msra.mxu0 %v1292
    %1483 = vmatpush.bf16.msra.mxu0 %v1291
    %1484 = vmatmul.bf16.gmra.mxu0 %v1474
    %v1485 = vpop.f32.mrf.mxu0
    %v1486 = vadd.f32 %v1281, %v1485
    %v1487 = vpop.f32.mrf.mxu0
    %1488 = vdwg.mxu0
    %v1489 = vadd.f32 %v1243, %v1486
    %v1490 = vxor.u32 %v1489, 2147483648
    %v1491 = vmul.f32 %v1490, 1.442695
    %v1492 = vpow.pop %v1491
    %v1493 = vadd.f32 %v1492, 1.0
    %v1494 = vrcp.pop %v1493
    %v1495 = vmul.f32 %v1493, %v1494
    %v1496 = vsub.f32 1.0, %v1495
    %v1497 = vmul.f32 %v1494, %v1496
    %v1498 = vadd.f32 %v1494, %v1497
    %vm1499 = vweird.f32 %v1493
    %vm1500 = vweird.f32 %v1494
    %vm1501 = vmor %vm1499, %vm1500
    %v1502 = vsel %vm1501, %v1494, %v1498
    %v1503 = vand.u32 2147483647, %v1493
    %vm1504 = vcmp.eq.f32.partialorder %v1503, 8.507059e+37
    %v1505 = vand.u32 %v1493, 2147483648
    %v1506 = vor.u32 1.1754944e-38, %v1505
    %v1507 = vsel %vm1504, %v1506, %v1502
    %v1508 = vmul.f32 1.0, %v1507
    %1510 = vrot.lane.b32.xlu0 %v1486, 64
    %v1511 = vpop.permute.xlu0 %1510
    %v1513 = vmul.f32 %v1508, %v1511
    %1515 = vrot.lane.b32.xlu0 %v1513, 64
    %v1516 = vpop.permute.xlu0 %1515
    %v1518 = vadd.f32 %v1243, %v1516
    %v1519 = vtanh.pop %v1518
    %v1520 = vsub.f32 1.0, %v1508
    %1522 = vrot.lane.b32.xlu0 %v1519, 96
    %v1523 = vpop.permute.xlu0 %1522
    %v1525 = vmul.f32 %v1520, %v1523
    %v1526 = vmul.f32 %v1508, %v1468
    %v1527 = vadd.f32 %v1525, %v1526
    %v1528 = vpack.c.bf16 %v1527, %v1527
    %1530 = vrot.lane.b32.xlu0 %v1528, 96
    %v1531 = vpop.permute.xlu0 %1530
    %v1533 = vsel %vm1295, %v1531, 0
    %1535 = vmatpush.bf16.msra.mxu0 0
    %1536 = vmatpush.bf16.msra.mxu0 0
    %1537 = vmatpush.bf16.msra.mxu0 0
    %1538 = vmatpush.bf16.msra.mxu0 0
    %1539 = vmatpush.bf16.msra.mxu0 0
    %1540 = vmatpush.bf16.msra.mxu0 0
    %1541 = vmatpush.bf16.msra.mxu0 %v1292
    %1542 = vmatpush.bf16.msra.mxu0 %v1291
    %1543 = vmatmul.bf16.gmra.mxu0 %v1533
    %v1544 = vpop.f32.mrf.mxu0
    %v1545 = vadd.f32 %v1281, %v1544
    %v1546 = vpop.f32.mrf.mxu0
    %1547 = vdwg.mxu0
    %v1548 = vadd.f32 %v1246, %v1545
    %v1549 = vxor.u32 %v1548, 2147483648
    %v1550 = vmul.f32 %v1549, 1.442695
    %v1551 = vpow.pop %v1550
    %v1552 = vadd.f32 %v1551, 1.0
    %v1553 = vrcp.pop %v1552
    %v1554 = vmul.f32 %v1552, %v1553
    %v1555 = vsub.f32 1.0, %v1554
    %v1556 = vmul.f32 %v1553, %v1555
    %v1557 = vadd.f32 %v1553, %v1556
    %vm1558 = vweird.f32 %v1552
    %vm1559 = vweird.f32 %v1553
    %vm1560 = vmor %vm1558, %vm1559
    %v1561 = vsel %vm1560, %v1553, %v1557
    %v1562 = vand.u32 2147483647, %v1552
    %vm1563 = vcmp.eq.f32.partialorder %v1562, 8.507059e+37
    %v1564 = vand.u32 %v1552, 2147483648
    %v1565 = vor.u32 1.1754944e-38, %v1564
    %v1566 = vsel %vm1563, %v1565, %v1561
    %v1567 = vmul.f32 1.0, %v1566
    %1569 = vrot.lane.b32.xlu0 %v1545, 64
    %v1570 = vpop.permute.xlu0 %1569
    %v1572 = vmul.f32 %v1567, %v1570
    %1574 = vrot.lane.b32.xlu0 %v1572, 64
    %v1575 = vpop.permute.xlu0 %1574
    %v1577 = vadd.f32 %v1246, %v1575
    %v1578 = vtanh.pop %v1577
    %v1579 = vsub.f32 1.0, %v1567
    %1581 = vrot.lane.b32.xlu0 %v1578, 96
    %v1582 = vpop.permute.xlu0 %1581
    %v1584 = vmul.f32 %v1579, %v1582
    %v1585 = vmul.f32 %v1567, %v1527
    %v1586 = vadd.f32 %v1584, %v1585
    %v1587 = vpack.c.bf16 %v1586, %v1586
    %1589 = vrot.lane.b32.xlu0 %v1587, 96
    %v1590 = vpop.permute.xlu0 %1589
    %v1592 = vsel %vm1295, %v1590, 0
    %1594 = vmatpush.bf16.msra.mxu0 0
    %1595 = vmatpush.bf16.msra.mxu0 0
    %1596 = vmatpush.bf16.msra.mxu0 0
    %1597 = vmatpush.bf16.msra.mxu0 0
    %1598 = vmatpush.bf16.msra.mxu0 0
    %1599 = vmatpush.bf16.msra.mxu0 0
    %1600 = vmatpush.bf16.msra.mxu0 %v1292
    %1601 = vmatpush.bf16.msra.mxu0 %v1291
    %1602 = vmatmul.bf16.gmra.mxu0 %v1592
    %v1603 = vpop.f32.mrf.mxu0
    %v1604 = vadd.f32 %v1281, %v1603
    %v1605 = vpop.f32.mrf.mxu0
    %1606 = vdwg.mxu0
    %v1607 = vadd.f32 %v1248, %v1604
    %v1608 = vxor.u32 %v1607, 2147483648
    %v1609 = vmul.f32 %v1608, 1.442695
    %v1610 = vpow.pop %v1609
    %v1611 = vadd.f32 %v1610, 1.0
    %v1612 = vrcp.pop %v1611
    %v1613 = vmul.f32 %v1611, %v1612
    %v1614 = vsub.f32 1.0, %v1613
    %v1615 = vmul.f32 %v1612, %v1614
    %v1616 = vadd.f32 %v1612, %v1615
    %vm1617 = vweird.f32 %v1611
    %vm1618 = vweird.f32 %v1612
    %vm1619 = vmor %vm1617, %vm1618
    %v1620 = vsel %vm1619, %v1612, %v1616
    %v1621 = vand.u32 2147483647, %v1611
    %vm1622 = vcmp.eq.f32.partialorder %v1621, 8.507059e+37
    %v1623 = vand.u32 %v1611, 2147483648
    %v1624 = vor.u32 1.1754944e-38, %v1623
    %v1625 = vsel %vm1622, %v1624, %v1620
    %v1626 = vmul.f32 1.0, %v1625
    %1628 = vrot.lane.b32.xlu0 %v1604, 64
    %v1629 = vpop.permute.xlu0 %1628
    %v1631 = vmul.f32 %v1626, %v1629
    %1633 = vrot.lane.b32.xlu0 %v1631, 64
    %v1634 = vpop.permute.xlu0 %1633
    %v1636 = vadd.f32 %v1248, %v1634
    %v1637 = vtanh.pop %v1636
    %v1638 = vsub.f32 1.0, %v1626
    %1640 = vrot.lane.b32.xlu0 %v1637, 96
    %v1641 = vpop.permute.xlu0 %1640
    %v1643 = vmul.f32 %v1638, %v1641
    %v1644 = vmul.f32 %v1626, %v1586
    %v1645 = vadd.f32 %v1643, %v1644
    %v1646 = vpack.c.bf16 %v1645, %v1645
    %1648 = vrot.lane.b32.xlu0 %v1646, 96
    %v1649 = vpop.permute.xlu0 %1648
    %v1651 = vsel %vm1295, %v1649, 0
    %1653 = vmatpush.bf16.msra.mxu0 0
    %1654 = vmatpush.bf16.msra.mxu0 0
    %1655 = vmatpush.bf16.msra.mxu0 0
    %1656 = vmatpush.bf16.msra.mxu0 0
    %1657 = vmatpush.bf16.msra.mxu0 0
    %1658 = vmatpush.bf16.msra.mxu0 0
    %1659 = vmatpush.bf16.msra.mxu0 %v1292
    %1660 = vmatpush.bf16.msra.mxu0 %v1291
    %1661 = vmatmul.bf16.gmra.mxu0 %v1651
    %v1662 = vpop.f32.mrf.mxu0
    %v1663 = vadd.f32 %v1281, %v1662
    %v1664 = vpop.f32.mrf.mxu0
    %1665 = vdwg.mxu0
    %v1666 = vadd.f32 %v1251, %v1663
    %v1667 = vxor.u32 %v1666, 2147483648
    %v1668 = vmul.f32 %v1667, 1.442695
    %v1669 = vpow.pop %v1668
    %v1670 = vadd.f32 %v1669, 1.0
    %v1671 = vrcp.pop %v1670
    %v1672 = vmul.f32 %v1670, %v1671
    %v1673 = vsub.f32 1.0, %v1672
    %v1674 = vmul.f32 %v1671, %v1673
    %v1675 = vadd.f32 %v1671, %v1674
    %vm1676 = vweird.f32 %v1670
    %vm1677 = vweird.f32 %v1671
    %vm1678 = vmor %vm1676, %vm1677
    %v1679 = vsel %vm1678, %v1671, %v1675
    %v1680 = vand.u32 2147483647, %v1670
    %vm1681 = vcmp.eq.f32.partialorder %v1680, 8.507059e+37
    %v1682 = vand.u32 %v1670, 2147483648
    %v1683 = vor.u32 1.1754944e-38, %v1682
    %v1684 = vsel %vm1681, %v1683, %v1679
    %v1685 = vmul.f32 1.0, %v1684
    %1687 = vrot.lane.b32.xlu0 %v1663, 64
    %v1688 = vpop.permute.xlu0 %1687
    %v1690 = vmul.f32 %v1685, %v1688
    %1692 = vrot.lane.b32.xlu0 %v1690, 64
    %v1693 = vpop.permute.xlu0 %1692
    %v1695 = vadd.f32 %v1251, %v1693
    %v1696 = vtanh.pop %v1695
    %v1697 = vsub.f32 1.0, %v1685
    %1699 = vrot.lane.b32.xlu0 %v1696, 96
    %v1700 = vpop.permute.xlu0 %1699
    %v1702 = vmul.f32 %v1697, %v1700
    %v1703 = vmul.f32 %v1685, %v1645
    %v1704 = vadd.f32 %v1702, %v1703
    %v1705 = vpack.c.bf16 %v1704, %v1704
    %1707 = vrot.lane.b32.xlu0 %v1705, 96
    %v1708 = vpop.permute.xlu0 %1707
    %v1710 = vsel %vm1295, %v1708, 0
    %1712 = vmatpush.bf16.msra.mxu0 0
    %1713 = vmatpush.bf16.msra.mxu0 0
    %1714 = vmatpush.bf16.msra.mxu0 0
    %1715 = vmatpush.bf16.msra.mxu0 0
    %1716 = vmatpush.bf16.msra.mxu0 0
    %1717 = vmatpush.bf16.msra.mxu0 0
    %1718 = vmatpush.bf16.msra.mxu0 %v1292
    %1719 = vmatpush.bf16.msra.mxu0 %v1291
    %1720 = vmatmul.bf16.gmra.mxu0 %v1710
    %v1721 = vpop.f32.mrf.mxu0
    %v1722 = vadd.f32 %v1281, %v1721
    %v1723 = vpop.f32.mrf.mxu0
    %1724 = vdwg.mxu0
    %v1725 = vadd.f32 %v1253, %v1722
    %v1726 = vxor.u32 %v1725, 2147483648
    %v1727 = vmul.f32 %v1726, 1.442695
    %v1728 = vpow.pop %v1727
    %v1729 = vadd.f32 %v1728, 1.0
    %v1730 = vrcp.pop %v1729
    %v1731 = vmul.f32 %v1729, %v1730
    %v1732 = vsub.f32 1.0, %v1731
    %v1733 = vmul.f32 %v1730, %v1732
    %v1734 = vadd.f32 %v1730, %v1733
    %vm1735 = vweird.f32 %v1729
    %vm1736 = vweird.f32 %v1730
    %vm1737 = vmor %vm1735, %vm1736
    %v1738 = vsel %vm1737, %v1730, %v1734
    %v1739 = vand.u32 2147483647, %v1729
    %vm1740 = vcmp.eq.f32.partialorder %v1739, 8.507059e+37
    %v1741 = vand.u32 %v1729, 2147483648
    %v1742 = vor.u32 1.1754944e-38, %v1741
    %v1743 = vsel %vm1740, %v1742, %v1738
    %v1744 = vmul.f32 1.0, %v1743
    %1746 = vrot.lane.b32.xlu0 %v1722, 64
    %v1747 = vpop.permute.xlu0 %1746
    %v1749 = vmul.f32 %v1744, %v1747
    %1751 = vrot.lane.b32.xlu0 %v1749, 64
    %v1752 = vpop.permute.xlu0 %1751
    %v1754 = vadd.f32 %v1253, %v1752
    %v1755 = vtanh.pop %v1754
    %v1756 = vsub.f32 1.0, %v1744
    %1758 = vrot.lane.b32.xlu0 %v1755, 96
    %v1759 = vpop.permute.xlu0 %1758
    %v1761 = vmul.f32 %v1756, %v1759
    %v1762 = vmul.f32 %v1744, %v1704
    %v1763 = vadd.f32 %v1761, %v1762
    %v1764 = vpack.c.bf16 %v1763, %v1763
    %1766 = vrot.lane.b32.xlu0 %v1764, 96
    %v1767 = vpop.permute.xlu0 %1766
    %v1769 = vsel %vm1295, %v1767, 0
    %1771 = vmatpush.bf16.msra.mxu0 0
    %1772 = vmatpush.bf16.msra.mxu0 0
    %1773 = vmatpush.bf16.msra.mxu0 0
    %1774 = vmatpush.bf16.msra.mxu0 0
    %1775 = vmatpush.bf16.msra.mxu0 0
    %1776 = vmatpush.bf16.msra.mxu0 0
    %1777 = vmatpush.bf16.msra.mxu0 %v1292
    %1778 = vmatpush.bf16.msra.mxu0 %v1291
    %1779 = vmatmul.bf16.gmra.mxu0 %v1769
    %v1780 = vpop.f32.mrf.mxu0
    %v1781 = vadd.f32 %v1281, %v1780
    %v1782 = vpop.f32.mrf.mxu0
    %1783 = vdwg.mxu0
    %v1784 = vadd.f32 %v1256, %v1781
    %v1785 = vxor.u32 %v1784, 2147483648
    %v1786 = vmul.f32 %v1785, 1.442695
    %v1787 = vpow.pop %v1786
    %v1788 = vadd.f32 %v1787, 1.0
    %v1789 = vrcp.pop %v1788
    %v1790 = vmul.f32 %v1788, %v1789
    %v1791 = vsub.f32 1.0, %v1790
    %v1792 = vmul.f32 %v1789, %v1791
    %v1793 = vadd.f32 %v1789, %v1792
    %vm1794 = vweird.f32 %v1788
    %vm1795 = vweird.f32 %v1789
    %vm1796 = vmor %vm1794, %vm1795
    %v1797 = vsel %vm1796, %v1789, %v1793
    %v1798 = vand.u32 2147483647, %v1788
    %vm1799 = vcmp.eq.f32.partialorder %v1798, 8.507059e+37
    %v1800 = vand.u32 %v1788, 2147483648
    %v1801 = vor.u32 1.1754944e-38, %v1800
    %v1802 = vsel %vm1799, %v1801, %v1797
    %v1803 = vmul.f32 1.0, %v1802
    %1805 = vrot.lane.b32.xlu0 %v1781, 64
    %v1806 = vpop.permute.xlu0 %1805
    %v1808 = vmul.f32 %v1803, %v1806
    %1810 = vrot.lane.b32.xlu0 %v1808, 64
    %v1811 = vpop.permute.xlu0 %1810
    %v1813 = vadd.f32 %v1256, %v1811
    %v1814 = vtanh.pop %v1813
    %v1815 = vsub.f32 1.0, %v1803
    %1817 = vrot.lane.b32.xlu0 %v1814, 96
    %v1818 = vpop.permute.xlu0 %1817
    %v1820 = vmul.f32 %v1815, %v1818
    %v1821 = vmul.f32 %v1803, %v1763
    %v1822 = vadd.f32 %v1820, %v1821
    %v1823 = vpack.c.bf16 %v1822, %v1822
    %1825 = vrot.lane.b32.xlu0 %v1823, 96
    %v1826 = vpop.permute.xlu0 %1825
    %v1828 = vsel %vm1295, %v1826, 0
    %1830 = vmatpush.bf16.msra.mxu0 0
    %1831 = vmatpush.bf16.msra.mxu0 0
    %1832 = vmatpush.bf16.msra.mxu0 0
    %1833 = vmatpush.bf16.msra.mxu0 0
    %1834 = vmatpush.bf16.msra.mxu0 0
    %1835 = vmatpush.bf16.msra.mxu0 0
    %1836 = vmatpush.bf16.msra.mxu0 %v1292
    %1837 = vmatpush.bf16.msra.mxu0 %v1291
    %1838 = vmatmul.bf16.gmra.mxu0 %v1828
    %v1839 = vpop.f32.mrf.mxu0
    %v1840 = vadd.f32 %v1281, %v1839
    %v1841 = vpop.f32.mrf.mxu0
    %1842 = vdwg.mxu0
    %v1843 = vadd.f32 %v1258, %v1840
    %v1844 = vxor.u32 %v1843, 2147483648
    %v1845 = vmul.f32 %v1844, 1.442695
    %v1846 = vpow.pop %v1845
    %v1847 = vadd.f32 %v1846, 1.0
    %v1848 = vrcp.pop %v1847
    %v1849 = vmul.f32 %v1847, %v1848
    %v1850 = vsub.f32 1.0, %v1849
    %v1851 = vmul.f32 %v1848, %v1850
    %v1852 = vadd.f32 %v1848, %v1851
    %vm1853 = vweird.f32 %v1847
    %vm1854 = vweird.f32 %v1848
    %vm1855 = vmor %vm1853, %vm1854
    %v1856 = vsel %vm1855, %v1848, %v1852
    %v1857 = vand.u32 2147483647, %v1847
    %vm1858 = vcmp.eq.f32.partialorder %v1857, 8.507059e+37
    %v1859 = vand.u32 %v1847, 2147483648
    %v1860 = vor.u32 1.1754944e-38, %v1859
    %v1861 = vsel %vm1858, %v1860, %v1856
    %v1862 = vmul.f32 1.0, %v1861
    %1864 = vrot.lane.b32.xlu0 %v1840, 64
    %v1865 = vpop.permute.xlu0 %1864
    %v1867 = vmul.f32 %v1862, %v1865
    %1869 = vrot.lane.b32.xlu0 %v1867, 64
    %v1870 = vpop.permute.xlu0 %1869
    %v1872 = vadd.f32 %v1258, %v1870
    %v1873 = vtanh.pop %v1872
    %v1874 = vsub.f32 1.0, %v1862
    %1876 = vrot.lane.b32.xlu0 %v1873, 96
    %v1877 = vpop.permute.xlu0 %1876
    %v1879 = vmul.f32 %v1874, %v1877
    %v1880 = vmul.f32 %v1862, %v1822
    %v1881 = vadd.f32 %v1879, %v1880
    %v1882 = vpack.c.bf16 %v1881, %v1881
    %1884 = vrot.lane.b32.xlu0 %v1882, 96
    %v1885 = vpop.permute.xlu0 %1884
    %v1887 = vsel %vm1295, %v1885, 0
    %1889 = vmatpush.bf16.msra.mxu0 0
    %1890 = vmatpush.bf16.msra.mxu0 0
    %1891 = vmatpush.bf16.msra.mxu0 0
    %1892 = vmatpush.bf16.msra.mxu0 0
    %1893 = vmatpush.bf16.msra.mxu0 0
    %1894 = vmatpush.bf16.msra.mxu0 0
    %1895 = vmatpush.bf16.msra.mxu0 %v1292
    %1896 = vmatpush.bf16.msra.mxu0 %v1291
    %1897 = vmatmul.bf16.gmra.mxu0 %v1887
    %v1898 = vpop.f32.mrf.mxu0
    %v1899 = vadd.f32 %v1281, %v1898
    %v1900 = vpop.f32.mrf.mxu0
    %1901 = vdwg.mxu0
    %v1902 = vadd.f32 %v1261, %v1899
    %v1903 = vxor.u32 %v1902, 2147483648
    %v1904 = vmul.f32 %v1903, 1.442695
    %v1905 = vpow.pop %v1904
    %v1906 = vadd.f32 %v1905, 1.0
    %v1907 = vrcp.pop %v1906
    %v1908 = vmul.f32 %v1906, %v1907
    %v1909 = vsub.f32 1.0, %v1908
    %v1910 = vmul.f32 %v1907, %v1909
    %v1911 = vadd.f32 %v1907, %v1910
    %vm1912 = vweird.f32 %v1906
    %vm1913 = vweird.f32 %v1907
    %vm1914 = vmor %vm1912, %vm1913
    %v1915 = vsel %vm1914, %v1907, %v1911
    %v1916 = vand.u32 2147483647, %v1906
    %vm1917 = vcmp.eq.f32.partialorder %v1916, 8.507059e+37
    %v1918 = vand.u32 %v1906, 2147483648
    %v1919 = vor.u32 1.1754944e-38, %v1918
    %v1920 = vsel %vm1917, %v1919, %v1915
    %v1921 = vmul.f32 1.0, %v1920
    %1923 = vrot.lane.b32.xlu0 %v1899, 64
    %v1924 = vpop.permute.xlu0 %1923
    %v1926 = vmul.f32 %v1921, %v1924
    %1928 = vrot.lane.b32.xlu0 %v1926, 64
    %v1929 = vpop.permute.xlu0 %1928
    %v1931 = vadd.f32 %v1261, %v1929
    %v1932 = vtanh.pop %v1931
    %v1933 = vsub.f32 1.0, %v1921
    %1935 = vrot.lane.b32.xlu0 %v1932, 96
    %v1936 = vpop.permute.xlu0 %1935
    %v1938 = vmul.f32 %v1933, %v1936
    %v1939 = vmul.f32 %v1921, %v1881
    %v1940 = vadd.f32 %v1938, %v1939
    %v1941 = vpack.c.bf16 %v1940, %v1940
    %1943 = vrot.lane.b32.xlu0 %v1941, 96
    %v1944 = vpop.permute.xlu0 %1943
    %v1946 = vsel %vm1295, %v1944, 0
    %1948 = vmatpush.bf16.msra.mxu0 0
    %1949 = vmatpush.bf16.msra.mxu0 0
    %1950 = vmatpush.bf16.msra.mxu0 0
    %1951 = vmatpush.bf16.msra.mxu0 0
    %1952 = vmatpush.bf16.msra.mxu0 0
    %1953 = vmatpush.bf16.msra.mxu0 0
    %1954 = vmatpush.bf16.msra.mxu0 %v1292
    %1955 = vmatpush.bf16.msra.mxu0 %v1291
    %1956 = vmatmul.bf16.gmra.mxu0 %v1946
    %v1957 = vpop.f32.mrf.mxu0
    %v1958 = vadd.f32 %v1281, %v1957
    %v1959 = vpop.f32.mrf.mxu0
    %1960 = vdwg.mxu0
    %v1961 = vadd.f32 %v1263, %v1958
    %v1962 = vxor.u32 %v1961, 2147483648
    %v1963 = vmul.f32 %v1962, 1.442695
    %v1964 = vpow.pop %v1963
    %v1965 = vadd.f32 %v1964, 1.0
    %v1966 = vrcp.pop %v1965
    %v1967 = vmul.f32 %v1965, %v1966
    %v1968 = vsub.f32 1.0, %v1967
    %v1969 = vmul.f32 %v1966, %v1968
    %v1970 = vadd.f32 %v1966, %v1969
    %vm1971 = vweird.f32 %v1965
    %vm1972 = vweird.f32 %v1966
    %vm1973 = vmor %vm1971, %vm1972
    %v1974 = vsel %vm1973, %v1966, %v1970
    %v1975 = vand.u32 2147483647, %v1965
    %vm1976 = vcmp.eq.f32.partialorder %v1975, 8.507059e+37
    %v1977 = vand.u32 %v1965, 2147483648
    %v1978 = vor.u32 1.1754944e-38, %v1977
    %v1979 = vsel %vm1976, %v1978, %v1974
    %v1980 = vmul.f32 1.0, %v1979
    %1982 = vrot.lane.b32.xlu0 %v1958, 64
    %v1983 = vpop.permute.xlu0 %1982
    %v1985 = vmul.f32 %v1980, %v1983
    %1987 = vrot.lane.b32.xlu0 %v1985, 64
    %v1988 = vpop.permute.xlu0 %1987
    %v1990 = vadd.f32 %v1263, %v1988
    %v1991 = vtanh.pop %v1990
    %v1992 = vsub.f32 1.0, %v1980
    %1994 = vrot.lane.b32.xlu0 %v1991, 96
    %v1995 = vpop.permute.xlu0 %1994
    %v1997 = vmul.f32 %v1992, %v1995
    %v1998 = vmul.f32 %v1980, %v1940
    %v1999 = vadd.f32 %v1997, %v1998
    %v2000 = vpack.c.bf16 %v1999, %v1999
    %2002 = vrot.lane.b32.xlu0 %v2000, 96
    %v2003 = vpop.permute.xlu0 %2002
    %v2005 = vsel %vm1295, %v2003, 0
    %2007 = vmatpush.bf16.msra.mxu0 0
    %2008 = vmatpush.bf16.msra.mxu0 0
    %2009 = vmatpush.bf16.msra.mxu0 0
    %2010 = vmatpush.bf16.msra.mxu0 0
    %2011 = vmatpush.bf16.msra.mxu0 0
    %2012 = vmatpush.bf16.msra.mxu0 0
    %2013 = vmatpush.bf16.msra.mxu0 %v1292
    %2014 = vmatpush.bf16.msra.mxu0 %v1291
    %2015 = vmatmul.bf16.gmra.mxu0 %v2005
    %v2016 = vpop.f32.mrf.mxu0
    %v2017 = vadd.f32 %v1281, %v2016
    %v2018 = vpop.f32.mrf.mxu0
    %2019 = vdwg.mxu0
    %v2020 = vadd.f32 %v1266, %v2017
    %v2021 = vxor.u32 %v2020, 2147483648
    %v2022 = vmul.f32 %v2021, 1.442695
    %v2023 = vpow.pop %v2022
    %v2024 = vadd.f32 %v2023, 1.0
    %v2025 = vrcp.pop %v2024
    %v2026 = vmul.f32 %v2024, %v2025
    %v2027 = vsub.f32 1.0, %v2026
    %v2028 = vmul.f32 %v2025, %v2027
    %v2029 = vadd.f32 %v2025, %v2028
    %vm2030 = vweird.f32 %v2024
    %vm2031 = vweird.f32 %v2025
    %vm2032 = vmor %vm2030, %vm2031
    %v2033 = vsel %vm2032, %v2025, %v2029
    %v2034 = vand.u32 2147483647, %v2024
    %vm2035 = vcmp.eq.f32.partialorder %v2034, 8.507059e+37
    %v2036 = vand.u32 %v2024, 2147483648
    %v2037 = vor.u32 1.1754944e-38, %v2036
    %v2038 = vsel %vm2035, %v2037, %v2033
    %v2039 = vmul.f32 1.0, %v2038
    %2041 = vrot.lane.b32.xlu0 %v2017, 64
    %v2042 = vpop.permute.xlu0 %2041
    %v2044 = vmul.f32 %v2039, %v2042
    %2046 = vrot.lane.b32.xlu0 %v2044, 64
    %v2047 = vpop.permute.xlu0 %2046
    %v2049 = vadd.f32 %v1266, %v2047
    %v2050 = vtanh.pop %v2049
    %v2051 = vsub.f32 1.0, %v2039
    %2053 = vrot.lane.b32.xlu0 %v2050, 96
    %v2054 = vpop.permute.xlu0 %2053
    %v2056 = vmul.f32 %v2051, %v2054
    %v2057 = vmul.f32 %v2039, %v1999
    %v2058 = vadd.f32 %v2056, %v2057
    %v2059 = vpack.c.bf16 %v2058, %v2058
    %2061 = vrot.lane.b32.xlu0 %v2059, 96
    %v2062 = vpop.permute.xlu0 %2061
    %v2064 = vsel %vm1295, %v2062, 0
    %2066 = vmatpush.bf16.msra.mxu0 0
    %2067 = vmatpush.bf16.msra.mxu0 0
    %2068 = vmatpush.bf16.msra.mxu0 0
    %2069 = vmatpush.bf16.msra.mxu0 0
    %2070 = vmatpush.bf16.msra.mxu0 0
    %2071 = vmatpush.bf16.msra.mxu0 0
    %2072 = vmatpush.bf16.msra.mxu0 %v1292
    %2073 = vmatpush.bf16.msra.mxu0 %v1291
    %2074 = vmatmul.bf16.gmra.mxu0 %v2064
    %v2075 = vpop.f32.mrf.mxu0
    %v2076 = vadd.f32 %v1281, %v2075
    %v2077 = vpop.f32.mrf.mxu0
    %2078 = vdwg.mxu0
    %v2079 = vadd.f32 %v1268, %v2076
    %v2080 = vxor.u32 %v2079, 2147483648
    %v2081 = vmul.f32 %v2080, 1.442695
    %v2082 = vpow.pop %v2081
    %v2083 = vadd.f32 %v2082, 1.0
    %v2084 = vrcp.pop %v2083
    %v2085 = vmul.f32 %v2083, %v2084
    %v2086 = vsub.f32 1.0, %v2085
    %v2087 = vmul.f32 %v2084, %v2086
    %v2088 = vadd.f32 %v2084, %v2087
    %vm2089 = vweird.f32 %v2083
    %vm2090 = vweird.f32 %v2084
    %vm2091 = vmor %vm2089, %vm2090
    %v2092 = vsel %vm2091, %v2084, %v2088
    %v2093 = vand.u32 2147483647, %v2083
    %vm2094 = vcmp.eq.f32.partialorder %v2093, 8.507059e+37
    %v2095 = vand.u32 %v2083, 2147483648
    %v2096 = vor.u32 1.1754944e-38, %v2095
    %v2097 = vsel %vm2094, %v2096, %v2092
    %v2098 = vmul.f32 1.0, %v2097
    %2100 = vrot.lane.b32.xlu0 %v2076, 64
    %v2101 = vpop.permute.xlu0 %2100
    %v2103 = vmul.f32 %v2098, %v2101
    %2105 = vrot.lane.b32.xlu0 %v2103, 64
    %v2106 = vpop.permute.xlu0 %2105
    %v2108 = vadd.f32 %v1268, %v2106
    %v2109 = vtanh.pop %v2108
    %v2110 = vsub.f32 1.0, %v2098
    %2112 = vrot.lane.b32.xlu0 %v2109, 96
    %v2113 = vpop.permute.xlu0 %2112
    %v2115 = vmul.f32 %v2110, %v2113
    %v2116 = vmul.f32 %v2098, %v2058
    %v2117 = vadd.f32 %v2115, %v2116
    %v2118 = vpack.c.bf16 %v2117, %v2117
    %2120 = vrot.lane.b32.xlu0 %v2118, 96
    %v2121 = vpop.permute.xlu0 %2120
    %v2123 = vsel %vm1295, %v2121, 0
    %2125 = vmatpush.bf16.msra.mxu0 0
    %2126 = vmatpush.bf16.msra.mxu0 0
    %2127 = vmatpush.bf16.msra.mxu0 0
    %2128 = vmatpush.bf16.msra.mxu0 0
    %2129 = vmatpush.bf16.msra.mxu0 0
    %2130 = vmatpush.bf16.msra.mxu0 0
    %2131 = vmatpush.bf16.msra.mxu0 %v1292
    %2132 = vmatpush.bf16.msra.mxu0 %v1291
    %2133 = vmatmul.bf16.gmra.mxu0 %v2123
    %v2134 = vpop.f32.mrf.mxu0
    %v2135 = vadd.f32 %v1281, %v2134
    %v2136 = vpop.f32.mrf.mxu0
    %2137 = vdwg.mxu0
    %v2138 = vadd.f32 %v1271, %v2135
    %v2139 = vxor.u32 %v2138, 2147483648
    %v2140 = vmul.f32 %v2139, 1.442695
    %v2141 = vpow.pop %v2140
    %v2142 = vadd.f32 %v2141, 1.0
    %v2143 = vrcp.pop %v2142
    %v2144 = vmul.f32 %v2142, %v2143
    %v2145 = vsub.f32 1.0, %v2144
    %v2146 = vmul.f32 %v2143, %v2145
    %v2147 = vadd.f32 %v2143, %v2146
    %vm2148 = vweird.f32 %v2142
    %vm2149 = vweird.f32 %v2143
    %vm2150 = vmor %vm2148, %vm2149
    %v2151 = vsel %vm2150, %v2143, %v2147
    %v2152 = vand.u32 2147483647, %v2142
    %vm2153 = vcmp.eq.f32.partialorder %v2152, 8.507059e+37
    %v2154 = vand.u32 %v2142, 2147483648
    %v2155 = vor.u32 1.1754944e-38, %v2154
    %v2156 = vsel %vm2153, %v2155, %v2151
    %v2157 = vmul.f32 1.0, %v2156
    %2159 = vrot.lane.b32.xlu0 %v2135, 64
    %v2160 = vpop.permute.xlu0 %2159
    %v2162 = vmul.f32 %v2157, %v2160
    %2164 = vrot.lane.b32.xlu0 %v2162, 64
    %v2165 = vpop.permute.xlu0 %2164
    %v2167 = vadd.f32 %v1271, %v2165
    %v2168 = vtanh.pop %v2167
    %v2169 = vsub.f32 1.0, %v2157
    %2171 = vrot.lane.b32.xlu0 %v2168, 96
    %v2172 = vpop.permute.xlu0 %2171
    %v2174 = vmul.f32 %v2169, %v2172
    %v2175 = vmul.f32 %v2157, %v2117
    %v2176 = vadd.f32 %v2174, %v2175
    %v2177 = vpack.c.bf16 %v2176, %v2176
    %2179 = vrot.lane.b32.xlu0 %v2177, 96
    %v2180 = vpop.permute.xlu0 %2179
    %v2182 = vsel %vm1295, %v2180, 0
    %2184 = vmatpush.bf16.msra.mxu0 0
    %2185 = vmatpush.bf16.msra.mxu0 0
    %2186 = vmatpush.bf16.msra.mxu0 0
    %2187 = vmatpush.bf16.msra.mxu0 0
    %2188 = vmatpush.bf16.msra.mxu0 0
    %2189 = vmatpush.bf16.msra.mxu0 0
    %2190 = vmatpush.bf16.msra.mxu0 %v1292
    %2191 = vmatpush.bf16.msra.mxu0 %v1291
    %2192 = vmatmul.bf16.gmra.mxu0 %v2182
    %v2193 = vpop.f32.mrf.mxu0
    %v2194 = vadd.f32 %v1281, %v2193
    %v2195 = vpop.f32.mrf.mxu0
    %2196 = vdwg.mxu0
    %v2197 = vadd.f32 %v1273, %v2194
    %v2198 = vxor.u32 %v2197, 2147483648
    %v2199 = vmul.f32 %v2198, 1.442695
    %v2200 = vpow.pop %v2199
    %v2201 = vadd.f32 %v2200, 1.0
    %v2202 = vrcp.pop %v2201
    %v2203 = vmul.f32 %v2201, %v2202
    %v2204 = vsub.f32 1.0, %v2203
    %v2205 = vmul.f32 %v2202, %v2204
    %v2206 = vadd.f32 %v2202, %v2205
    %vm2207 = vweird.f32 %v2201
    %vm2208 = vweird.f32 %v2202
    %vm2209 = vmor %vm2207, %vm2208
    %v2210 = vsel %vm2209, %v2202, %v2206
    %v2211 = vand.u32 2147483647, %v2201
    %vm2212 = vcmp.eq.f32.partialorder %v2211, 8.507059e+37
    %v2213 = vand.u32 %v2201, 2147483648
    %v2214 = vor.u32 1.1754944e-38, %v2213
    %v2215 = vsel %vm2212, %v2214, %v2210
    %v2216 = vmul.f32 1.0, %v2215
    %2218 = vrot.lane.b32.xlu0 %v2194, 64
    %v2219 = vpop.permute.xlu0 %2218
    %v2221 = vmul.f32 %v2216, %v2219
    %2223 = vrot.lane.b32.xlu0 %v2221, 64
    %v2224 = vpop.permute.xlu0 %2223
    %v2226 = vadd.f32 %v1273, %v2224
    %v2227 = vtanh.pop %v2226
    %v2228 = vsub.f32 1.0, %v2216
    %2230 = vrot.lane.b32.xlu0 %v2227, 96
    %v2231 = vpop.permute.xlu0 %2230
    %v2233 = vmul.f32 %v2228, %v2231
    %v2234 = vmul.f32 %v2216, %v2176
    %v2235 = vadd.f32 %v2233, %v2234
    %v2236 = vpack.c.bf16 %v2235, %v2235
    %2238 = vrot.lane.b32.xlu0 %v2236, 96
    %v2239 = vpop.permute.xlu0 %2238
    %v2241 = vsel %vm1295, %v2239, 0
    %2243 = vmatpush.bf16.msra.mxu0 0
    %2244 = vmatpush.bf16.msra.mxu0 0
    %2245 = vmatpush.bf16.msra.mxu0 0
    %2246 = vmatpush.bf16.msra.mxu0 0
    %2247 = vmatpush.bf16.msra.mxu0 0
    %2248 = vmatpush.bf16.msra.mxu0 0
    %2249 = vmatpush.bf16.msra.mxu0 %v1292
    %2250 = vmatpush.bf16.msra.mxu0 %v1291
    %2251 = vmatmul.bf16.gmra.mxu0 %v2241
    %v2252 = vpop.f32.mrf.mxu0
    %v2253 = vadd.f32 %v1281, %v2252
    %v2254 = vpop.f32.mrf.mxu0
    %2255 = vdwg.mxu0
    %v2256 = vadd.f32 %v1197, %v2253
    %v2257 = vxor.u32 %v2256, 2147483648
    %v2258 = vmul.f32 %v2257, 1.442695
    %v2259 = vpow.pop %v2258
    %v2260 = vadd.f32 %v2259, 1.0
    %v2261 = vrcp.pop %v2260
    %v2262 = vmul.f32 %v2260, %v2261
    %v2263 = vsub.f32 1.0, %v2262
    %v2264 = vmul.f32 %v2261, %v2263
    %v2265 = vadd.f32 %v2261, %v2264
    %vm2266 = vweird.f32 %v2260
    %vm2267 = vweird.f32 %v2261
    %vm2268 = vmor %vm2266, %vm2267
    %v2269 = vsel %vm2268, %v2261, %v2265
    %v2270 = vand.u32 2147483647, %v2260
    %vm2271 = vcmp.eq.f32.partialorder %v2270, 8.507059e+37
    %v2272 = vand.u32 %v2260, 2147483648
    %v2273 = vor.u32 1.1754944e-38, %v2272
    %v2274 = vsel %vm2271, %v2273, %v2269
    %v2275 = vmul.f32 1.0, %v2274
    %2277 = vrot.lane.b32.xlu0 %v2253, 64
    %v2278 = vpop.permute.xlu0 %2277
    %v2280 = vmul.f32 %v2275, %v2278
    %2282 = vrot.lane.b32.xlu0 %v2280, 64
    %v2283 = vpop.permute.xlu0 %2282
    %v2285 = vadd.f32 %v1197, %v2283
    %v2286 = vtanh.pop %v2285
    %v2287 = vsub.f32 1.0, %v2275
    %2289 = vrot.lane.b32.xlu0 %v2286, 96
    %v2290 = vpop.permute.xlu0 %2289
    %v2292 = vmul.f32 %v2287, %v2290
    %v2293 = vmul.f32 %v2275, %v2235
    %v2294 = vadd.f32 %v2292, %v2293
    %v2295 = vld [vmem:[%s15] sm:$0xff]
    %v2296 = vld [vmem:[%s15 + $0x8] sm:$0xff]
    %v2297 = vld [vmem:[%s15 + $0x10] sm:$0xff]
    %v2298 = vld [vmem:[%s15 + $0x18] sm:$0xff]
    %v2299 = vld [vmem:[%s16] sm:$0x1]
    %v2301 = vperm.slane %v2299, 0
    %2305 = vrot.lane.b32.xlu0 %v2294, 96
    %v2306 = vpop.permute.xlu0 %2305
    %2307 = vrot.lane.b32.xlu0 0.0, 96
    %v2308 = vpop.permute.xlu0 %2307
    %v2309 = vsel %vm1295, %v2306, 0
    %v2311 = vsel %vm1295, %v2308, 0
    %2313 = vmatpush.msra.mxu0 0.0
    %2314 = vmatpush.msra.mxu0 0.0
    %2315 = vmatpush.msra.mxu0 0.0
    %2316 = vmatpush.msra.mxu0 0.0
    %2317 = vmatpush.msra.mxu0 0.0
    %2318 = vmatpush.msra.mxu0 0.0
    %2319 = vmatpush.msra.mxu0 0.0
    %2320 = vmatpush.msra.mxu0 0.0
    %2321 = vmatpush.msra.mxu0 0.0
    %2322 = vmatpush.msra.mxu0 0.0
    %2323 = vmatpush.msra.mxu0 0.0
    %2324 = vmatpush.msra.mxu0 0.0
    %2325 = vmatpush.msra.mxu0 %v2298
    %2326 = vmatpush.msra.mxu0 %v2297
    %2327 = vmatpush.msra.mxu0 %v2296
    %2328 = vmatpush.msra.mxu0 %v2295
    %2329 = vmatmul.f32.gmra.mxu0 %v2309
    %v2330 = vpop.f32.mrf.mxu0
    %v2331 = vadd.f32 %v2301, %v2330
    %2332 = vmatmul.f32.gmra.mxu0 %v2311
    %v2333 = vpop.f32.mrf.mxu0
    %v2334 = vadd.f32 %v2301, %v2333
    %2335 = vdwg.mxu0
    %v2336 = vlaneseq
    %v2337 = vshrl.u32 %v2336, 7
    %v2338 = vadd.s32 %v2337, 8
    %v2339 = vlaneseq
    %v2340 = vand.u32 %v2339, 127
    %vm2341 = vcmp.eq.s32.totalorder %v2337, 8
    %vm2342 = vcmp.eq.s32.totalorder %v2338, 8
    %vm2343 = vcmp.eq.s32.totalorder %v2340, 0
    %vm2344 = vmand %vm2341, %vm2343
    %vm2345 = vmand %vm2342, %vm2343
    %v2346 = vstv %s1185
    %v2347 = vsel %vm2344, %v2346, %v2331
    %v2348 = vsel %vm2345, %v2346, %v2334
    %2349 = vst [vmem:[#allocation2] sm:$0xff] %v2347
    %2350 = vst [vmem:[#allocation2 + $0x8] sm:$0xff] %v2348
    // Predicated region
    $region70: #{tpu_custom_call.1} parent=1 // pred_check
      _
    $region71: #{tpu_custom_call.1} parent=1 // pred_check_branch
      %2352 = sbr.rel (0) target = $region73
    $region72: #{tpu_custom_call.1} parent=1 // pred_region
      %2354 = vsyncadd [#allocation3], 0
      %s2355 = sshll.u32 [#allocation2], 4
      %s2356 = int_to_ptr.vmem [resolvable:$true] %s2355
      %s2357 = sshll.u32 %s17, 4
      %s2358 = int_to_ptr.hbm [resolvable:$true] %s2357
      %2363 = dma.vmem_to_hbm [thread:$0]  %s2356, 256, %s2358, [#allocation3], 128, 128, 8
    $region73: #{tpu_custom_call.1} parent=1 // pred_fallthru
      _
    // Predicated region
    $region74: #{tpu_custom_call.1} parent=1 // pred_check
      _
    $region75: #{tpu_custom_call.1} parent=1 // pred_check_branch
      %2365 = sbr.rel (0) target = $region77
    $region76: #{tpu_custom_call.1} parent=1 // pred_region
      %2367 = dma.done [#allocation3], 256
    $region77: #{tpu_custom_call.1} parent=1 // pred_fallthru
      _
    %2368 = vsyncpa [#allocation3], 1

</llo_original>
